<compile_context>
chip_gen: v7x
topology: tpu7x:2x2x1
jax: 0.10.0
libtpu: 0.0.40
codegen_flags: <defaults>
</compile_context>

<pallas_src>
import jax
import jax.numpy as jnp
from jax.experimental import pallas as pl
from jax.experimental.pallas import tpu as pltpu


IN_FEATURES = 6000
HIDDEN = 2048
OUT_FEATURES = 512
K_PAD = 6016            # 6000 rounded up to a multiple of 128 (47 * 128)
BN_EPS = 1e-5
L2_EPS = 1e-24          # avoids 0/0 = NaN in the L2 normalize
TN = 512                # fc1 output-feature tile; HIDDEN // TN tiles total


# ---------------------------------------------------------------------------
# Fused kernel: grid = (2 core-splits, hidden tiles per split).
# ---------------------------------------------------------------------------
def fused_kernel(x_ref, w1_ref, s1_ref, b1_ref, w2_ref, o_ref):
    j = pl.program_id(1)

    @pl.when(j == 0)
    def _():
        o_ref[...] = jnp.zeros_like(o_ref)

    # fc1 tile: int8 weights cast losslessly to bf16, bf16 x bf16 -> f32 on the
    # MXU; per-column quant scale + bias + ReLU applied to the tiny (B, tn)
    # result on the VPU.
    w1_bf16 = w1_ref[...].astype(jnp.bfloat16)
    h = jnp.dot(x_ref[...], w1_bf16, preferred_element_type=jnp.float32)
    h = jnp.maximum(h * s1_ref[...] + b1_ref[...], 0.0)
    # Dropout(p=0.5) is identity in eval mode.

    # fc2 partial product for this hidden slice (BN scale folded into w2);
    # accumulate directly into the resident output block (same block across j).
    o_ref[...] += jnp.dot(h.astype(jnp.bfloat16), w2_ref[...],
                          preferred_element_type=jnp.float32)


# ---------------------------------------------------------------------------
# One-time parameter transform (host/XLA side, outside the kernel).
# ---------------------------------------------------------------------------
def _quantize_w1(w1):
    """Per-hidden-column symmetric int8 quantization: w1 ~= q * s1."""
    absmax = jnp.max(jnp.abs(w1), axis=0, keepdims=True)            # (1, H)
    s1 = jnp.maximum(absmax, 1e-30) / 127.0
    q = jnp.clip(jnp.round(w1 / s1), -127.0, 127.0).astype(jnp.int8)
    return q, s1


def prepare_params(params, *, tn=TN):
    assert HIDDEN % tn == 0 and (HIDDEN // tn) % 2 == 0
    # Fold eval-mode BatchNorm into fc2; stream w2 in bf16.
    bn_scale = params["gamma"] * jax.lax.rsqrt(params["running_var"] + BN_EPS)
    w2_f = (params["w2"] * bn_scale).astype(jnp.bfloat16)           # (H, OUT)
    b2_f = (params["b2"] - params["running_mean"]) * bn_scale + params["beta"]

    # int8-quantize fc1's weight (the dominant HBM stream), pad K 6000 -> 6016
    # and lay it out as contiguous per-tile slabs (nt, K_PAD, tn).
    w1_q, s1 = _quantize_w1(params["w1"])
    w1_pad = jnp.zeros((K_PAD, HIDDEN), jnp.int8).at[:IN_FEATURES].set(w1_q)
    w1_slabs = w1_pad.reshape(K_PAD, HIDDEN // tn, tn).transpose(1, 0, 2)

    return {"w1_slabs": w1_slabs, "s1": s1, "b1": params["b1"],
            "w2_f": w2_f, "b2_f": b2_f}


# ---------------------------------------------------------------------------
# Forward wrapper (jitted so pad/cast and the tiny epilogue fuse around the
# pallas_call instead of costing separate dispatches).
# ---------------------------------------------------------------------------
@jax.jit
def text_branch2_forward(x, prep):
    w1_slabs = prep["w1_slabs"]                    # (nt, K_PAD, tn) int8
    nt, kpad, tn = w1_slabs.shape
    half = nt // 2                                 # hidden tiles per core-split
    s1, b1 = prep["s1"], prep["b1"]
    w2_f, b2_f = prep["w2_f"], prep["b2_f"]
    B = x.shape[0]
    n_out = w2_f.shape[1]

    # Zero-pad x's feature dim to K_PAD and cast to bf16 (MXU-native).
    x_bf16 = jnp.zeros((B, kpad), jnp.bfloat16).at[:, : x.shape[1]].set(
        x.astype(jnp.bfloat16))

    partials = pl.pallas_call(
        fused_kernel,
        out_shape=jax.ShapeDtypeStruct((2, B, n_out), jnp.float32),
        grid_spec=pltpu.PrefetchScalarGridSpec(
            num_scalar_prefetch=0,
            # Leading size-2 axis shards the hidden tiles across v7x's two
            # TensorCores ("parallel"); on single-TC v5e/v6e it runs serially.
            grid=(2, half),
            in_specs=[
                pl.BlockSpec((B, kpad), lambda c, j: (0, 0)),           # x (resident)
                pl.BlockSpec((None, kpad, tn),
                             lambda c, j: (c * half + j, 0, 0)),        # w1 slab (squeezed)
                pl.BlockSpec((1, tn), lambda c, j: (0, c * half + j)),  # s1 tile
                pl.BlockSpec((1, tn), lambda c, j: (0, c * half + j)),  # b1 tile
                pl.BlockSpec((tn, n_out),
                             lambda c, j: (c * half + j, 0)),           # w2 row tile
            ],
            out_specs=pl.BlockSpec((None, B, n_out), lambda c, j: (c, 0, 0)),
        ),
        compiler_params=pltpu.CompilerParams(
            # Accumulator carried across the tile axis -> "arbitrary";
            # core-split axis -> "parallel".
            dimension_semantics=("parallel", "arbitrary"),
            # ~7 MiB of double-buffered tiles per core; ample on every chip.
            vmem_limit_bytes=32 << 20,
        ),
    )(x_bf16, w1_slabs, s1, b1, w2_f)

    # Combine the two per-core partials, add the BN-folded bias, L2-normalize.
    y = partials[0] + partials[1] + b2_f
    inv_norm = jax.lax.rsqrt(jnp.sum(y * y, axis=1, keepdims=True) + L2_EPS)
    return y * inv_norm


# ---------------------------------------------------------------------------
# Parameter construction and references (eval-mode PyTorch semantics).
# ---------------------------------------------------------------------------
def make_params(key):
    k1, k2, k3, k4, k5, k6, k7 = jax.random.split(key, 7)
    IN, H, OUT = IN_FEATURES, HIDDEN, OUT_FEATURES
    return {
        # stored as (in_features, out_features) so y = x @ W + b
        "w1": jax.random.normal(k1, (IN, H), jnp.float32) * 0.01,
        "b1": jax.random.normal(k2, (1, H), jnp.float32) * 0.01,
        "w2": jax.random.normal(k3, (H, OUT), jnp.float32) * 0.01,
        "b2": jax.random.normal(k4, (1, OUT), jnp.float32) * 0.01,
        "gamma": jax.random.normal(k5, (1, OUT), jnp.float32) * 0.1 + 1.0,
        "beta": jax.random.normal(k6, (1, OUT), jnp.float32) * 0.1,
        "running_mean": jax.random.normal(k7, (1, OUT), jnp.float32) * 0.05,
        "running_var": jnp.ones((1, OUT), jnp.float32),
    }


def reference_forward_f32(x, p):
    """Pure f32 eval-mode module semantics (no quantization)."""
    h = jnp.maximum(
        jnp.dot(x, p["w1"], precision=jax.lax.Precision.HIGHEST) + p["b1"], 0.0)
    y = jnp.dot(h, p["w2"], precision=jax.lax.Precision.HIGHEST) + p["b2"]
    y = (y - p["running_mean"]) * jax.lax.rsqrt(p["running_var"] + BN_EPS) \
        * p["gamma"] + p["beta"]
    return y / jnp.sqrt(jnp.sum(y * y, axis=1, keepdims=True))


def reference_forward_matched(x, p):
    """Reference that quantizes the same operands as the kernel
    (int8 w1 with per-column scale, bf16 x / h / BN-folded w2)."""
    w1_q, s1 = _quantize_w1(p["w1"])
    xq = x.astype(jnp.bfloat16).astype(jnp.float32)
    h = jnp.dot(xq, w1_q.astype(jnp.float32),
                precision=jax.lax.Precision.HIGHEST) * s1 + p["b1"]
    h = jnp.maximum(h, 0.0)
    hq = h.astype(jnp.bfloat16).astype(jnp.float32)
    bn_scale = p["gamma"] * jax.lax.rsqrt(p["running_var"] + BN_EPS)
    w2_f = (p["w2"] * bn_scale).astype(jnp.bfloat16).astype(jnp.float32)
    b2_f = (p["b2"] - p["running_mean"]) * bn_scale + p["beta"]
    y = jnp.dot(hq, w2_f, precision=jax.lax.Precision.HIGHEST) + b2_f
    inv_norm = jax.lax.rsqrt(jnp.sum(y * y, axis=1, keepdims=True) + L2_EPS)
    return y * inv_norm


if __name__ == "__main__":
    key = jax.random.PRNGKey(0)
    kx, kp = jax.random.split(key)

    B = 8  # small batch; feature dims (6000 -> 2048 -> 512) fixed by module
    x = jax.random.normal(kx, (B, IN_FEATURES), jnp.float32)
    params = make_params(kp)
    prep = prepare_params(params)

    out = text_branch2_forward(x, prep)
    out = jax.block_until_ready(out)
    assert out.shape == (B, OUT_FEATURES)

    # Tight check vs a reference using the same quantized operands.
    ref_m = reference_forward_matched(x, params)
    err_m = float(jnp.max(jnp.abs(out - ref_m)))
    assert jnp.allclose(out, ref_m, atol=2e-3, rtol=2e-3), \
        f"mismatch vs quantization-matched reference (max abs err {err_m})"

    # Loose sanity check vs the pure-f32 module semantics (quantization error).
    ref_f = reference_forward_f32(x, params)
    err_f = float(jnp.max(jnp.abs(out - ref_f)))
    assert jnp.allclose(out, ref_f, atol=2e-2, rtol=2e-2), \
        f"quantization error too large vs f32 reference (max abs err {err_f})"

    print("KERNEL_OK")
</pallas_src>

<mosaic_0001>
module attributes {stable_mosaic.version = 11 : i64} {
  func.func @fused_kernel(%arg0: i32, %arg1: i32, %arg2: memref<8x6016xbf16, #tpu.memory_space<vmem>>, %arg3: memref<1x6016x512xi8, #tpu.memory_space<vmem>>, %arg4: memref<1x512xf32, #tpu.memory_space<vmem>>, %arg5: memref<1x512xf32, #tpu.memory_space<vmem>>, %arg6: memref<512x512xbf16, #tpu.memory_space<vmem>>, %arg7: memref<1x8x512xf32, #tpu.memory_space<vmem>>) attributes {dimension_semantics = [#tpu.dimension_semantics<parallel>, #tpu.dimension_semantics<arbitrary>], iteration_bounds = array<i64: 2, 2>, scalar_prefetch = 0 : i64, scratch_operands = 0 : i64, tpu.core_type = #tpu.core_type<tc>, window_params = [{pipeline_mode = #tpu.pipeline_mode<synchronous>, transform_indices = @transform_0, window_bounds = array<i64: 8, 6016>}, {transform_indices = @transform_1, window_bounds = array<i64: 1, 6016, 512>}, {transform_indices = @transform_2, window_bounds = array<i64: 1, 512>}, {transform_indices = @transform_3, window_bounds = array<i64: 1, 512>}, {transform_indices = @transform_4, window_bounds = array<i64: 512, 512>}, {transform_indices = @transform_5, window_bounds = array<i64: 1, 8, 512>}]} {
    %c0_i32 = arith.constant 0 : i32
    %0 = arith.cmpi eq, %arg1, %c0_i32 : i32
    %1 = arith.extui %0 : i1 to i32
    %c0_i32_0 = arith.constant 0 : i32
    %2 = arith.cmpi ne, %1, %c0_i32_0 : i32
    scf.if %2 {
      %cst_19 = arith.constant 0.000000e+00 : f32
      %25 = vector.broadcast %cst_19 : f32 to vector<8x512xf32>
      %c0_20 = arith.constant 0 : index
      %c0_21 = arith.constant 0 : index
      %c0_22 = arith.constant 0 : index
      %26 = vector.load %arg7[%c0_20, %c0_21, %c0_22] : memref<1x8x512xf32, #tpu.memory_space<vmem>>, vector<1x8x512xf32>
      %27 = vector.shape_cast %26 : vector<1x8x512xf32> to vector<8x512xf32>
      %28 = vector.shape_cast %25 : vector<8x512xf32> to vector<1x8x512xf32>
      tpu.vector_store %arg7[%c0_20, %c0_21, %c0_22], %28 {strides = array<i32>} : memref<1x8x512xf32, #tpu.memory_space<vmem>>, vector<1x8x512xf32>,
    } else {
    }
    %c0 = arith.constant 0 : index
    %c0_1 = arith.constant 0 : index
    %c0_2 = arith.constant 0 : index
    %3 = vector.load %arg3[%c0, %c0_1, %c0_2] : memref<1x6016x512xi8, #tpu.memory_space<vmem>>, vector<1x6016x512xi8>
    %4 = vector.shape_cast %3 : vector<1x6016x512xi8> to vector<6016x512xi8>
    %5 = arith.sitofp %4 : vector<6016x512xi8> to vector<6016x512xbf16>
    %c0_3 = arith.constant 0 : index
    %c0_4 = arith.constant 0 : index
    %6 = vector.load %arg2[%c0_3, %c0_4] : memref<8x6016xbf16, #tpu.memory_space<vmem>>, vector<8x6016xbf16>
    %cst = arith.constant dense<0.000000e+00> : vector<8x512xf32>
    %7 = tpu.matmul %6, %5, %cst {dimension_numbers = #tpu.dot_dimension_numbers<[1], [0], [0], [1], [0, 0, 1, 1], [], []>} : vector<8x6016xbf16>, vector<6016x512xbf16>, vector<8x512xf32> -> vector<8x512xf32>
    %c0_5 = arith.constant 0 : index
    %c0_6 = arith.constant 0 : index
    %8 = vector.load %arg4[%c0_5, %c0_6] : memref<1x512xf32, #tpu.memory_space<vmem>>, vector<1x512xf32>
    %9 = vector.broadcast %8 : vector<1x512xf32> to vector<8x512xf32>
    %10 = arith.mulf %7, %9 : vector<8x512xf32>
    %c0_7 = arith.constant 0 : index
    %c0_8 = arith.constant 0 : index
    %11 = vector.load %arg5[%c0_7, %c0_8] : memref<1x512xf32, #tpu.memory_space<vmem>>, vector<1x512xf32>
    %12 = vector.broadcast %11 : vector<1x512xf32> to vector<8x512xf32>
    %13 = arith.addf %10, %12 : vector<8x512xf32>
    %cst_9 = arith.constant 0.000000e+00 : f32
    %14 = vector.broadcast %cst_9 : f32 to vector<8x512xf32>
    %15 = arith.maximumf %13, %14 : vector<8x512xf32>
    %c0_10 = arith.constant 0 : index
    %c0_11 = arith.constant 0 : index
    %c0_12 = arith.constant 0 : index
    %16 = vector.load %arg7[%c0_10, %c0_11, %c0_12] : memref<1x8x512xf32, #tpu.memory_space<vmem>>, vector<1x8x512xf32>
    %17 = vector.shape_cast %16 : vector<1x8x512xf32> to vector<8x512xf32>
    %18 = arith.truncf %15 : vector<8x512xf32> to vector<8x512xbf16>
    %c0_13 = arith.constant 0 : index
    %c0_14 = arith.constant 0 : index
    %19 = vector.load %arg6[%c0_13, %c0_14] : memref<512x512xbf16, #tpu.memory_space<vmem>>, vector<512x512xbf16>
    %cst_15 = arith.constant dense<0.000000e+00> : vector<8x512xf32>
    %20 = tpu.matmul %18, %19, %cst_15 {dimension_numbers = #tpu.dot_dimension_numbers<[1], [0], [0], [1], [0, 0, 1, 1], [], []>} : vector<8x512xbf16>, vector<512x512xbf16>, vector<8x512xf32> -> vector<8x512xf32>
    %21 = arith.addf %17, %20 : vector<8x512xf32>
    %c0_16 = arith.constant 0 : index
    %c0_17 = arith.constant 0 : index
    %c0_18 = arith.constant 0 : index
    %22 = vector.load %arg7[%c0_16, %c0_17, %c0_18] : memref<1x8x512xf32, #tpu.memory_space<vmem>>, vector<1x8x512xf32>
    %23 = vector.shape_cast %22 : vector<1x8x512xf32> to vector<8x512xf32>
    %24 = vector.shape_cast %21 : vector<8x512xf32> to vector<1x8x512xf32>
    tpu.vector_store %arg7[%c0_16, %c0_17, %c0_18], %24 {strides = array<i32>} : memref<1x8x512xf32, #tpu.memory_space<vmem>>, vector<1x8x512xf32>,
    return
  }
  func.func @transform_0(%arg0: i32, %arg1: i32) -> (i32, i32) {
    %c0_i32 = arith.constant 0 : i32
    %c0_i32_0 = arith.constant 0 : i32
    %c0_i32_1 = arith.constant 0 : i32
    return %c0_i32, %c0_i32_0 : i32, i32
  }
  func.func @transform_1(%arg0: i32, %arg1: i32) -> (i32, i32, i32) {
    %c2_i32 = arith.constant 2 : i32
    %0 = arith.muli %arg0, %c2_i32 : i32
    %1 = arith.addi %0, %arg1 : i32
    %c0_i32 = arith.constant 0 : i32
    %c0_i32_0 = arith.constant 0 : i32
    %c0_i32_1 = arith.constant 0 : i32
    return %1, %c0_i32, %c0_i32_0 : i32, i32, i32
  }
  func.func @transform_2(%arg0: i32, %arg1: i32) -> (i32, i32) {
    %c2_i32 = arith.constant 2 : i32
    %0 = arith.muli %arg0, %c2_i32 : i32
    %1 = arith.addi %0, %arg1 : i32
    %c0_i32 = arith.constant 0 : i32
    %c0_i32_0 = arith.constant 0 : i32
    return %c0_i32, %1 : i32, i32
  }
  func.func @transform_3(%arg0: i32, %arg1: i32) -> (i32, i32) {
    %c2_i32 = arith.constant 2 : i32
    %0 = arith.muli %arg0, %c2_i32 : i32
    %1 = arith.addi %0, %arg1 : i32
    %c0_i32 = arith.constant 0 : i32
    %c0_i32_0 = arith.constant 0 : i32
    return %c0_i32, %1 : i32, i32
  }
  func.func @transform_4(%arg0: i32, %arg1: i32) -> (i32, i32) {
    %c2_i32 = arith.constant 2 : i32
    %0 = arith.muli %arg0, %c2_i32 : i32
    %1 = arith.addi %0, %arg1 : i32
    %c0_i32 = arith.constant 0 : i32
    %c0_i32_0 = arith.constant 0 : i32
    return %1, %c0_i32 : i32, i32
  }
  func.func @transform_5(%arg0: i32, %arg1: i32) -> (i32, i32, i32) {
    %c0_i32 = arith.constant 0 : i32
    %c0_i32_0 = arith.constant 0 : i32
    %c0_i32_1 = arith.constant 0 : i32
    return %arg0, %c0_i32, %c0_i32_0 : i32, i32, i32
  }
}

</mosaic_0001>

<llo_original>
// kernel: text_branch2_forward.1
$region0: #{text_branch2_forward.1}
  #allocation0 [shape = 'u32[]', space=smem, size = 0x4, offset = 0x4, fixed_abs, tag = 'smem constant byte address 0x4 - core index']
  #allocation1 [shape = 'u32[144,128]{1,0:T(1,128)}', space=vmem, size = 0x12000, scoped, tag = 'internal scratch']
  %s0 = inlined_call_operand.vmem [shape: bf16[8,6016], index: 0, kind: input, shape index: {}]
  %s1 = inlined_call_operand.hbm [shape: s8[4,6016,512], index: 1, kind: input, shape index: {}]
  %s2 = inlined_call_operand.hbm [shape: f32[1,2048], index: 2, kind: input, shape index: {}]
  %s3 = inlined_call_operand.hbm [shape: f32[1,2048], index: 3, kind: input, shape index: {}]
  %s4 = inlined_call_operand.hbm [shape: bf16[2048,512], index: 4, kind: input, shape index: {}]
  %s5 = inlined_call_operand.vmem [shape: f32[2,8,512], index: 5, kind: output, shape index: {}]
  %s6 = sld [smem:[#allocation0]]
  $region73: #{text_branch2_forward.1} parent=0
    _
  %s8 = ssub.s32 1, %s6
  %s9 = scalar_select 0, %s8, %s6
  $region1: #{text_branch2_forward.1} parent=0
    #allocation2 [shape = 'u8[6160384]{0}', space=vmem, size = 0x5e0000, scoped, tag = 'input window, operand 1']
    #allocation3 [shape = 's32[2]{0}', space=sflag, size = 0x8, scoped, tag = 'scoped memory for text_branch2_forward.1']
    #allocation4 [shape = 'u8[4096]{0}', space=vmem, size = 0x1000, scoped, tag = 'input window, operand 2']
    #allocation5 [shape = 's32[2]{0}', space=sflag, size = 0x8, scoped, tag = 'scoped memory for text_branch2_forward.1']
    #allocation6 [shape = 'u8[4096]{0}', space=vmem, size = 0x1000, scoped, tag = 'input window, operand 3']
    #allocation7 [shape = 'u8[1048576]{0}', space=vmem, size = 0x100000, scoped, tag = 'input window, operand 4']
    #allocation8 [shape = 's32[2]{0}', space=sflag, size = 0x8, scoped, tag = 'scoped memory for text_branch2_forward.1']
    %10 = vsyncpa [#allocation3], 0
    %s11 = scalar_lea.sflag [#allocation3], 1
    %12 = vsyncpa %s11, 0
    %13 = vsyncpa [#allocation5], 0
    %s14 = scalar_lea.sflag [#allocation5], 1
    %15 = vsyncpa %s14, 0
    %16 = vsyncpa [#allocation8], 0
    %s17 = scalar_lea.sflag [#allocation8], 1
    %18 = vsyncpa %s17, 0
    loop: start=0, step=1, limit=6
    $region2: #{text_branch2_forward.1} parent=1 // loop_pre_header
      _
    $region3: #{text_branch2_forward.1} parent=1 // loop_header
      %s20 = sphi 0, %s24
      %p21 = scmp.ge.s32.totalorder %s20, 6
      %s27 = sphi 0, %s39
      %s28 = sphi 0, %s35
      %s29 = sphi 0, %s27
      %s30 = sphi 0, %s28
      %s31 = sphi 0, %s29
      %s32 = sphi 0, %s30
      %s40 = sphi 0, %s40
      %s42 = sphi 0, %s40
      %s43 = sphi 0, %s42
      %s57 = sphi 0, %s43
      %s67 = sphi 0, %s69
      %s70 = sphi 0, %s67
      %s71 = sphi 0, %s70
      %s87 = sphi 0, %s71
      %s97 = sphi 0, %s99
      %s100 = sphi 0, %s97
      %s101 = sphi 0, %s100
      %s117 = sphi 0, %s101
      %s127 = sphi 0, %s129
      %s130 = sphi 0, %s127
      %s131 = sphi 0, %s130
      %s147 = sphi 0, %s131
      %s157 = sphi 0, %s159
      %s160 = sphi 0, %s157
      %s161 = sphi 0, %s160
      %s177 = sphi 0, %s161
      %s183 = sphi 0, %s185
      %s186 = sphi 0, %s183
      %s187 = sphi 0, %s186
      %s203 = sphi 0, %s187
    $region4: #{text_branch2_forward.1} parent=1 // loop_header_branch
      %23 = sbr.rel (%p21) target = $region8
    $region5: #{text_branch2_forward.1} parent=1 // loop_body
      %s25 = ssub.s32 %s20, 1
      %s26 = ssub.s32 %s20, 2
      %s33 = sadd.s32 1, %s28
      %p34 = scmp.ge.s32.totalorder %s33, 2
      %s35 = scalar_select %p34, 0, %s33
      %s36 = sadd.s32 1, %s27
      %s37 = scalar_select %p34, %s36, %s27
      %p38 = scmp.ge.s32.totalorder %s37, 2
      %s39 = scalar_select %p38, 0, %s37
      %s41 = sadd.s32 %s40, 1
      %p44 = scmp.eq.s32.totalorder %s20, 3
      %p45 = scmp.ne.s32.totalorder %s40, %s42
      %p46 = scmp.eq.s32.totalorder %s20, 0
      %p47 = por %p45, %p46
      %p48 = scmp.ne.s32.totalorder %s40, %s42
      %p49 = scmp.eq.s32.totalorder %s25, 3
      %p50 = por %p48, %p49
      %p51 = scmp.ne.s32.totalorder %s42, %s43
      %p52 = scmp.eq.s32.totalorder %s25, 0
      %p53 = por %p51, %p52
      %p54 = scmp.ne.s32.totalorder %s42, %s43
      %p55 = scmp.eq.s32.totalorder %s26, 3
      %p56 = por %p54, %p55
      %p58 = scmp.ne.s32.totalorder %s43, %s57
      %p59 = scmp.eq.s32.totalorder %s26, 0
      %p60 = por %p58, %p59
      %s61 = smul.u32 %s27, 2
      %s62 = sadd.s32 %s61, %s28
      %s63 = smul.u32 %s39, 2
      %s64 = sadd.s32 %s63, %s35
      %s65 = ssub.s32 %s62, %s64
      %p66 = scmp.eq.s32.totalorder %s65, 0
      %s68 = sadd.s32 %s67, 1
      %s69 = scalar_select %p66, %s67, %s68
      %p72 = pneg %p66
      %p73 = scmp.eq.s32.totalorder %s20, 3
      %p74 = por %p72, %p73
      %p75 = scmp.ne.s32.totalorder %s67, %s70
      %p76 = scmp.eq.s32.totalorder %s20, 0
      %p77 = por %p75, %p76
      %p78 = scmp.ne.s32.totalorder %s67, %s70
      %p79 = scmp.eq.s32.totalorder %s25, 3
      %p80 = por %p78, %p79
      %p81 = scmp.ne.s32.totalorder %s70, %s71
      %p82 = scmp.eq.s32.totalorder %s25, 0
      %p83 = por %p81, %p82
      %p84 = scmp.ne.s32.totalorder %s70, %s71
      %p85 = scmp.eq.s32.totalorder %s26, 3
      %p86 = por %p84, %p85
      %p88 = scmp.ne.s32.totalorder %s71, %s87
      %p89 = scmp.eq.s32.totalorder %s26, 0
      %p90 = por %p88, %p89
      %s91 = smul.u32 %s27, 2
      %s92 = sadd.s32 %s91, %s28
      %s93 = smul.u32 %s39, 2
      %s94 = sadd.s32 %s93, %s35
      %s95 = ssub.s32 %s92, %s94
      %p96 = scmp.eq.s32.totalorder %s95, 0
      %s98 = sadd.s32 %s97, 1
      %s99 = scalar_select %p96, %s97, %s98
      %p102 = pneg %p96
      %p103 = scmp.eq.s32.totalorder %s20, 3
      %p104 = por %p102, %p103
      %p105 = scmp.ne.s32.totalorder %s97, %s100
      %p106 = scmp.eq.s32.totalorder %s20, 0
      %p107 = por %p105, %p106
      %p108 = scmp.ne.s32.totalorder %s97, %s100
      %p109 = scmp.eq.s32.totalorder %s25, 3
      %p110 = por %p108, %p109
      %p111 = scmp.ne.s32.totalorder %s100, %s101
      %p112 = scmp.eq.s32.totalorder %s25, 0
      %p113 = por %p111, %p112
      %p114 = scmp.ne.s32.totalorder %s100, %s101
      %p115 = scmp.eq.s32.totalorder %s26, 3
      %p116 = por %p114, %p115
      %p118 = scmp.ne.s32.totalorder %s101, %s117
      %p119 = scmp.eq.s32.totalorder %s26, 0
      %p120 = por %p118, %p119
      %s121 = smul.u32 %s27, 2
      %s122 = sadd.s32 %s121, %s28
      %s123 = smul.u32 %s39, 2
      %s124 = sadd.s32 %s123, %s35
      %s125 = ssub.s32 %s122, %s124
      %p126 = scmp.eq.s32.totalorder %s125, 0
      %s128 = sadd.s32 %s127, 1
      %s129 = scalar_select %p126, %s127, %s128
      %p132 = pneg %p126
      %p133 = scmp.eq.s32.totalorder %s20, 3
      %p134 = por %p132, %p133
      %p135 = scmp.ne.s32.totalorder %s127, %s130
      %p136 = scmp.eq.s32.totalorder %s20, 0
      %p137 = por %p135, %p136
      %p138 = scmp.ne.s32.totalorder %s127, %s130
      %p139 = scmp.eq.s32.totalorder %s25, 3
      %p140 = por %p138, %p139
      %p141 = scmp.ne.s32.totalorder %s130, %s131
      %p142 = scmp.eq.s32.totalorder %s25, 0
      %p143 = por %p141, %p142
      %p144 = scmp.ne.s32.totalorder %s130, %s131
      %p145 = scmp.eq.s32.totalorder %s26, 3
      %p146 = por %p144, %p145
      %p148 = scmp.ne.s32.totalorder %s131, %s147
      %p149 = scmp.eq.s32.totalorder %s26, 0
      %p150 = por %p148, %p149
      %s151 = smul.u32 %s27, 2
      %s152 = sadd.s32 %s151, %s28
      %s153 = smul.u32 %s39, 2
      %s154 = sadd.s32 %s153, %s35
      %s155 = ssub.s32 %s152, %s154
      %p156 = scmp.eq.s32.totalorder %s155, 0
      %s158 = sadd.s32 %s157, 1
      %s159 = scalar_select %p156, %s157, %s158
      %p162 = pneg %p156
      %p163 = scmp.eq.s32.totalorder %s20, 3
      %p164 = por %p162, %p163
      %p165 = scmp.ne.s32.totalorder %s157, %s160
      %p166 = scmp.eq.s32.totalorder %s20, 0
      %p167 = por %p165, %p166
      %p168 = scmp.ne.s32.totalorder %s157, %s160
      %p169 = scmp.eq.s32.totalorder %s25, 3
      %p170 = por %p168, %p169
      %p171 = scmp.ne.s32.totalorder %s160, %s161
      %p172 = scmp.eq.s32.totalorder %s25, 0
      %p173 = por %p171, %p172
      %p174 = scmp.ne.s32.totalorder %s160, %s161
      %p175 = scmp.eq.s32.totalorder %s26, 3
      %p176 = por %p174, %p175
      %p178 = scmp.ne.s32.totalorder %s161, %s177
      %p179 = scmp.eq.s32.totalorder %s26, 0
      %p180 = por %p178, %p179
      %s181 = ssub.s32 %s27, %s39
      %p182 = scmp.eq.s32.totalorder %s181, 0
      %s184 = sadd.s32 %s183, 1
      %s185 = scalar_select %p182, %s183, %s184
      %p188 = pneg %p182
      %p189 = scmp.eq.s32.totalorder %s20, 3
      %p190 = por %p188, %p189
      %p191 = scmp.ne.s32.totalorder %s183, %s186
      %p192 = scmp.eq.s32.totalorder %s20, 0
      %p193 = por %p191, %p192
      %p194 = scmp.ne.s32.totalorder %s183, %s186
      %p195 = scmp.eq.s32.totalorder %s25, 3
      %p196 = por %p194, %p195
      %p197 = scmp.ne.s32.totalorder %s186, %s187
      %p198 = scmp.eq.s32.totalorder %s25, 0
      %p199 = por %p197, %p198
      %p200 = scmp.ne.s32.totalorder %s186, %s187
      %p201 = scmp.eq.s32.totalorder %s26, 3
      %p202 = por %p200, %p201
      %p204 = scmp.ne.s32.totalorder %s187, %s203
      %p205 = scmp.eq.s32.totalorder %s26, 0
      %p206 = por %p204, %p205
      %p207 = scmp.le.s32.totalorder 1, %s20
      %p208 = scmp.lt.s32.totalorder %s20, 5
      %p209 = pnand %p207, %p208
      %p210 = pneg %p209
      // Predicated region
      $region9: #{text_branch2_forward.1} parent=5 // pred_check
        _
      $region10: #{text_branch2_forward.1} parent=5 // pred_check_branch
        %212 = sbr.rel (%p209) target = $region12
      $region11: #{text_branch2_forward.1} parent=5 // pred_region
        %s213 = ssub.s32 %s20, 1
        // Predicated region
        $region13: #{text_branch2_forward.1} parent=11 // pred_check
          %p214 = pneg %p53
        $region14: #{text_branch2_forward.1} parent=11 // pred_check_branch
          %216 = sbr.rel (%p214) target = $region16
        $region15: #{text_branch2_forward.1} parent=11 // pred_region
          _
        $region16: #{text_branch2_forward.1} parent=11 // pred_fallthru
          _
      $region12: #{text_branch2_forward.1} parent=5 // pred_fallthru
        _
      %p217 = scmp.lt.s32.totalorder %s20, 4
      // Predicated region
      $region17: #{text_branch2_forward.1} parent=5 // pred_check
        %p218 = pneg %p217
      $region18: #{text_branch2_forward.1} parent=5 // pred_check_branch
        %220 = sbr.rel (%p218) target = $region20
      $region19: #{text_branch2_forward.1} parent=5 // pred_region
        // Predicated region
        $region21: #{text_branch2_forward.1} parent=19 // pred_check
          %p221 = pneg %p77
        $region22: #{text_branch2_forward.1} parent=19 // pred_check_branch
          %223 = sbr.rel (%p221) target = $region24
        $region23: #{text_branch2_forward.1} parent=19 // pred_region
          %s224 = sand.u32 %s67, 1
          %s225 = scalar_lea.sflag [#allocation3], %s224
          %s226 = sand.u32 %s67, 1
          %s227 = smul.addr %s226, 6016
          %s228 = scalar_lea.vmem [#allocation2], %s227
          %s229 = smul.u32 %s27, 2
          %s230 = sadd.s32 %s229, %s28
          %s232 = ssub.s32 96256, 96256
          %233 = vsyncadd %s225, %s232
          %s234 = smul.addr %s230, 752
          %s235 = smul.addr %s234, 128
          %s236 = scalar_lea.hbm %s1, %s235
          %s237 = sshll.u32 %s228, 4
          %s238 = int_to_ptr.vmem [resolvable:$true] %s237
          %243 = dma.hbm_to_vmem [thread:$0]  %s236, 96256, %s238, %s225, 512, 512, 32
        $region24: #{text_branch2_forward.1} parent=19 // pred_fallthru
          _
        // Predicated region
        $region25: #{text_branch2_forward.1} parent=19 // pred_check
          %p244 = pneg %p107
        $region26: #{text_branch2_forward.1} parent=19 // pred_check_branch
          %246 = sbr.rel (%p244) target = $region28
        $region27: #{text_branch2_forward.1} parent=19 // pred_region
          %s247 = sand.u32 %s20, 1
          %s248 = scalar_lea.sflag [#allocation5], %s247
          %s249 = sand.u32 %s97, 1
          %s250 = smul.addr %s249, 4
          %s251 = scalar_lea.vmem [#allocation4], %s250
          %s252 = smul.u32 %s27, 2
          %s253 = sadd.s32 %s252, %s28
          %s254 = smul.u32 4, %s253
          %s256 = ssub.s32 64, 64
          %257 = vsyncadd %s248, %s256
          %s258 = smul.addr %s254, 16
          %s259 = scalar_lea.hbm %s2, %s258
          %s261 = sshll.u32 %s251, 4
          %s262 = int_to_ptr.vmem [resolvable:$true] %s261
          %264 = dma.hbm_to_vmem [thread:$0]  %s259, 64, %s262, %s248
        $region28: #{text_branch2_forward.1} parent=19 // pred_fallthru
          _
        // Predicated region
        $region29: #{text_branch2_forward.1} parent=19 // pred_check
          %p265 = pneg %p137
        $region30: #{text_branch2_forward.1} parent=19 // pred_check_branch
          %267 = sbr.rel (%p265) target = $region32
        $region31: #{text_branch2_forward.1} parent=19 // pred_region
          %s268 = sand.u32 %s20, 1
          %s269 = scalar_lea.sflag [#allocation5], %s268
          %s270 = sand.u32 %s127, 1
          %s271 = smul.addr %s270, 4
          %s272 = scalar_lea.vmem [#allocation6], %s271
          %s273 = smul.u32 %s27, 2
          %s274 = sadd.s32 %s273, %s28
          %s275 = smul.u32 4, %s274
          %s277 = ssub.s32 64, 64
          %278 = vsyncadd %s269, %s277
          %s279 = smul.addr %s275, 16
          %s280 = scalar_lea.hbm %s3, %s279
          %s282 = sshll.u32 %s272, 4
          %s283 = int_to_ptr.vmem [resolvable:$true] %s282
          %285 = dma.hbm_to_vmem [thread:$0]  %s280, 64, %s283, %s269
        $region32: #{text_branch2_forward.1} parent=19 // pred_fallthru
          _
        // Predicated region
        $region33: #{text_branch2_forward.1} parent=19 // pred_check
          %p286 = pneg %p167
        $region34: #{text_branch2_forward.1} parent=19 // pred_check_branch
          %288 = sbr.rel (%p286) target = $region36
        $region35: #{text_branch2_forward.1} parent=19 // pred_region
          %s289 = sand.u32 %s157, 1
          %s290 = scalar_lea.sflag [#allocation8], %s289
          %s291 = sand.u32 %s157, 1
          %s292 = smul.addr %s291, 1024
          %s293 = scalar_lea.vmem [#allocation7], %s292
          %s294 = smul.u32 %s27, 2
          %s295 = sadd.s32 %s294, %s28
          %s296 = smul.u32 64, %s295
          %s298 = ssub.s32 16384, 16384
          %299 = vsyncadd %s290, %s298
          %s300 = smul.addr %s296, 4
          %s301 = smul.addr %s300, 64
          %s302 = scalar_lea.hbm %s4, %s301
          %s303 = sshll.u32 %s293, 4
          %s304 = int_to_ptr.vmem [resolvable:$true] %s303
          %309 = dma.hbm_to_vmem [thread:$0]  %s302, 16384, %s304, %s290, 256, 256, 16
        $region36: #{text_branch2_forward.1} parent=19 // pred_fallthru
          _
      $region20: #{text_branch2_forward.1} parent=5 // pred_fallthru
        _
      %p310 = scmp.le.s32.totalorder 1, %s20
      %p311 = scmp.lt.s32.totalorder %s20, 5
      %p312 = pnand %p310, %p311
      %p313 = pneg %p312
      // Predicated region
      $region37: #{text_branch2_forward.1} parent=5 // pred_check
        _
      $region38: #{text_branch2_forward.1} parent=5 // pred_check_branch
        %315 = sbr.rel (%p312) target = $region40
      $region39: #{text_branch2_forward.1} parent=5 // pred_region
        %s316 = ssub.s32 %s20, 1
        %s317 = sand.u32 %s70, 1
        %s318 = scalar_lea.sflag [#allocation3], %s317
        %s319 = sand.u32 %s70, 1
        %s320 = smul.addr %s319, 6016
        %s321 = scalar_lea.vmem [#allocation2], %s320
        // Predicated region
        $region41: #{text_branch2_forward.1} parent=39 // pred_check
          %p322 = pneg %p83
        $region42: #{text_branch2_forward.1} parent=39 // pred_check_branch
          %324 = sbr.rel (%p322) target = $region44
        $region43: #{text_branch2_forward.1} parent=39 // pred_region
          %325 = dma.done %s318, 96256
        $region44: #{text_branch2_forward.1} parent=39 // pred_fallthru
          _
        %s326 = sand.u32 %s25, 1
        %s327 = scalar_lea.sflag [#allocation5], %s326
        %s328 = sand.u32 %s100, 1
        %s329 = smul.addr %s328, 4
        %s330 = scalar_lea.vmem [#allocation4], %s329
        // Predicated region
        $region45: #{text_branch2_forward.1} parent=39 // pred_check
          %p331 = pneg %p113
        $region46: #{text_branch2_forward.1} parent=39 // pred_check_branch
          %333 = sbr.rel (%p331) target = $region48
        $region47: #{text_branch2_forward.1} parent=39 // pred_region
          %334 = dma.done %s327, 64
        $region48: #{text_branch2_forward.1} parent=39 // pred_fallthru
          _
        %s335 = sand.u32 %s25, 1
        %s336 = scalar_lea.sflag [#allocation5], %s335
        %s337 = sand.u32 %s130, 1
        %s338 = smul.addr %s337, 4
        %s339 = scalar_lea.vmem [#allocation6], %s338
        // Predicated region
        $region49: #{text_branch2_forward.1} parent=39 // pred_check
          %p340 = pneg %p143
        $region50: #{text_branch2_forward.1} parent=39 // pred_check_branch
          %342 = sbr.rel (%p340) target = $region52
        $region51: #{text_branch2_forward.1} parent=39 // pred_region
          %343 = dma.done %s336, 64
        $region52: #{text_branch2_forward.1} parent=39 // pred_fallthru
          _
        %s344 = sand.u32 %s160, 1
        %s345 = scalar_lea.sflag [#allocation8], %s344
        %s346 = sand.u32 %s160, 1
        %s347 = smul.addr %s346, 1024
        %s348 = scalar_lea.vmem [#allocation7], %s347
        // Predicated region
        $region53: #{text_branch2_forward.1} parent=39 // pred_check
          %p349 = pneg %p173
        $region54: #{text_branch2_forward.1} parent=39 // pred_check_branch
          %351 = sbr.rel (%p349) target = $region56
        $region55: #{text_branch2_forward.1} parent=39 // pred_region
          %352 = dma.done %s345, 16384
        $region56: #{text_branch2_forward.1} parent=39 // pred_fallthru
          _
        %p353 = pneg %p53
        %p354 = pneg %p50
        %s355 = sand.u32 %s70, 1
        %s356 = scalar_lea.sflag [#allocation3], %s355
        %s357 = sand.u32 %s70, 1
        %s358 = smul.addr %s357, 6016
        %s359 = scalar_lea.vmem [#allocation2], %s358
        %p360 = pneg %p83
        %p361 = pneg %p80
        %s362 = sand.u32 %s25, 1
        %s363 = scalar_lea.sflag [#allocation5], %s362
        %s364 = sand.u32 %s100, 1
        %s365 = smul.addr %s364, 4
        %s366 = scalar_lea.vmem [#allocation4], %s365
        %p367 = pneg %p113
        %p368 = pneg %p110
        %s369 = sand.u32 %s25, 1
        %s370 = scalar_lea.sflag [#allocation5], %s369
        %s371 = sand.u32 %s130, 1
        %s372 = smul.addr %s371, 4
        %s373 = scalar_lea.vmem [#allocation6], %s372
        %p374 = pneg %p143
        %p375 = pneg %p140
        %s376 = sand.u32 %s160, 1
        %s377 = scalar_lea.sflag [#allocation8], %s376
        %s378 = sand.u32 %s160, 1
        %s379 = smul.addr %s378, 1024
        %s380 = scalar_lea.vmem [#allocation7], %s379
        %p381 = pneg %p173
        %p382 = pneg %p170
        %p383 = pneg %p199
        %p384 = pneg %p196
        %p385 = scmp.lt.s32.totalorder %s29, 1
        %s386 = scalar_select %p385, %s29, 1
        %s387 = smul.addr %s386, 4
        %s388 = smul.addr %s387, 8
        %s389 = scalar_lea.vmem %s5, %s388
        %s390 = smul.u32 %s29, 2
        %s391 = sadd.s32 %s390, %s30
        %s392 = smul.u32 %s29, 2
        %s393 = sadd.s32 %s392, %s30
        %s394 = smul.u32 4, %s393
        %s395 = smul.u32 %s29, 2
        %s396 = sadd.s32 %s395, %s30
        %s397 = smul.u32 4, %s396
        %s398 = smul.u32 %s29, 2
        %s399 = sadd.s32 %s398, %s30
        %s400 = smul.u32 64, %s399
        %p401 = scmp.lt.s32.totalorder %s29, 1
        %s402 = scalar_select %p401, %s29, 1
        %s403 = smul.addr %s402, 4
        %s404 = smul.addr %s403, 8
        %s405 = scalar_lea.vmem %s5, %s404
        %p407 = scmp.eq.s32.totalorder %s30, 0
        // Predicated region
        $region57: #{text_branch2_forward.1} parent=39 // pred_check
          %p408 = pneg %p407
        $region58: #{text_branch2_forward.1} parent=39 // pred_check_branch
          %410 = sbr.rel (%p408) target = $region60
        $region59: #{text_branch2_forward.1} parent=39 // pred_region
          %411 = vst [vmem:[%s405] sm:$0xff] 0.0
          %412 = vst [vmem:[%s405 + $0x8] sm:$0xff] 0.0
          %413 = vst [vmem:[%s405 + $0x10] sm:$0xff] 0.0
          %414 = vst [vmem:[%s405 + $0x18] sm:$0xff] 0.0
        $region60: #{text_branch2_forward.1} parent=39 // pred_fallthru
          _
        %v415 = vld [vmem:[%s321] sm:$0xff]
        %v416 = vld [vmem:[%s321 + $0x8] sm:$0xff]
        %v417 = vld [vmem:[%s321 + $0x10] sm:$0xff]
        %v418 = vld [vmem:[%s321 + $0x18] sm:$0xff]
        %v419 = vld [vmem:[%s321 + $0x20] sm:$0xff]
        %v420 = vld [vmem:[%s321 + $0x28] sm:$0xff]
        %v421 = vld [vmem:[%s321 + $0x30] sm:$0xff]
        %v422 = vld [vmem:[%s321 + $0x38] sm:$0xff]
        %v423 = vld [vmem:[%s321 + $0x40] sm:$0xff]
        %v424 = vld [vmem:[%s321 + $0x48] sm:$0xff]
        %v425 = vld [vmem:[%s321 + $0x50] sm:$0xff]
        %v426 = vld [vmem:[%s321 + $0x58] sm:$0xff]
        %v427 = vld [vmem:[%s321 + $0x60] sm:$0xff]
        %v428 = vld [vmem:[%s321 + $0x68] sm:$0xff]
        %v429 = vld [vmem:[%s321 + $0x70] sm:$0xff]
        %v430 = vld [vmem:[%s321 + $0x78] sm:$0xff]
        %v431 = vld [vmem:[%s321 + $0x80] sm:$0xff]
        %v432 = vld [vmem:[%s321 + $0x88] sm:$0xff]
        %v433 = vld [vmem:[%s321 + $0x90] sm:$0xff]
        %v434 = vld [vmem:[%s321 + $0x98] sm:$0xff]
        %v435 = vld [vmem:[%s321 + $0xa0] sm:$0xff]
        %v436 = vld [vmem:[%s321 + $0xa8] sm:$0xff]
        %v437 = vld [vmem:[%s321 + $0xb0] sm:$0xff]
        %v438 = vld [vmem:[%s321 + $0xb8] sm:$0xff]
        %v439 = vld [vmem:[%s321 + $0xc0] sm:$0xff]
        %v440 = vld [vmem:[%s321 + $0xc8] sm:$0xff]
        %v441 = vld [vmem:[%s321 + $0xd0] sm:$0xff]
        %v442 = vld [vmem:[%s321 + $0xd8] sm:$0xff]
        %v443 = vld [vmem:[%s321 + $0xe0] sm:$0xff]
        %v444 = vld [vmem:[%s321 + $0xe8] sm:$0xff]
        %v445 = vld [vmem:[%s321 + $0xf0] sm:$0xff]
        %v446 = vld [vmem:[%s321 + $0xf8] sm:$0xff]
        %v447 = vld [vmem:[%s321 + $0x100] sm:$0xff]
        %v448 = vld [vmem:[%s321 + $0x108] sm:$0xff]
        %v449 = vld [vmem:[%s321 + $0x110] sm:$0xff]
        %v450 = vld [vmem:[%s321 + $0x118] sm:$0xff]
        %v451 = vld [vmem:[%s321 + $0x120] sm:$0xff]
        %v452 = vld [vmem:[%s321 + $0x128] sm:$0xff]
        %v453 = vld [vmem:[%s321 + $0x130] sm:$0xff]
        %v454 = vld [vmem:[%s321 + $0x138] sm:$0xff]
        %v455 = vld [vmem:[%s321 + $0x140] sm:$0xff]
        %v456 = vld [vmem:[%s321 + $0x148] sm:$0xff]
        %v457 = vld [vmem:[%s321 + $0x150] sm:$0xff]
        %v458 = vld [vmem:[%s321 + $0x158] sm:$0xff]
        %v459 = vld [vmem:[%s321 + $0x160] sm:$0xff]
        %v460 = vld [vmem:[%s321 + $0x168] sm:$0xff]
        %v461 = vld [vmem:[%s321 + $0x170] sm:$0xff]
        %v462 = vld [vmem:[%s321 + $0x178] sm:$0xff]
        %v463 = vld [vmem:[%s321 + $0x180] sm:$0xff]
        %v464 = vld [vmem:[%s321 + $0x188] sm:$0xff]
        %v465 = vld [vmem:[%s321 + $0x190] sm:$0xff]
        %v466 = vld [vmem:[%s321 + $0x198] sm:$0xff]
        %v467 = vld [vmem:[%s321 + $0x1a0] sm:$0xff]
        %v468 = vld [vmem:[%s321 + $0x1a8] sm:$0xff]
        %v469 = vld [vmem:[%s321 + $0x1b0] sm:$0xff]
        %v470 = vld [vmem:[%s321 + $0x1b8] sm:$0xff]
        %v471 = vld [vmem:[%s321 + $0x1c0] sm:$0xff]
        %v472 = vld [vmem:[%s321 + $0x1c8] sm:$0xff]
        %v473 = vld [vmem:[%s321 + $0x1d0] sm:$0xff]
        %v474 = vld [vmem:[%s321 + $0x1d8] sm:$0xff]
        %v475 = vld [vmem:[%s321 + $0x1e0] sm:$0xff]
        %v476 = vld [vmem:[%s321 + $0x1e8] sm:$0xff]
        %v477 = vld [vmem:[%s321 + $0x1f0] sm:$0xff]
        %v478 = vld [vmem:[%s321 + $0x1f8] sm:$0xff]
        %v479 = vld [vmem:[%s321 + $0x200] sm:$0xff]
        %v480 = vld [vmem:[%s321 + $0x208] sm:$0xff]
        %v481 = vld [vmem:[%s321 + $0x210] sm:$0xff]
        %v482 = vld [vmem:[%s321 + $0x218] sm:$0xff]
        %v483 = vld [vmem:[%s321 + $0x220] sm:$0xff]
        %v484 = vld [vmem:[%s321 + $0x228] sm:$0xff]
        %v485 = vld [vmem:[%s321 + $0x230] sm:$0xff]
        %v486 = vld [vmem:[%s321 + $0x238] sm:$0xff]
        %v487 = vld [vmem:[%s321 + $0x240] sm:$0xff]
        %v488 = vld [vmem:[%s321 + $0x248] sm:$0xff]
        %v489 = vld [vmem:[%s321 + $0x250] sm:$0xff]
        %v490 = vld [vmem:[%s321 + $0x258] sm:$0xff]
        %v491 = vld [vmem:[%s321 + $0x260] sm:$0xff]
        %v492 = vld [vmem:[%s321 + $0x268] sm:$0xff]
        %v493 = vld [vmem:[%s321 + $0x270] sm:$0xff]
        %v494 = vld [vmem:[%s321 + $0x278] sm:$0xff]
        %v495 = vld [vmem:[%s321 + $0x280] sm:$0xff]
        %v496 = vld [vmem:[%s321 + $0x288] sm:$0xff]
        %v497 = vld [vmem:[%s321 + $0x290] sm:$0xff]
        %v498 = vld [vmem:[%s321 + $0x298] sm:$0xff]
        %v499 = vld [vmem:[%s321 + $0x2a0] sm:$0xff]
        %v500 = vld [vmem:[%s321 + $0x2a8] sm:$0xff]
        %v501 = vld [vmem:[%s321 + $0x2b0] sm:$0xff]
        %v502 = vld [vmem:[%s321 + $0x2b8] sm:$0xff]
        %v503 = vld [vmem:[%s321 + $0x2c0] sm:$0xff]
        %v504 = vld [vmem:[%s321 + $0x2c8] sm:$0xff]
        %v505 = vld [vmem:[%s321 + $0x2d0] sm:$0xff]
        %v506 = vld [vmem:[%s321 + $0x2d8] sm:$0xff]
        %v507 = vld [vmem:[%s321 + $0x2e0] sm:$0xff]
        %v508 = vld [vmem:[%s321 + $0x2e8] sm:$0xff]
        %v509 = vld [vmem:[%s321 + $0x2f0] sm:$0xff]
        %v510 = vld [vmem:[%s321 + $0x2f8] sm:$0xff]
        %v511 = vld [vmem:[%s321 + $0x300] sm:$0xff]
        %v512 = vld [vmem:[%s321 + $0x308] sm:$0xff]
        %v513 = vld [vmem:[%s321 + $0x310] sm:$0xff]
        %v514 = vld [vmem:[%s321 + $0x318] sm:$0xff]
        %v515 = vld [vmem:[%s321 + $0x320] sm:$0xff]
        %v516 = vld [vmem:[%s321 + $0x328] sm:$0xff]
        %v517 = vld [vmem:[%s321 + $0x330] sm:$0xff]
        %v518 = vld [vmem:[%s321 + $0x338] sm:$0xff]
        %v519 = vld [vmem:[%s321 + $0x340] sm:$0xff]
        %v520 = vld [vmem:[%s321 + $0x348] sm:$0xff]
        %v521 = vld [vmem:[%s321 + $0x350] sm:$0xff]
        %v522 = vld [vmem:[%s321 + $0x358] sm:$0xff]
        %v523 = vld [vmem:[%s321 + $0x360] sm:$0xff]
        %v524 = vld [vmem:[%s321 + $0x368] sm:$0xff]
        %v525 = vld [vmem:[%s321 + $0x370] sm:$0xff]
        %v526 = vld [vmem:[%s321 + $0x378] sm:$0xff]
        %v527 = vld [vmem:[%s321 + $0x380] sm:$0xff]
        %v528 = vld [vmem:[%s321 + $0x388] sm:$0xff]
        %v529 = vld [vmem:[%s321 + $0x390] sm:$0xff]
        %v530 = vld [vmem:[%s321 + $0x398] sm:$0xff]
        %v531 = vld [vmem:[%s321 + $0x3a0] sm:$0xff]
        %v532 = vld [vmem:[%s321 + $0x3a8] sm:$0xff]
        %v533 = vld [vmem:[%s321 + $0x3b0] sm:$0xff]
        %v534 = vld [vmem:[%s321 + $0x3b8] sm:$0xff]
        %v535 = vld [vmem:[%s321 + $0x3c0] sm:$0xff]
        %v536 = vld [vmem:[%s321 + $0x3c8] sm:$0xff]
        %v537 = vld [vmem:[%s321 + $0x3d0] sm:$0xff]
        %v538 = vld [vmem:[%s321 + $0x3d8] sm:$0xff]
        %v539 = vld [vmem:[%s321 + $0x3e0] sm:$0xff]
        %v540 = vld [vmem:[%s321 + $0x3e8] sm:$0xff]
        %v541 = vld [vmem:[%s321 + $0x3f0] sm:$0xff]
        %v542 = vld [vmem:[%s321 + $0x3f8] sm:$0xff]
        %v543 = vld [vmem:[%s321 + $0x400] sm:$0xff]
        %v544 = vld [vmem:[%s321 + $0x408] sm:$0xff]
        %v545 = vld [vmem:[%s321 + $0x410] sm:$0xff]
        %v546 = vld [vmem:[%s321 + $0x418] sm:$0xff]
        %v547 = vld [vmem:[%s321 + $0x420] sm:$0xff]
        %v548 = vld [vmem:[%s321 + $0x428] sm:$0xff]
        %v549 = vld [vmem:[%s321 + $0x430] sm:$0xff]
        %v550 = vld [vmem:[%s321 + $0x438] sm:$0xff]
        %v551 = vld [vmem:[%s321 + $0x440] sm:$0xff]
        %v552 = vld [vmem:[%s321 + $0x448] sm:$0xff]
        %v553 = vld [vmem:[%s321 + $0x450] sm:$0xff]
        %v554 = vld [vmem:[%s321 + $0x458] sm:$0xff]
        %v555 = vld [vmem:[%s321 + $0x460] sm:$0xff]
        %v556 = vld [vmem:[%s321 + $0x468] sm:$0xff]
        %v557 = vld [vmem:[%s321 + $0x470] sm:$0xff]
        %v558 = vld [vmem:[%s321 + $0x478] sm:$0xff]
        %v559 = vld [vmem:[%s321 + $0x480] sm:$0xff]
        %v560 = vld [vmem:[%s321 + $0x488] sm:$0xff]
        %v561 = vld [vmem:[%s321 + $0x490] sm:$0xff]
        %v562 = vld [vmem:[%s321 + $0x498] sm:$0xff]
        %v563 = vld [vmem:[%s321 + $0x4a0] sm:$0xff]
        %v564 = vld [vmem:[%s321 + $0x4a8] sm:$0xff]
        %v565 = vld [vmem:[%s321 + $0x4b0] sm:$0xff]
        %v566 = vld [vmem:[%s321 + $0x4b8] sm:$0xff]
        %v567 = vld [vmem:[%s321 + $0x4c0] sm:$0xff]
        %v568 = vld [vmem:[%s321 + $0x4c8] sm:$0xff]
        %v569 = vld [vmem:[%s321 + $0x4d0] sm:$0xff]
        %v570 = vld [vmem:[%s321 + $0x4d8] sm:$0xff]
        %v571 = vld [vmem:[%s321 + $0x4e0] sm:$0xff]
        %v572 = vld [vmem:[%s321 + $0x4e8] sm:$0xff]
        %v573 = vld [vmem:[%s321 + $0x4f0] sm:$0xff]
        %v574 = vld [vmem:[%s321 + $0x4f8] sm:$0xff]
        %v575 = vld [vmem:[%s321 + $0x500] sm:$0xff]
        %v576 = vld [vmem:[%s321 + $0x508] sm:$0xff]
        %v577 = vld [vmem:[%s321 + $0x510] sm:$0xff]
        %v578 = vld [vmem:[%s321 + $0x518] sm:$0xff]
        %v579 = vld [vmem:[%s321 + $0x520] sm:$0xff]
        %v580 = vld [vmem:[%s321 + $0x528] sm:$0xff]
        %v581 = vld [vmem:[%s321 + $0x530] sm:$0xff]
        %v582 = vld [vmem:[%s321 + $0x538] sm:$0xff]
        %v583 = vld [vmem:[%s321 + $0x540] sm:$0xff]
        %v584 = vld [vmem:[%s321 + $0x548] sm:$0xff]
        %v585 = vld [vmem:[%s321 + $0x550] sm:$0xff]
        %v586 = vld [vmem:[%s321 + $0x558] sm:$0xff]
        %v587 = vld [vmem:[%s321 + $0x560] sm:$0xff]
        %v588 = vld [vmem:[%s321 + $0x568] sm:$0xff]
        %v589 = vld [vmem:[%s321 + $0x570] sm:$0xff]
        %v590 = vld [vmem:[%s321 + $0x578] sm:$0xff]
        %v591 = vld [vmem:[%s321 + $0x580] sm:$0xff]
        %v592 = vld [vmem:[%s321 + $0x588] sm:$0xff]
        %v593 = vld [vmem:[%s321 + $0x590] sm:$0xff]
        %v594 = vld [vmem:[%s321 + $0x598] sm:$0xff]
        %v595 = vld [vmem:[%s321 + $0x5a0] sm:$0xff]
        %v596 = vld [vmem:[%s321 + $0x5a8] sm:$0xff]
        %v597 = vld [vmem:[%s321 + $0x5b0] sm:$0xff]
        %v598 = vld [vmem:[%s321 + $0x5b8] sm:$0xff]
        %v599 = vld [vmem:[%s321 + $0x5c0] sm:$0xff]
        %v600 = vld [vmem:[%s321 + $0x5c8] sm:$0xff]
        %v601 = vld [vmem:[%s321 + $0x5d0] sm:$0xff]
        %v602 = vld [vmem:[%s321 + $0x5d8] sm:$0xff]
        %v603 = vld [vmem:[%s321 + $0x5e0] sm:$0xff]
        %v604 = vld [vmem:[%s321 + $0x5e8] sm:$0xff]
        %v605 = vld [vmem:[%s321 + $0x5f0] sm:$0xff]
        %v606 = vld [vmem:[%s321 + $0x5f8] sm:$0xff]
        %v607 = vld [vmem:[%s321 + $0x600] sm:$0xff]
        %v608 = vld [vmem:[%s321 + $0x608] sm:$0xff]
        %v609 = vld [vmem:[%s321 + $0x610] sm:$0xff]
        %v610 = vld [vmem:[%s321 + $0x618] sm:$0xff]
        %v611 = vld [vmem:[%s321 + $0x620] sm:$0xff]
        %v612 = vld [vmem:[%s321 + $0x628] sm:$0xff]
        %v613 = vld [vmem:[%s321 + $0x630] sm:$0xff]
        %v614 = vld [vmem:[%s321 + $0x638] sm:$0xff]
        %v615 = vld [vmem:[%s321 + $0x640] sm:$0xff]
        %v616 = vld [vmem:[%s321 + $0x648] sm:$0xff]
        %v617 = vld [vmem:[%s321 + $0x650] sm:$0xff]
        %v618 = vld [vmem:[%s321 + $0x658] sm:$0xff]
        %v619 = vld [vmem:[%s321 + $0x660] sm:$0xff]
        %v620 = vld [vmem:[%s321 + $0x668] sm:$0xff]
        %v621 = vld [vmem:[%s321 + $0x670] sm:$0xff]
        %v622 = vld [vmem:[%s321 + $0x678] sm:$0xff]
        %v623 = vld [vmem:[%s321 + $0x680] sm:$0xff]
        %v624 = vld [vmem:[%s321 + $0x688] sm:$0xff]
        %v625 = vld [vmem:[%s321 + $0x690] sm:$0xff]
        %v626 = vld [vmem:[%s321 + $0x698] sm:$0xff]
        %v627 = vld [vmem:[%s321 + $0x6a0] sm:$0xff]
        %v628 = vld [vmem:[%s321 + $0x6a8] sm:$0xff]
        %v629 = vld [vmem:[%s321 + $0x6b0] sm:$0xff]
        %v630 = vld [vmem:[%s321 + $0x6b8] sm:$0xff]
        %v631 = vld [vmem:[%s321 + $0x6c0] sm:$0xff]
        %v632 = vld [vmem:[%s321 + $0x6c8] sm:$0xff]
        %v633 = vld [vmem:[%s321 + $0x6d0] sm:$0xff]
        %v634 = vld [vmem:[%s321 + $0x6d8] sm:$0xff]
        %v635 = vld [vmem:[%s321 + $0x6e0] sm:$0xff]
        %v636 = vld [vmem:[%s321 + $0x6e8] sm:$0xff]
        %v637 = vld [vmem:[%s321 + $0x6f0] sm:$0xff]
        %v638 = vld [vmem:[%s321 + $0x6f8] sm:$0xff]
        %v639 = vld [vmem:[%s321 + $0x700] sm:$0xff]
        %v640 = vld [vmem:[%s321 + $0x708] sm:$0xff]
        %v641 = vld [vmem:[%s321 + $0x710] sm:$0xff]
        %v642 = vld [vmem:[%s321 + $0x718] sm:$0xff]
        %v643 = vld [vmem:[%s321 + $0x720] sm:$0xff]
        %v644 = vld [vmem:[%s321 + $0x728] sm:$0xff]
        %v645 = vld [vmem:[%s321 + $0x730] sm:$0xff]
        %v646 = vld [vmem:[%s321 + $0x738] sm:$0xff]
        %v647 = vld [vmem:[%s321 + $0x740] sm:$0xff]
        %v648 = vld [vmem:[%s321 + $0x748] sm:$0xff]
        %v649 = vld [vmem:[%s321 + $0x750] sm:$0xff]
        %v650 = vld [vmem:[%s321 + $0x758] sm:$0xff]
        %v651 = vld [vmem:[%s321 + $0x760] sm:$0xff]
        %v652 = vld [vmem:[%s321 + $0x768] sm:$0xff]
        %v653 = vld [vmem:[%s321 + $0x770] sm:$0xff]
        %v654 = vld [vmem:[%s321 + $0x778] sm:$0xff]
        %v655 = vld [vmem:[%s321 + $0x780] sm:$0xff]
        %v656 = vld [vmem:[%s321 + $0x788] sm:$0xff]
        %v657 = vld [vmem:[%s321 + $0x790] sm:$0xff]
        %v658 = vld [vmem:[%s321 + $0x798] sm:$0xff]
        %v659 = vld [vmem:[%s321 + $0x7a0] sm:$0xff]
        %v660 = vld [vmem:[%s321 + $0x7a8] sm:$0xff]
        %v661 = vld [vmem:[%s321 + $0x7b0] sm:$0xff]
        %v662 = vld [vmem:[%s321 + $0x7b8] sm:$0xff]
        %v663 = vld [vmem:[%s321 + $0x7c0] sm:$0xff]
        %v664 = vld [vmem:[%s321 + $0x7c8] sm:$0xff]
        %v665 = vld [vmem:[%s321 + $0x7d0] sm:$0xff]
        %v666 = vld [vmem:[%s321 + $0x7d8] sm:$0xff]
        %v667 = vld [vmem:[%s321 + $0x7e0] sm:$0xff]
        %v668 = vld [vmem:[%s321 + $0x7e8] sm:$0xff]
        %v669 = vld [vmem:[%s321 + $0x7f0] sm:$0xff]
        %v670 = vld [vmem:[%s321 + $0x7f8] sm:$0xff]
        %v671 = vld [vmem:[%s321 + $0x800] sm:$0xff]
        %v672 = vld [vmem:[%s321 + $0x808] sm:$0xff]
        %v673 = vld [vmem:[%s321 + $0x810] sm:$0xff]
        %v674 = vld [vmem:[%s321 + $0x818] sm:$0xff]
        %v675 = vld [vmem:[%s321 + $0x820] sm:$0xff]
        %v676 = vld [vmem:[%s321 + $0x828] sm:$0xff]
        %v677 = vld [vmem:[%s321 + $0x830] sm:$0xff]
        %v678 = vld [vmem:[%s321 + $0x838] sm:$0xff]
        %v679 = vld [vmem:[%s321 + $0x840] sm:$0xff]
        %v680 = vld [vmem:[%s321 + $0x848] sm:$0xff]
        %v681 = vld [vmem:[%s321 + $0x850] sm:$0xff]
        %v682 = vld [vmem:[%s321 + $0x858] sm:$0xff]
        %v683 = vld [vmem:[%s321 + $0x860] sm:$0xff]
        %v684 = vld [vmem:[%s321 + $0x868] sm:$0xff]
        %v685 = vld [vmem:[%s321 + $0x870] sm:$0xff]
        %v686 = vld [vmem:[%s321 + $0x878] sm:$0xff]
        %v687 = vld [vmem:[%s321 + $0x880] sm:$0xff]
        %v688 = vld [vmem:[%s321 + $0x888] sm:$0xff]
        %v689 = vld [vmem:[%s321 + $0x890] sm:$0xff]
        %v690 = vld [vmem:[%s321 + $0x898] sm:$0xff]
        %v691 = vld [vmem:[%s321 + $0x8a0] sm:$0xff]
        %v692 = vld [vmem:[%s321 + $0x8a8] sm:$0xff]
        %v693 = vld [vmem:[%s321 + $0x8b0] sm:$0xff]
        %v694 = vld [vmem:[%s321 + $0x8b8] sm:$0xff]
        %v695 = vld [vmem:[%s321 + $0x8c0] sm:$0xff]
        %v696 = vld [vmem:[%s321 + $0x8c8] sm:$0xff]
        %v697 = vld [vmem:[%s321 + $0x8d0] sm:$0xff]
        %v698 = vld [vmem:[%s321 + $0x8d8] sm:$0xff]
        %v699 = vld [vmem:[%s321 + $0x8e0] sm:$0xff]
        %v700 = vld [vmem:[%s321 + $0x8e8] sm:$0xff]
        %v701 = vld [vmem:[%s321 + $0x8f0] sm:$0xff]
        %v702 = vld [vmem:[%s321 + $0x8f8] sm:$0xff]
        %v703 = vld [vmem:[%s321 + $0x900] sm:$0xff]
        %v704 = vld [vmem:[%s321 + $0x908] sm:$0xff]
        %v705 = vld [vmem:[%s321 + $0x910] sm:$0xff]
        %v706 = vld [vmem:[%s321 + $0x918] sm:$0xff]
        %v707 = vld [vmem:[%s321 + $0x920] sm:$0xff]
        %v708 = vld [vmem:[%s321 + $0x928] sm:$0xff]
        %v709 = vld [vmem:[%s321 + $0x930] sm:$0xff]
        %v710 = vld [vmem:[%s321 + $0x938] sm:$0xff]
        %v711 = vld [vmem:[%s321 + $0x940] sm:$0xff]
        %v712 = vld [vmem:[%s321 + $0x948] sm:$0xff]
        %v713 = vld [vmem:[%s321 + $0x950] sm:$0xff]
        %v714 = vld [vmem:[%s321 + $0x958] sm:$0xff]
        %v715 = vld [vmem:[%s321 + $0x960] sm:$0xff]
        %v716 = vld [vmem:[%s321 + $0x968] sm:$0xff]
        %v717 = vld [vmem:[%s321 + $0x970] sm:$0xff]
        %v718 = vld [vmem:[%s321 + $0x978] sm:$0xff]
        %v719 = vld [vmem:[%s321 + $0x980] sm:$0xff]
        %v720 = vld [vmem:[%s321 + $0x988] sm:$0xff]
        %v721 = vld [vmem:[%s321 + $0x990] sm:$0xff]
        %v722 = vld [vmem:[%s321 + $0x998] sm:$0xff]
        %v723 = vld [vmem:[%s321 + $0x9a0] sm:$0xff]
        %v724 = vld [vmem:[%s321 + $0x9a8] sm:$0xff]
        %v725 = vld [vmem:[%s321 + $0x9b0] sm:$0xff]
        %v726 = vld [vmem:[%s321 + $0x9b8] sm:$0xff]
        %v727 = vld [vmem:[%s321 + $0x9c0] sm:$0xff]
        %v728 = vld [vmem:[%s321 + $0x9c8] sm:$0xff]
        %v729 = vld [vmem:[%s321 + $0x9d0] sm:$0xff]
        %v730 = vld [vmem:[%s321 + $0x9d8] sm:$0xff]
        %v731 = vld [vmem:[%s321 + $0x9e0] sm:$0xff]
        %v732 = vld [vmem:[%s321 + $0x9e8] sm:$0xff]
        %v733 = vld [vmem:[%s321 + $0x9f0] sm:$0xff]
        %v734 = vld [vmem:[%s321 + $0x9f8] sm:$0xff]
        %v735 = vld [vmem:[%s321 + $0xa00] sm:$0xff]
        %v736 = vld [vmem:[%s321 + $0xa08] sm:$0xff]
        %v737 = vld [vmem:[%s321 + $0xa10] sm:$0xff]
        %v738 = vld [vmem:[%s321 + $0xa18] sm:$0xff]
        %v739 = vld [vmem:[%s321 + $0xa20] sm:$0xff]
        %v740 = vld [vmem:[%s321 + $0xa28] sm:$0xff]
        %v741 = vld [vmem:[%s321 + $0xa30] sm:$0xff]
        %v742 = vld [vmem:[%s321 + $0xa38] sm:$0xff]
        %v743 = vld [vmem:[%s321 + $0xa40] sm:$0xff]
        %v744 = vld [vmem:[%s321 + $0xa48] sm:$0xff]
        %v745 = vld [vmem:[%s321 + $0xa50] sm:$0xff]
        %v746 = vld [vmem:[%s321 + $0xa58] sm:$0xff]
        %v747 = vld [vmem:[%s321 + $0xa60] sm:$0xff]
        %v748 = vld [vmem:[%s321 + $0xa68] sm:$0xff]
        %v749 = vld [vmem:[%s321 + $0xa70] sm:$0xff]
        %v750 = vld [vmem:[%s321 + $0xa78] sm:$0xff]
        %v751 = vld [vmem:[%s321 + $0xa80] sm:$0xff]
        %v752 = vld [vmem:[%s321 + $0xa88] sm:$0xff]
        %v753 = vld [vmem:[%s321 + $0xa90] sm:$0xff]
        %v754 = vld [vmem:[%s321 + $0xa98] sm:$0xff]
        %v755 = vld [vmem:[%s321 + $0xaa0] sm:$0xff]
        %v756 = vld [vmem:[%s321 + $0xaa8] sm:$0xff]
        %v757 = vld [vmem:[%s321 + $0xab0] sm:$0xff]
        %v758 = vld [vmem:[%s321 + $0xab8] sm:$0xff]
        %v759 = vld [vmem:[%s321 + $0xac0] sm:$0xff]
        %v760 = vld [vmem:[%s321 + $0xac8] sm:$0xff]
        %v761 = vld [vmem:[%s321 + $0xad0] sm:$0xff]
        %v762 = vld [vmem:[%s321 + $0xad8] sm:$0xff]
        %v763 = vld [vmem:[%s321 + $0xae0] sm:$0xff]
        %v764 = vld [vmem:[%s321 + $0xae8] sm:$0xff]
        %v765 = vld [vmem:[%s321 + $0xaf0] sm:$0xff]
        %v766 = vld [vmem:[%s321 + $0xaf8] sm:$0xff]
        %v767 = vld [vmem:[%s321 + $0xb00] sm:$0xff]
        %v768 = vld [vmem:[%s321 + $0xb08] sm:$0xff]
        %v769 = vld [vmem:[%s321 + $0xb10] sm:$0xff]
        %v770 = vld [vmem:[%s321 + $0xb18] sm:$0xff]
        %v771 = vld [vmem:[%s321 + $0xb20] sm:$0xff]
        %v772 = vld [vmem:[%s321 + $0xb28] sm:$0xff]
        %v773 = vld [vmem:[%s321 + $0xb30] sm:$0xff]
        %v774 = vld [vmem:[%s321 + $0xb38] sm:$0xff]
        %v775 = vld [vmem:[%s321 + $0xb40] sm:$0xff]
        %v776 = vld [vmem:[%s321 + $0xb48] sm:$0xff]
        %v777 = vld [vmem:[%s321 + $0xb50] sm:$0xff]
        %v778 = vld [vmem:[%s321 + $0xb58] sm:$0xff]
        %v779 = vld [vmem:[%s321 + $0xb60] sm:$0xff]
        %v780 = vld [vmem:[%s321 + $0xb68] sm:$0xff]
        %v781 = vld [vmem:[%s321 + $0xb70] sm:$0xff]
        %v782 = vld [vmem:[%s321 + $0xb78] sm:$0xff]
        %v783 = vld [vmem:[%s321 + $0xb80] sm:$0xff]
        %v784 = vld [vmem:[%s321 + $0xb88] sm:$0xff]
        %v785 = vld [vmem:[%s321 + $0xb90] sm:$0xff]
        %v786 = vld [vmem:[%s321 + $0xb98] sm:$0xff]
        %v787 = vld [vmem:[%s321 + $0xba0] sm:$0xff]
        %v788 = vld [vmem:[%s321 + $0xba8] sm:$0xff]
        %v789 = vld [vmem:[%s321 + $0xbb0] sm:$0xff]
        %v790 = vld [vmem:[%s321 + $0xbb8] sm:$0xff]
        %v791 = vld [vmem:[%s321 + $0xbc0] sm:$0xff]
        %v792 = vld [vmem:[%s321 + $0xbc8] sm:$0xff]
        %v793 = vld [vmem:[%s321 + $0xbd0] sm:$0xff]
        %v794 = vld [vmem:[%s321 + $0xbd8] sm:$0xff]
        %v795 = vld [vmem:[%s321 + $0xbe0] sm:$0xff]
        %v796 = vld [vmem:[%s321 + $0xbe8] sm:$0xff]
        %v797 = vld [vmem:[%s321 + $0xbf0] sm:$0xff]
        %v798 = vld [vmem:[%s321 + $0xbf8] sm:$0xff]
        %v799 = vld [vmem:[%s321 + $0xc00] sm:$0xff]
        %v800 = vld [vmem:[%s321 + $0xc08] sm:$0xff]
        %v801 = vld [vmem:[%s321 + $0xc10] sm:$0xff]
        %v802 = vld [vmem:[%s321 + $0xc18] sm:$0xff]
        %v803 = vld [vmem:[%s321 + $0xc20] sm:$0xff]
        %v804 = vld [vmem:[%s321 + $0xc28] sm:$0xff]
        %v805 = vld [vmem:[%s321 + $0xc30] sm:$0xff]
        %v806 = vld [vmem:[%s321 + $0xc38] sm:$0xff]
        %v807 = vld [vmem:[%s321 + $0xc40] sm:$0xff]
        %v808 = vld [vmem:[%s321 + $0xc48] sm:$0xff]
        %v809 = vld [vmem:[%s321 + $0xc50] sm:$0xff]
        %v810 = vld [vmem:[%s321 + $0xc58] sm:$0xff]
        %v811 = vld [vmem:[%s321 + $0xc60] sm:$0xff]
        %v812 = vld [vmem:[%s321 + $0xc68] sm:$0xff]
        %v813 = vld [vmem:[%s321 + $0xc70] sm:$0xff]
        %v814 = vld [vmem:[%s321 + $0xc78] sm:$0xff]
        %v815 = vld [vmem:[%s321 + $0xc80] sm:$0xff]
        %v816 = vld [vmem:[%s321 + $0xc88] sm:$0xff]
        %v817 = vld [vmem:[%s321 + $0xc90] sm:$0xff]
        %v818 = vld [vmem:[%s321 + $0xc98] sm:$0xff]
        %v819 = vld [vmem:[%s321 + $0xca0] sm:$0xff]
        %v820 = vld [vmem:[%s321 + $0xca8] sm:$0xff]
        %v821 = vld [vmem:[%s321 + $0xcb0] sm:$0xff]
        %v822 = vld [vmem:[%s321 + $0xcb8] sm:$0xff]
        %v823 = vld [vmem:[%s321 + $0xcc0] sm:$0xff]
        %v824 = vld [vmem:[%s321 + $0xcc8] sm:$0xff]
        %v825 = vld [vmem:[%s321 + $0xcd0] sm:$0xff]
        %v826 = vld [vmem:[%s321 + $0xcd8] sm:$0xff]
        %v827 = vld [vmem:[%s321 + $0xce0] sm:$0xff]
        %v828 = vld [vmem:[%s321 + $0xce8] sm:$0xff]
        %v829 = vld [vmem:[%s321 + $0xcf0] sm:$0xff]
        %v830 = vld [vmem:[%s321 + $0xcf8] sm:$0xff]
        %v831 = vld [vmem:[%s321 + $0xd00] sm:$0xff]
        %v832 = vld [vmem:[%s321 + $0xd08] sm:$0xff]
        %v833 = vld [vmem:[%s321 + $0xd10] sm:$0xff]
        %v834 = vld [vmem:[%s321 + $0xd18] sm:$0xff]
        %v835 = vld [vmem:[%s321 + $0xd20] sm:$0xff]
        %v836 = vld [vmem:[%s321 + $0xd28] sm:$0xff]
        %v837 = vld [vmem:[%s321 + $0xd30] sm:$0xff]
        %v838 = vld [vmem:[%s321 + $0xd38] sm:$0xff]
        %v839 = vld [vmem:[%s321 + $0xd40] sm:$0xff]
        %v840 = vld [vmem:[%s321 + $0xd48] sm:$0xff]
        %v841 = vld [vmem:[%s321 + $0xd50] sm:$0xff]
        %v842 = vld [vmem:[%s321 + $0xd58] sm:$0xff]
        %v843 = vld [vmem:[%s321 + $0xd60] sm:$0xff]
        %v844 = vld [vmem:[%s321 + $0xd68] sm:$0xff]
        %v845 = vld [vmem:[%s321 + $0xd70] sm:$0xff]
        %v846 = vld [vmem:[%s321 + $0xd78] sm:$0xff]
        %v847 = vld [vmem:[%s321 + $0xd80] sm:$0xff]
        %v848 = vld [vmem:[%s321 + $0xd88] sm:$0xff]
        %v849 = vld [vmem:[%s321 + $0xd90] sm:$0xff]
        %v850 = vld [vmem:[%s321 + $0xd98] sm:$0xff]
        %v851 = vld [vmem:[%s321 + $0xda0] sm:$0xff]
        %v852 = vld [vmem:[%s321 + $0xda8] sm:$0xff]
        %v853 = vld [vmem:[%s321 + $0xdb0] sm:$0xff]
        %v854 = vld [vmem:[%s321 + $0xdb8] sm:$0xff]
        %v855 = vld [vmem:[%s321 + $0xdc0] sm:$0xff]
        %v856 = vld [vmem:[%s321 + $0xdc8] sm:$0xff]
        %v857 = vld [vmem:[%s321 + $0xdd0] sm:$0xff]
        %v858 = vld [vmem:[%s321 + $0xdd8] sm:$0xff]
        %v859 = vld [vmem:[%s321 + $0xde0] sm:$0xff]
        %v860 = vld [vmem:[%s321 + $0xde8] sm:$0xff]
        %v861 = vld [vmem:[%s321 + $0xdf0] sm:$0xff]
        %v862 = vld [vmem:[%s321 + $0xdf8] sm:$0xff]
        %v863 = vld [vmem:[%s321 + $0xe00] sm:$0xff]
        %v864 = vld [vmem:[%s321 + $0xe08] sm:$0xff]
        %v865 = vld [vmem:[%s321 + $0xe10] sm:$0xff]
        %v866 = vld [vmem:[%s321 + $0xe18] sm:$0xff]
        %v867 = vld [vmem:[%s321 + $0xe20] sm:$0xff]
        %v868 = vld [vmem:[%s321 + $0xe28] sm:$0xff]
        %v869 = vld [vmem:[%s321 + $0xe30] sm:$0xff]
        %v870 = vld [vmem:[%s321 + $0xe38] sm:$0xff]
        %v871 = vld [vmem:[%s321 + $0xe40] sm:$0xff]
        %v872 = vld [vmem:[%s321 + $0xe48] sm:$0xff]
        %v873 = vld [vmem:[%s321 + $0xe50] sm:$0xff]
        %v874 = vld [vmem:[%s321 + $0xe58] sm:$0xff]
        %v875 = vld [vmem:[%s321 + $0xe60] sm:$0xff]
        %v876 = vld [vmem:[%s321 + $0xe68] sm:$0xff]
        %v877 = vld [vmem:[%s321 + $0xe70] sm:$0xff]
        %v878 = vld [vmem:[%s321 + $0xe78] sm:$0xff]
        %v879 = vld [vmem:[%s321 + $0xe80] sm:$0xff]
        %v880 = vld [vmem:[%s321 + $0xe88] sm:$0xff]
        %v881 = vld [vmem:[%s321 + $0xe90] sm:$0xff]
        %v882 = vld [vmem:[%s321 + $0xe98] sm:$0xff]
        %v883 = vld [vmem:[%s321 + $0xea0] sm:$0xff]
        %v884 = vld [vmem:[%s321 + $0xea8] sm:$0xff]
        %v885 = vld [vmem:[%s321 + $0xeb0] sm:$0xff]
        %v886 = vld [vmem:[%s321 + $0xeb8] sm:$0xff]
        %v887 = vld [vmem:[%s321 + $0xec0] sm:$0xff]
        %v888 = vld [vmem:[%s321 + $0xec8] sm:$0xff]
        %v889 = vld [vmem:[%s321 + $0xed0] sm:$0xff]
        %v890 = vld [vmem:[%s321 + $0xed8] sm:$0xff]
        %v891 = vld [vmem:[%s321 + $0xee0] sm:$0xff]
        %v892 = vld [vmem:[%s321 + $0xee8] sm:$0xff]
        %v893 = vld [vmem:[%s321 + $0xef0] sm:$0xff]
        %v894 = vld [vmem:[%s321 + $0xef8] sm:$0xff]
        %v895 = vld [vmem:[%s321 + $0xf00] sm:$0xff]
        %v896 = vld [vmem:[%s321 + $0xf08] sm:$0xff]
        %v897 = vld [vmem:[%s321 + $0xf10] sm:$0xff]
        %v898 = vld [vmem:[%s321 + $0xf18] sm:$0xff]
        %v899 = vld [vmem:[%s321 + $0xf20] sm:$0xff]
        %v900 = vld [vmem:[%s321 + $0xf28] sm:$0xff]
        %v901 = vld [vmem:[%s321 + $0xf30] sm:$0xff]
        %v902 = vld [vmem:[%s321 + $0xf38] sm:$0xff]
        %v903 = vld [vmem:[%s321 + $0xf40] sm:$0xff]
        %v904 = vld [vmem:[%s321 + $0xf48] sm:$0xff]
        %v905 = vld [vmem:[%s321 + $0xf50] sm:$0xff]
        %v906 = vld [vmem:[%s321 + $0xf58] sm:$0xff]
        %v907 = vld [vmem:[%s321 + $0xf60] sm:$0xff]
        %v908 = vld [vmem:[%s321 + $0xf68] sm:$0xff]
        %v909 = vld [vmem:[%s321 + $0xf70] sm:$0xff]
        %v910 = vld [vmem:[%s321 + $0xf78] sm:$0xff]
        %v911 = vld [vmem:[%s321 + $0xf80] sm:$0xff]
        %v912 = vld [vmem:[%s321 + $0xf88] sm:$0xff]
        %v913 = vld [vmem:[%s321 + $0xf90] sm:$0xff]
        %v914 = vld [vmem:[%s321 + $0xf98] sm:$0xff]
        %v915 = vld [vmem:[%s321 + $0xfa0] sm:$0xff]
        %v916 = vld [vmem:[%s321 + $0xfa8] sm:$0xff]
        %v917 = vld [vmem:[%s321 + $0xfb0] sm:$0xff]
        %v918 = vld [vmem:[%s321 + $0xfb8] sm:$0xff]
        %v919 = vld [vmem:[%s321 + $0xfc0] sm:$0xff]
        %v920 = vld [vmem:[%s321 + $0xfc8] sm:$0xff]
        %v921 = vld [vmem:[%s321 + $0xfd0] sm:$0xff]
        %v922 = vld [vmem:[%s321 + $0xfd8] sm:$0xff]
        %v923 = vld [vmem:[%s321 + $0xfe0] sm:$0xff]
        %v924 = vld [vmem:[%s321 + $0xfe8] sm:$0xff]
        %v925 = vld [vmem:[%s321 + $0xff0] sm:$0xff]
        %v926 = vld [vmem:[%s321 + $0xff8] sm:$0xff]
        %v927 = vld [vmem:[%s321 + $0x1000] sm:$0xff]
        %v928 = vld [vmem:[%s321 + $0x1008] sm:$0xff]
        %v929 = vld [vmem:[%s321 + $0x1010] sm:$0xff]
        %v930 = vld [vmem:[%s321 + $0x1018] sm:$0xff]
        %v931 = vld [vmem:[%s321 + $0x1020] sm:$0xff]
        %v932 = vld [vmem:[%s321 + $0x1028] sm:$0xff]
        %v933 = vld [vmem:[%s321 + $0x1030] sm:$0xff]
        %v934 = vld [vmem:[%s321 + $0x1038] sm:$0xff]
        %v935 = vld [vmem:[%s321 + $0x1040] sm:$0xff]
        %v936 = vld [vmem:[%s321 + $0x1048] sm:$0xff]
        %v937 = vld [vmem:[%s321 + $0x1050] sm:$0xff]
        %v938 = vld [vmem:[%s321 + $0x1058] sm:$0xff]
        %v939 = vld [vmem:[%s321 + $0x1060] sm:$0xff]
        %v940 = vld [vmem:[%s321 + $0x1068] sm:$0xff]
        %v941 = vld [vmem:[%s321 + $0x1070] sm:$0xff]
        %v942 = vld [vmem:[%s321 + $0x1078] sm:$0xff]
        %v943 = vld [vmem:[%s321 + $0x1080] sm:$0xff]
        %v944 = vld [vmem:[%s321 + $0x1088] sm:$0xff]
        %v945 = vld [vmem:[%s321 + $0x1090] sm:$0xff]
        %v946 = vld [vmem:[%s321 + $0x1098] sm:$0xff]
        %v947 = vld [vmem:[%s321 + $0x10a0] sm:$0xff]
        %v948 = vld [vmem:[%s321 + $0x10a8] sm:$0xff]
        %v949 = vld [vmem:[%s321 + $0x10b0] sm:$0xff]
        %v950 = vld [vmem:[%s321 + $0x10b8] sm:$0xff]
        %v951 = vld [vmem:[%s321 + $0x10c0] sm:$0xff]
        %v952 = vld [vmem:[%s321 + $0x10c8] sm:$0xff]
        %v953 = vld [vmem:[%s321 + $0x10d0] sm:$0xff]
        %v954 = vld [vmem:[%s321 + $0x10d8] sm:$0xff]
        %v955 = vld [vmem:[%s321 + $0x10e0] sm:$0xff]
        %v956 = vld [vmem:[%s321 + $0x10e8] sm:$0xff]
        %v957 = vld [vmem:[%s321 + $0x10f0] sm:$0xff]
        %v958 = vld [vmem:[%s321 + $0x10f8] sm:$0xff]
        %v959 = vld [vmem:[%s321 + $0x1100] sm:$0xff]
        %v960 = vld [vmem:[%s321 + $0x1108] sm:$0xff]
        %v961 = vld [vmem:[%s321 + $0x1110] sm:$0xff]
        %v962 = vld [vmem:[%s321 + $0x1118] sm:$0xff]
        %v963 = vld [vmem:[%s321 + $0x1120] sm:$0xff]
        %v964 = vld [vmem:[%s321 + $0x1128] sm:$0xff]
        %v965 = vld [vmem:[%s321 + $0x1130] sm:$0xff]
        %v966 = vld [vmem:[%s321 + $0x1138] sm:$0xff]
        %v967 = vld [vmem:[%s321 + $0x1140] sm:$0xff]
        %v968 = vld [vmem:[%s321 + $0x1148] sm:$0xff]
        %v969 = vld [vmem:[%s321 + $0x1150] sm:$0xff]
        %v970 = vld [vmem:[%s321 + $0x1158] sm:$0xff]
        %v971 = vld [vmem:[%s321 + $0x1160] sm:$0xff]
        %v972 = vld [vmem:[%s321 + $0x1168] sm:$0xff]
        %v973 = vld [vmem:[%s321 + $0x1170] sm:$0xff]
        %v974 = vld [vmem:[%s321 + $0x1178] sm:$0xff]
        %v975 = vld [vmem:[%s321 + $0x1180] sm:$0xff]
        %v976 = vld [vmem:[%s321 + $0x1188] sm:$0xff]
        %v977 = vld [vmem:[%s321 + $0x1190] sm:$0xff]
        %v978 = vld [vmem:[%s321 + $0x1198] sm:$0xff]
        %v979 = vld [vmem:[%s321 + $0x11a0] sm:$0xff]
        %v980 = vld [vmem:[%s321 + $0x11a8] sm:$0xff]
        %v981 = vld [vmem:[%s321 + $0x11b0] sm:$0xff]
        %v982 = vld [vmem:[%s321 + $0x11b8] sm:$0xff]
        %v983 = vld [vmem:[%s321 + $0x11c0] sm:$0xff]
        %v984 = vld [vmem:[%s321 + $0x11c8] sm:$0xff]
        %v985 = vld [vmem:[%s321 + $0x11d0] sm:$0xff]
        %v986 = vld [vmem:[%s321 + $0x11d8] sm:$0xff]
        %v987 = vld [vmem:[%s321 + $0x11e0] sm:$0xff]
        %v988 = vld [vmem:[%s321 + $0x11e8] sm:$0xff]
        %v989 = vld [vmem:[%s321 + $0x11f0] sm:$0xff]
        %v990 = vld [vmem:[%s321 + $0x11f8] sm:$0xff]
        %v991 = vld [vmem:[%s321 + $0x1200] sm:$0xff]
        %v992 = vld [vmem:[%s321 + $0x1208] sm:$0xff]
        %v993 = vld [vmem:[%s321 + $0x1210] sm:$0xff]
        %v994 = vld [vmem:[%s321 + $0x1218] sm:$0xff]
        %v995 = vld [vmem:[%s321 + $0x1220] sm:$0xff]
        %v996 = vld [vmem:[%s321 + $0x1228] sm:$0xff]
        %v997 = vld [vmem:[%s321 + $0x1230] sm:$0xff]
        %v998 = vld [vmem:[%s321 + $0x1238] sm:$0xff]
        %v999 = vld [vmem:[%s321 + $0x1240] sm:$0xff]
        %v1000 = vld [vmem:[%s321 + $0x1248] sm:$0xff]
        %v1001 = vld [vmem:[%s321 + $0x1250] sm:$0xff]
        %v1002 = vld [vmem:[%s321 + $0x1258] sm:$0xff]
        %v1003 = vld [vmem:[%s321 + $0x1260] sm:$0xff]
        %v1004 = vld [vmem:[%s321 + $0x1268] sm:$0xff]
        %v1005 = vld [vmem:[%s321 + $0x1270] sm:$0xff]
        %v1006 = vld [vmem:[%s321 + $0x1278] sm:$0xff]
        %v1007 = vld [vmem:[%s321 + $0x1280] sm:$0xff]
        %v1008 = vld [vmem:[%s321 + $0x1288] sm:$0xff]
        %v1009 = vld [vmem:[%s321 + $0x1290] sm:$0xff]
        %v1010 = vld [vmem:[%s321 + $0x1298] sm:$0xff]
        %v1011 = vld [vmem:[%s321 + $0x12a0] sm:$0xff]
        %v1012 = vld [vmem:[%s321 + $0x12a8] sm:$0xff]
        %v1013 = vld [vmem:[%s321 + $0x12b0] sm:$0xff]
        %v1014 = vld [vmem:[%s321 + $0x12b8] sm:$0xff]
        %v1015 = vld [vmem:[%s321 + $0x12c0] sm:$0xff]
        %v1016 = vld [vmem:[%s321 + $0x12c8] sm:$0xff]
        %v1017 = vld [vmem:[%s321 + $0x12d0] sm:$0xff]
        %v1018 = vld [vmem:[%s321 + $0x12d8] sm:$0xff]
        %v1019 = vld [vmem:[%s321 + $0x12e0] sm:$0xff]
        %v1020 = vld [vmem:[%s321 + $0x12e8] sm:$0xff]
        %v1021 = vld [vmem:[%s321 + $0x12f0] sm:$0xff]
        %v1022 = vld [vmem:[%s321 + $0x12f8] sm:$0xff]
        %v1023 = vld [vmem:[%s321 + $0x1300] sm:$0xff]
        %v1024 = vld [vmem:[%s321 + $0x1308] sm:$0xff]
        %v1025 = vld [vmem:[%s321 + $0x1310] sm:$0xff]
        %v1026 = vld [vmem:[%s321 + $0x1318] sm:$0xff]
        %v1027 = vld [vmem:[%s321 + $0x1320] sm:$0xff]
        %v1028 = vld [vmem:[%s321 + $0x1328] sm:$0xff]
        %v1029 = vld [vmem:[%s321 + $0x1330] sm:$0xff]
        %v1030 = vld [vmem:[%s321 + $0x1338] sm:$0xff]
        %v1031 = vld [vmem:[%s321 + $0x1340] sm:$0xff]
        %v1032 = vld [vmem:[%s321 + $0x1348] sm:$0xff]
        %v1033 = vld [vmem:[%s321 + $0x1350] sm:$0xff]
        %v1034 = vld [vmem:[%s321 + $0x1358] sm:$0xff]
        %v1035 = vld [vmem:[%s321 + $0x1360] sm:$0xff]
        %v1036 = vld [vmem:[%s321 + $0x1368] sm:$0xff]
        %v1037 = vld [vmem:[%s321 + $0x1370] sm:$0xff]
        %v1038 = vld [vmem:[%s321 + $0x1378] sm:$0xff]
        %v1039 = vld [vmem:[%s321 + $0x1380] sm:$0xff]
        %v1040 = vld [vmem:[%s321 + $0x1388] sm:$0xff]
        %v1041 = vld [vmem:[%s321 + $0x1390] sm:$0xff]
        %v1042 = vld [vmem:[%s321 + $0x1398] sm:$0xff]
        %v1043 = vld [vmem:[%s321 + $0x13a0] sm:$0xff]
        %v1044 = vld [vmem:[%s321 + $0x13a8] sm:$0xff]
        %v1045 = vld [vmem:[%s321 + $0x13b0] sm:$0xff]
        %v1046 = vld [vmem:[%s321 + $0x13b8] sm:$0xff]
        %v1047 = vld [vmem:[%s321 + $0x13c0] sm:$0xff]
        %v1048 = vld [vmem:[%s321 + $0x13c8] sm:$0xff]
        %v1049 = vld [vmem:[%s321 + $0x13d0] sm:$0xff]
        %v1050 = vld [vmem:[%s321 + $0x13d8] sm:$0xff]
        %v1051 = vld [vmem:[%s321 + $0x13e0] sm:$0xff]
        %v1052 = vld [vmem:[%s321 + $0x13e8] sm:$0xff]
        %v1053 = vld [vmem:[%s321 + $0x13f0] sm:$0xff]
        %v1054 = vld [vmem:[%s321 + $0x13f8] sm:$0xff]
        %v1055 = vld [vmem:[%s321 + $0x1400] sm:$0xff]
        %v1056 = vld [vmem:[%s321 + $0x1408] sm:$0xff]
        %v1057 = vld [vmem:[%s321 + $0x1410] sm:$0xff]
        %v1058 = vld [vmem:[%s321 + $0x1418] sm:$0xff]
        %v1059 = vld [vmem:[%s321 + $0x1420] sm:$0xff]
        %v1060 = vld [vmem:[%s321 + $0x1428] sm:$0xff]
        %v1061 = vld [vmem:[%s321 + $0x1430] sm:$0xff]
        %v1062 = vld [vmem:[%s321 + $0x1438] sm:$0xff]
        %v1063 = vld [vmem:[%s321 + $0x1440] sm:$0xff]
        %v1064 = vld [vmem:[%s321 + $0x1448] sm:$0xff]
        %v1065 = vld [vmem:[%s321 + $0x1450] sm:$0xff]
        %v1066 = vld [vmem:[%s321 + $0x1458] sm:$0xff]
        %v1067 = vld [vmem:[%s321 + $0x1460] sm:$0xff]
        %v1068 = vld [vmem:[%s321 + $0x1468] sm:$0xff]
        %v1069 = vld [vmem:[%s321 + $0x1470] sm:$0xff]
        %v1070 = vld [vmem:[%s321 + $0x1478] sm:$0xff]
        %v1071 = vld [vmem:[%s321 + $0x1480] sm:$0xff]
        %v1072 = vld [vmem:[%s321 + $0x1488] sm:$0xff]
        %v1073 = vld [vmem:[%s321 + $0x1490] sm:$0xff]
        %v1074 = vld [vmem:[%s321 + $0x1498] sm:$0xff]
        %v1075 = vld [vmem:[%s321 + $0x14a0] sm:$0xff]
        %v1076 = vld [vmem:[%s321 + $0x14a8] sm:$0xff]
        %v1077 = vld [vmem:[%s321 + $0x14b0] sm:$0xff]
        %v1078 = vld [vmem:[%s321 + $0x14b8] sm:$0xff]
        %v1079 = vld [vmem:[%s321 + $0x14c0] sm:$0xff]
        %v1080 = vld [vmem:[%s321 + $0x14c8] sm:$0xff]
        %v1081 = vld [vmem:[%s321 + $0x14d0] sm:$0xff]
        %v1082 = vld [vmem:[%s321 + $0x14d8] sm:$0xff]
        %v1083 = vld [vmem:[%s321 + $0x14e0] sm:$0xff]
        %v1084 = vld [vmem:[%s321 + $0x14e8] sm:$0xff]
        %v1085 = vld [vmem:[%s321 + $0x14f0] sm:$0xff]
        %v1086 = vld [vmem:[%s321 + $0x14f8] sm:$0xff]
        %v1087 = vld [vmem:[%s321 + $0x1500] sm:$0xff]
        %v1088 = vld [vmem:[%s321 + $0x1508] sm:$0xff]
        %v1089 = vld [vmem:[%s321 + $0x1510] sm:$0xff]
        %v1090 = vld [vmem:[%s321 + $0x1518] sm:$0xff]
        %v1091 = vld [vmem:[%s321 + $0x1520] sm:$0xff]
        %v1092 = vld [vmem:[%s321 + $0x1528] sm:$0xff]
        %v1093 = vld [vmem:[%s321 + $0x1530] sm:$0xff]
        %v1094 = vld [vmem:[%s321 + $0x1538] sm:$0xff]
        %v1095 = vld [vmem:[%s321 + $0x1540] sm:$0xff]
        %v1096 = vld [vmem:[%s321 + $0x1548] sm:$0xff]
        %v1097 = vld [vmem:[%s321 + $0x1550] sm:$0xff]
        %v1098 = vld [vmem:[%s321 + $0x1558] sm:$0xff]
        %v1099 = vld [vmem:[%s321 + $0x1560] sm:$0xff]
        %v1100 = vld [vmem:[%s321 + $0x1568] sm:$0xff]
        %v1101 = vld [vmem:[%s321 + $0x1570] sm:$0xff]
        %v1102 = vld [vmem:[%s321 + $0x1578] sm:$0xff]
        %v1103 = vld [vmem:[%s321 + $0x1580] sm:$0xff]
        %v1104 = vld [vmem:[%s321 + $0x1588] sm:$0xff]
        %v1105 = vld [vmem:[%s321 + $0x1590] sm:$0xff]
        %v1106 = vld [vmem:[%s321 + $0x1598] sm:$0xff]
        %v1107 = vld [vmem:[%s321 + $0x15a0] sm:$0xff]
        %v1108 = vld [vmem:[%s321 + $0x15a8] sm:$0xff]
        %v1109 = vld [vmem:[%s321 + $0x15b0] sm:$0xff]
        %v1110 = vld [vmem:[%s321 + $0x15b8] sm:$0xff]
        %v1111 = vld [vmem:[%s321 + $0x15c0] sm:$0xff]
        %v1112 = vld [vmem:[%s321 + $0x15c8] sm:$0xff]
        %v1113 = vld [vmem:[%s321 + $0x15d0] sm:$0xff]
        %v1114 = vld [vmem:[%s321 + $0x15d8] sm:$0xff]
        %v1115 = vld [vmem:[%s321 + $0x15e0] sm:$0xff]
        %v1116 = vld [vmem:[%s321 + $0x15e8] sm:$0xff]
        %v1117 = vld [vmem:[%s321 + $0x15f0] sm:$0xff]
        %v1118 = vld [vmem:[%s321 + $0x15f8] sm:$0xff]
        %v1119 = vld [vmem:[%s321 + $0x1600] sm:$0xff]
        %v1120 = vld [vmem:[%s321 + $0x1608] sm:$0xff]
        %v1121 = vld [vmem:[%s321 + $0x1610] sm:$0xff]
        %v1122 = vld [vmem:[%s321 + $0x1618] sm:$0xff]
        %v1123 = vld [vmem:[%s321 + $0x1620] sm:$0xff]
        %v1124 = vld [vmem:[%s321 + $0x1628] sm:$0xff]
        %v1125 = vld [vmem:[%s321 + $0x1630] sm:$0xff]
        %v1126 = vld [vmem:[%s321 + $0x1638] sm:$0xff]
        %v1127 = vld [vmem:[%s321 + $0x1640] sm:$0xff]
        %v1128 = vld [vmem:[%s321 + $0x1648] sm:$0xff]
        %v1129 = vld [vmem:[%s321 + $0x1650] sm:$0xff]
        %v1130 = vld [vmem:[%s321 + $0x1658] sm:$0xff]
        %v1131 = vld [vmem:[%s321 + $0x1660] sm:$0xff]
        %v1132 = vld [vmem:[%s321 + $0x1668] sm:$0xff]
        %v1133 = vld [vmem:[%s321 + $0x1670] sm:$0xff]
        %v1134 = vld [vmem:[%s321 + $0x1678] sm:$0xff]
        %v1135 = vld [vmem:[%s321 + $0x1680] sm:$0xff]
        %v1136 = vld [vmem:[%s321 + $0x1688] sm:$0xff]
        %v1137 = vld [vmem:[%s321 + $0x1690] sm:$0xff]
        %v1138 = vld [vmem:[%s321 + $0x1698] sm:$0xff]
        %v1139 = vld [vmem:[%s321 + $0x16a0] sm:$0xff]
        %v1140 = vld [vmem:[%s321 + $0x16a8] sm:$0xff]
        %v1141 = vld [vmem:[%s321 + $0x16b0] sm:$0xff]
        %v1142 = vld [vmem:[%s321 + $0x16b8] sm:$0xff]
        %v1143 = vld [vmem:[%s321 + $0x16c0] sm:$0xff]
        %v1144 = vld [vmem:[%s321 + $0x16c8] sm:$0xff]
        %v1145 = vld [vmem:[%s321 + $0x16d0] sm:$0xff]
        %v1146 = vld [vmem:[%s321 + $0x16d8] sm:$0xff]
        %v1147 = vld [vmem:[%s321 + $0x16e0] sm:$0xff]
        %v1148 = vld [vmem:[%s321 + $0x16e8] sm:$0xff]
        %v1149 = vld [vmem:[%s321 + $0x16f0] sm:$0xff]
        %v1150 = vld [vmem:[%s321 + $0x16f8] sm:$0xff]
        %v1151 = vld [vmem:[%s321 + $0x1700] sm:$0xff]
        %v1152 = vld [vmem:[%s321 + $0x1708] sm:$0xff]
        %v1153 = vld [vmem:[%s321 + $0x1710] sm:$0xff]
        %v1154 = vld [vmem:[%s321 + $0x1718] sm:$0xff]
        %v1155 = vld [vmem:[%s321 + $0x1720] sm:$0xff]
        %v1156 = vld [vmem:[%s321 + $0x1728] sm:$0xff]
        %v1157 = vld [vmem:[%s321 + $0x1730] sm:$0xff]
        %v1158 = vld [vmem:[%s321 + $0x1738] sm:$0xff]
        %v1159 = vld [vmem:[%s321 + $0x1740] sm:$0xff]
        %v1160 = vld [vmem:[%s321 + $0x1748] sm:$0xff]
        %v1161 = vld [vmem:[%s321 + $0x1750] sm:$0xff]
        %v1162 = vld [vmem:[%s321 + $0x1758] sm:$0xff]
        %v1163 = vld [vmem:[%s321 + $0x1760] sm:$0xff]
        %v1164 = vld [vmem:[%s321 + $0x1768] sm:$0xff]
        %v1165 = vld [vmem:[%s321 + $0x1770] sm:$0xff]
        %v1166 = vld [vmem:[%s321 + $0x1778] sm:$0xff]
        %v1167 = vunpack.c.l.s8.bf16 %v415
        %v1168 = vunpack.c.l.s8.bf16 %v416
        %v1169 = vunpack.c.l.s8.bf16 %v417
        %v1170 = vunpack.c.l.s8.bf16 %v418
        %v1171 = vunpack.c.h.s8.bf16 %v415
        %v1172 = vunpack.c.h.s8.bf16 %v416
        %v1173 = vunpack.c.h.s8.bf16 %v417
        %v1174 = vunpack.c.h.s8.bf16 %v418
        %v1175 = vunpack.c.l.s8.bf16 %v419
        %v1176 = vunpack.c.l.s8.bf16 %v420
        %v1177 = vunpack.c.l.s8.bf16 %v421
        %v1178 = vunpack.c.l.s8.bf16 %v422
        %v1179 = vunpack.c.h.s8.bf16 %v419
        %v1180 = vunpack.c.h.s8.bf16 %v420
        %v1181 = vunpack.c.h.s8.bf16 %v421
        %v1182 = vunpack.c.h.s8.bf16 %v422
        %v1183 = vunpack.c.l.s8.bf16 %v423
        %v1184 = vunpack.c.l.s8.bf16 %v424
        %v1185 = vunpack.c.l.s8.bf16 %v425
        %v1186 = vunpack.c.l.s8.bf16 %v426
        %v1187 = vunpack.c.h.s8.bf16 %v423
        %v1188 = vunpack.c.h.s8.bf16 %v424
        %v1189 = vunpack.c.h.s8.bf16 %v425
        %v1190 = vunpack.c.h.s8.bf16 %v426
        %v1191 = vunpack.c.l.s8.bf16 %v427
        %v1192 = vunpack.c.l.s8.bf16 %v428
        %v1193 = vunpack.c.l.s8.bf16 %v429
        %v1194 = vunpack.c.l.s8.bf16 %v430
        %v1195 = vunpack.c.h.s8.bf16 %v427
        %v1196 = vunpack.c.h.s8.bf16 %v428
        %v1197 = vunpack.c.h.s8.bf16 %v429
        %v1198 = vunpack.c.h.s8.bf16 %v430
        %v1199 = vunpack.c.l.s8.bf16 %v431
        %v1200 = vunpack.c.l.s8.bf16 %v432
        %v1201 = vunpack.c.l.s8.bf16 %v433
        %v1202 = vunpack.c.l.s8.bf16 %v434
        %v1203 = vunpack.c.h.s8.bf16 %v431
        %v1204 = vunpack.c.h.s8.bf16 %v432
        %v1205 = vunpack.c.h.s8.bf16 %v433
        %v1206 = vunpack.c.h.s8.bf16 %v434
        %v1207 = vunpack.c.l.s8.bf16 %v435
        %v1208 = vunpack.c.l.s8.bf16 %v436
        %v1209 = vunpack.c.l.s8.bf16 %v437
        %v1210 = vunpack.c.l.s8.bf16 %v438
        %v1211 = vunpack.c.h.s8.bf16 %v435
        %v1212 = vunpack.c.h.s8.bf16 %v436
        %v1213 = vunpack.c.h.s8.bf16 %v437
        %v1214 = vunpack.c.h.s8.bf16 %v438
        %v1215 = vunpack.c.l.s8.bf16 %v439
        %v1216 = vunpack.c.l.s8.bf16 %v440
        %v1217 = vunpack.c.l.s8.bf16 %v441
        %v1218 = vunpack.c.l.s8.bf16 %v442
        %v1219 = vunpack.c.h.s8.bf16 %v439
        %v1220 = vunpack.c.h.s8.bf16 %v440
        %v1221 = vunpack.c.h.s8.bf16 %v441
        %v1222 = vunpack.c.h.s8.bf16 %v442
        %v1223 = vunpack.c.l.s8.bf16 %v443
        %v1224 = vunpack.c.l.s8.bf16 %v444
        %v1225 = vunpack.c.l.s8.bf16 %v445
        %v1226 = vunpack.c.l.s8.bf16 %v446
        %v1227 = vunpack.c.h.s8.bf16 %v443
        %v1228 = vunpack.c.h.s8.bf16 %v444
        %v1229 = vunpack.c.h.s8.bf16 %v445
        %v1230 = vunpack.c.h.s8.bf16 %v446
        %v1231 = vunpack.c.l.s8.bf16 %v447
        %v1232 = vunpack.c.l.s8.bf16 %v448
        %v1233 = vunpack.c.l.s8.bf16 %v449
        %v1234 = vunpack.c.l.s8.bf16 %v450
        %v1235 = vunpack.c.h.s8.bf16 %v447
        %v1236 = vunpack.c.h.s8.bf16 %v448
        %v1237 = vunpack.c.h.s8.bf16 %v449
        %v1238 = vunpack.c.h.s8.bf16 %v450
        %v1239 = vunpack.c.l.s8.bf16 %v451
        %v1240 = vunpack.c.l.s8.bf16 %v452
        %v1241 = vunpack.c.l.s8.bf16 %v453
        %v1242 = vunpack.c.l.s8.bf16 %v454
        %v1243 = vunpack.c.h.s8.bf16 %v451
        %v1244 = vunpack.c.h.s8.bf16 %v452
        %v1245 = vunpack.c.h.s8.bf16 %v453
        %v1246 = vunpack.c.h.s8.bf16 %v454
        %v1247 = vunpack.c.l.s8.bf16 %v455
        %v1248 = vunpack.c.l.s8.bf16 %v456
        %v1249 = vunpack.c.l.s8.bf16 %v457
        %v1250 = vunpack.c.l.s8.bf16 %v458
        %v1251 = vunpack.c.h.s8.bf16 %v455
        %v1252 = vunpack.c.h.s8.bf16 %v456
        %v1253 = vunpack.c.h.s8.bf16 %v457
        %v1254 = vunpack.c.h.s8.bf16 %v458
        %v1255 = vunpack.c.l.s8.bf16 %v459
        %v1256 = vunpack.c.l.s8.bf16 %v460
        %v1257 = vunpack.c.l.s8.bf16 %v461
        %v1258 = vunpack.c.l.s8.bf16 %v462
        %v1259 = vunpack.c.h.s8.bf16 %v459
        %v1260 = vunpack.c.h.s8.bf16 %v460
        %v1261 = vunpack.c.h.s8.bf16 %v461
        %v1262 = vunpack.c.h.s8.bf16 %v462
        %v1263 = vunpack.c.l.s8.bf16 %v463
        %v1264 = vunpack.c.l.s8.bf16 %v464
        %v1265 = vunpack.c.l.s8.bf16 %v465
        %v1266 = vunpack.c.l.s8.bf16 %v466
        %v1267 = vunpack.c.h.s8.bf16 %v463
        %v1268 = vunpack.c.h.s8.bf16 %v464
        %v1269 = vunpack.c.h.s8.bf16 %v465
        %v1270 = vunpack.c.h.s8.bf16 %v466
        %v1271 = vunpack.c.l.s8.bf16 %v467
        %v1272 = vunpack.c.l.s8.bf16 %v468
        %v1273 = vunpack.c.l.s8.bf16 %v469
        %v1274 = vunpack.c.l.s8.bf16 %v470
        %v1275 = vunpack.c.h.s8.bf16 %v467
        %v1276 = vunpack.c.h.s8.bf16 %v468
        %v1277 = vunpack.c.h.s8.bf16 %v469
        %v1278 = vunpack.c.h.s8.bf16 %v470
        %v1279 = vunpack.c.l.s8.bf16 %v471
        %v1280 = vunpack.c.l.s8.bf16 %v472
        %v1281 = vunpack.c.l.s8.bf16 %v473
        %v1282 = vunpack.c.l.s8.bf16 %v474
        %v1283 = vunpack.c.h.s8.bf16 %v471
        %v1284 = vunpack.c.h.s8.bf16 %v472
        %v1285 = vunpack.c.h.s8.bf16 %v473
        %v1286 = vunpack.c.h.s8.bf16 %v474
        %v1287 = vunpack.c.l.s8.bf16 %v475
        %v1288 = vunpack.c.l.s8.bf16 %v476
        %v1289 = vunpack.c.l.s8.bf16 %v477
        %v1290 = vunpack.c.l.s8.bf16 %v478
        %v1291 = vunpack.c.h.s8.bf16 %v475
        %v1292 = vunpack.c.h.s8.bf16 %v476
        %v1293 = vunpack.c.h.s8.bf16 %v477
        %v1294 = vunpack.c.h.s8.bf16 %v478
        %v1295 = vunpack.c.l.s8.bf16 %v479
        %v1296 = vunpack.c.l.s8.bf16 %v480
        %v1297 = vunpack.c.l.s8.bf16 %v481
        %v1298 = vunpack.c.l.s8.bf16 %v482
        %v1299 = vunpack.c.h.s8.bf16 %v479
        %v1300 = vunpack.c.h.s8.bf16 %v480
        %v1301 = vunpack.c.h.s8.bf16 %v481
        %v1302 = vunpack.c.h.s8.bf16 %v482
        %v1303 = vunpack.c.l.s8.bf16 %v483
        %v1304 = vunpack.c.l.s8.bf16 %v484
        %v1305 = vunpack.c.l.s8.bf16 %v485
        %v1306 = vunpack.c.l.s8.bf16 %v486
        %v1307 = vunpack.c.h.s8.bf16 %v483
        %v1308 = vunpack.c.h.s8.bf16 %v484
        %v1309 = vunpack.c.h.s8.bf16 %v485
        %v1310 = vunpack.c.h.s8.bf16 %v486
        %v1311 = vunpack.c.l.s8.bf16 %v487
        %v1312 = vunpack.c.l.s8.bf16 %v488
        %v1313 = vunpack.c.l.s8.bf16 %v489
        %v1314 = vunpack.c.l.s8.bf16 %v490
        %v1315 = vunpack.c.h.s8.bf16 %v487
        %v1316 = vunpack.c.h.s8.bf16 %v488
        %v1317 = vunpack.c.h.s8.bf16 %v489
        %v1318 = vunpack.c.h.s8.bf16 %v490
        %v1319 = vunpack.c.l.s8.bf16 %v491
        %v1320 = vunpack.c.l.s8.bf16 %v492
        %v1321 = vunpack.c.l.s8.bf16 %v493
        %v1322 = vunpack.c.l.s8.bf16 %v494
        %v1323 = vunpack.c.h.s8.bf16 %v491
        %v1324 = vunpack.c.h.s8.bf16 %v492
        %v1325 = vunpack.c.h.s8.bf16 %v493
        %v1326 = vunpack.c.h.s8.bf16 %v494
        %v1327 = vunpack.c.l.s8.bf16 %v495
        %v1328 = vunpack.c.l.s8.bf16 %v496
        %v1329 = vunpack.c.l.s8.bf16 %v497
        %v1330 = vunpack.c.l.s8.bf16 %v498
        %v1331 = vunpack.c.h.s8.bf16 %v495
        %v1332 = vunpack.c.h.s8.bf16 %v496
        %v1333 = vunpack.c.h.s8.bf16 %v497
        %v1334 = vunpack.c.h.s8.bf16 %v498
        %v1335 = vunpack.c.l.s8.bf16 %v499
        %v1336 = vunpack.c.l.s8.bf16 %v500
        %v1337 = vunpack.c.l.s8.bf16 %v501
        %v1338 = vunpack.c.l.s8.bf16 %v502
        %v1339 = vunpack.c.h.s8.bf16 %v499
        %v1340 = vunpack.c.h.s8.bf16 %v500
        %v1341 = vunpack.c.h.s8.bf16 %v501
        %v1342 = vunpack.c.h.s8.bf16 %v502
        %v1343 = vunpack.c.l.s8.bf16 %v503
        %v1344 = vunpack.c.l.s8.bf16 %v504
        %v1345 = vunpack.c.l.s8.bf16 %v505
        %v1346 = vunpack.c.l.s8.bf16 %v506
        %v1347 = vunpack.c.h.s8.bf16 %v503
        %v1348 = vunpack.c.h.s8.bf16 %v504
        %v1349 = vunpack.c.h.s8.bf16 %v505
        %v1350 = vunpack.c.h.s8.bf16 %v506
        %v1351 = vunpack.c.l.s8.bf16 %v507
        %v1352 = vunpack.c.l.s8.bf16 %v508
        %v1353 = vunpack.c.l.s8.bf16 %v509
        %v1354 = vunpack.c.l.s8.bf16 %v510
        %v1355 = vunpack.c.h.s8.bf16 %v507
        %v1356 = vunpack.c.h.s8.bf16 %v508
        %v1357 = vunpack.c.h.s8.bf16 %v509
        %v1358 = vunpack.c.h.s8.bf16 %v510
        %v1359 = vunpack.c.l.s8.bf16 %v511
        %v1360 = vunpack.c.l.s8.bf16 %v512
        %v1361 = vunpack.c.l.s8.bf16 %v513
        %v1362 = vunpack.c.l.s8.bf16 %v514
        %v1363 = vunpack.c.h.s8.bf16 %v511
        %v1364 = vunpack.c.h.s8.bf16 %v512
        %v1365 = vunpack.c.h.s8.bf16 %v513
        %v1366 = vunpack.c.h.s8.bf16 %v514
        %v1367 = vunpack.c.l.s8.bf16 %v515
        %v1368 = vunpack.c.l.s8.bf16 %v516
        %v1369 = vunpack.c.l.s8.bf16 %v517
        %v1370 = vunpack.c.l.s8.bf16 %v518
        %v1371 = vunpack.c.h.s8.bf16 %v515
        %v1372 = vunpack.c.h.s8.bf16 %v516
        %v1373 = vunpack.c.h.s8.bf16 %v517
        %v1374 = vunpack.c.h.s8.bf16 %v518
        %v1375 = vunpack.c.l.s8.bf16 %v519
        %v1376 = vunpack.c.l.s8.bf16 %v520
        %v1377 = vunpack.c.l.s8.bf16 %v521
        %v1378 = vunpack.c.l.s8.bf16 %v522
        %v1379 = vunpack.c.h.s8.bf16 %v519
        %v1380 = vunpack.c.h.s8.bf16 %v520
        %v1381 = vunpack.c.h.s8.bf16 %v521
        %v1382 = vunpack.c.h.s8.bf16 %v522
        %v1383 = vunpack.c.l.s8.bf16 %v523
        %v1384 = vunpack.c.l.s8.bf16 %v524
        %v1385 = vunpack.c.l.s8.bf16 %v525
        %v1386 = vunpack.c.l.s8.bf16 %v526
        %v1387 = vunpack.c.h.s8.bf16 %v523
        %v1388 = vunpack.c.h.s8.bf16 %v524
        %v1389 = vunpack.c.h.s8.bf16 %v525
        %v1390 = vunpack.c.h.s8.bf16 %v526
        %v1391 = vunpack.c.l.s8.bf16 %v527
        %v1392 = vunpack.c.l.s8.bf16 %v528
        %v1393 = vunpack.c.l.s8.bf16 %v529
        %v1394 = vunpack.c.l.s8.bf16 %v530
        %v1395 = vunpack.c.h.s8.bf16 %v527
        %v1396 = vunpack.c.h.s8.bf16 %v528
        %v1397 = vunpack.c.h.s8.bf16 %v529
        %v1398 = vunpack.c.h.s8.bf16 %v530
        %v1399 = vunpack.c.l.s8.bf16 %v531
        %v1400 = vunpack.c.l.s8.bf16 %v532
        %v1401 = vunpack.c.l.s8.bf16 %v533
        %v1402 = vunpack.c.l.s8.bf16 %v534
        %v1403 = vunpack.c.h.s8.bf16 %v531
        %v1404 = vunpack.c.h.s8.bf16 %v532
        %v1405 = vunpack.c.h.s8.bf16 %v533
        %v1406 = vunpack.c.h.s8.bf16 %v534
        %v1407 = vunpack.c.l.s8.bf16 %v535
        %v1408 = vunpack.c.l.s8.bf16 %v536
        %v1409 = vunpack.c.l.s8.bf16 %v537
        %v1410 = vunpack.c.l.s8.bf16 %v538
        %v1411 = vunpack.c.h.s8.bf16 %v535
        %v1412 = vunpack.c.h.s8.bf16 %v536
        %v1413 = vunpack.c.h.s8.bf16 %v537
        %v1414 = vunpack.c.h.s8.bf16 %v538
        %v1415 = vunpack.c.l.s8.bf16 %v539
        %v1416 = vunpack.c.l.s8.bf16 %v540
        %v1417 = vunpack.c.l.s8.bf16 %v541
        %v1418 = vunpack.c.l.s8.bf16 %v542
        %v1419 = vunpack.c.h.s8.bf16 %v539
        %v1420 = vunpack.c.h.s8.bf16 %v540
        %v1421 = vunpack.c.h.s8.bf16 %v541
        %v1422 = vunpack.c.h.s8.bf16 %v542
        %v1423 = vunpack.c.l.s8.bf16 %v543
        %v1424 = vunpack.c.l.s8.bf16 %v544
        %v1425 = vunpack.c.l.s8.bf16 %v545
        %v1426 = vunpack.c.l.s8.bf16 %v546
        %v1427 = vunpack.c.h.s8.bf16 %v543
        %v1428 = vunpack.c.h.s8.bf16 %v544
        %v1429 = vunpack.c.h.s8.bf16 %v545
        %v1430 = vunpack.c.h.s8.bf16 %v546
        %v1431 = vunpack.c.l.s8.bf16 %v547
        %v1432 = vunpack.c.l.s8.bf16 %v548
        %v1433 = vunpack.c.l.s8.bf16 %v549
        %v1434 = vunpack.c.l.s8.bf16 %v550
        %v1435 = vunpack.c.h.s8.bf16 %v547
        %v1436 = vunpack.c.h.s8.bf16 %v548
        %v1437 = vunpack.c.h.s8.bf16 %v549
        %v1438 = vunpack.c.h.s8.bf16 %v550
        %v1439 = vunpack.c.l.s8.bf16 %v551
        %v1440 = vunpack.c.l.s8.bf16 %v552
        %v1441 = vunpack.c.l.s8.bf16 %v553
        %v1442 = vunpack.c.l.s8.bf16 %v554
        %v1443 = vunpack.c.h.s8.bf16 %v551
        %v1444 = vunpack.c.h.s8.bf16 %v552
        %v1445 = vunpack.c.h.s8.bf16 %v553
        %v1446 = vunpack.c.h.s8.bf16 %v554
        %v1447 = vunpack.c.l.s8.bf16 %v555
        %v1448 = vunpack.c.l.s8.bf16 %v556
        %v1449 = vunpack.c.l.s8.bf16 %v557
        %v1450 = vunpack.c.l.s8.bf16 %v558
        %v1451 = vunpack.c.h.s8.bf16 %v555
        %v1452 = vunpack.c.h.s8.bf16 %v556
        %v1453 = vunpack.c.h.s8.bf16 %v557
        %v1454 = vunpack.c.h.s8.bf16 %v558
        %v1455 = vunpack.c.l.s8.bf16 %v559
        %v1456 = vunpack.c.l.s8.bf16 %v560
        %v1457 = vunpack.c.l.s8.bf16 %v561
        %v1458 = vunpack.c.l.s8.bf16 %v562
        %v1459 = vunpack.c.h.s8.bf16 %v559
        %v1460 = vunpack.c.h.s8.bf16 %v560
        %v1461 = vunpack.c.h.s8.bf16 %v561
        %v1462 = vunpack.c.h.s8.bf16 %v562
        %v1463 = vunpack.c.l.s8.bf16 %v563
        %v1464 = vunpack.c.l.s8.bf16 %v564
        %v1465 = vunpack.c.l.s8.bf16 %v565
        %v1466 = vunpack.c.l.s8.bf16 %v566
        %v1467 = vunpack.c.h.s8.bf16 %v563
        %v1468 = vunpack.c.h.s8.bf16 %v564
        %v1469 = vunpack.c.h.s8.bf16 %v565
        %v1470 = vunpack.c.h.s8.bf16 %v566
        %v1471 = vunpack.c.l.s8.bf16 %v567
        %v1472 = vunpack.c.l.s8.bf16 %v568
        %v1473 = vunpack.c.l.s8.bf16 %v569
        %v1474 = vunpack.c.l.s8.bf16 %v570
        %v1475 = vunpack.c.h.s8.bf16 %v567
        %v1476 = vunpack.c.h.s8.bf16 %v568
        %v1477 = vunpack.c.h.s8.bf16 %v569
        %v1478 = vunpack.c.h.s8.bf16 %v570
        %v1479 = vunpack.c.l.s8.bf16 %v571
        %v1480 = vunpack.c.l.s8.bf16 %v572
        %v1481 = vunpack.c.l.s8.bf16 %v573
        %v1482 = vunpack.c.l.s8.bf16 %v574
        %v1483 = vunpack.c.h.s8.bf16 %v571
        %v1484 = vunpack.c.h.s8.bf16 %v572
        %v1485 = vunpack.c.h.s8.bf16 %v573
        %v1486 = vunpack.c.h.s8.bf16 %v574
        %v1487 = vunpack.c.l.s8.bf16 %v575
        %v1488 = vunpack.c.l.s8.bf16 %v576
        %v1489 = vunpack.c.l.s8.bf16 %v577
        %v1490 = vunpack.c.l.s8.bf16 %v578
        %v1491 = vunpack.c.h.s8.bf16 %v575
        %v1492 = vunpack.c.h.s8.bf16 %v576
        %v1493 = vunpack.c.h.s8.bf16 %v577
        %v1494 = vunpack.c.h.s8.bf16 %v578
        %v1495 = vunpack.c.l.s8.bf16 %v579
        %v1496 = vunpack.c.l.s8.bf16 %v580
        %v1497 = vunpack.c.l.s8.bf16 %v581
        %v1498 = vunpack.c.l.s8.bf16 %v582
        %v1499 = vunpack.c.h.s8.bf16 %v579
        %v1500 = vunpack.c.h.s8.bf16 %v580
        %v1501 = vunpack.c.h.s8.bf16 %v581
        %v1502 = vunpack.c.h.s8.bf16 %v582
        %v1503 = vunpack.c.l.s8.bf16 %v583
        %v1504 = vunpack.c.l.s8.bf16 %v584
        %v1505 = vunpack.c.l.s8.bf16 %v585
        %v1506 = vunpack.c.l.s8.bf16 %v586
        %v1507 = vunpack.c.h.s8.bf16 %v583
        %v1508 = vunpack.c.h.s8.bf16 %v584
        %v1509 = vunpack.c.h.s8.bf16 %v585
        %v1510 = vunpack.c.h.s8.bf16 %v586
        %v1511 = vunpack.c.l.s8.bf16 %v587
        %v1512 = vunpack.c.l.s8.bf16 %v588
        %v1513 = vunpack.c.l.s8.bf16 %v589
        %v1514 = vunpack.c.l.s8.bf16 %v590
        %v1515 = vunpack.c.h.s8.bf16 %v587
        %v1516 = vunpack.c.h.s8.bf16 %v588
        %v1517 = vunpack.c.h.s8.bf16 %v589
        %v1518 = vunpack.c.h.s8.bf16 %v590
        %v1519 = vunpack.c.l.s8.bf16 %v591
        %v1520 = vunpack.c.l.s8.bf16 %v592
        %v1521 = vunpack.c.l.s8.bf16 %v593
        %v1522 = vunpack.c.l.s8.bf16 %v594
        %v1523 = vunpack.c.h.s8.bf16 %v591
        %v1524 = vunpack.c.h.s8.bf16 %v592
        %v1525 = vunpack.c.h.s8.bf16 %v593
        %v1526 = vunpack.c.h.s8.bf16 %v594
        %v1527 = vunpack.c.l.s8.bf16 %v595
        %v1528 = vunpack.c.l.s8.bf16 %v596
        %v1529 = vunpack.c.l.s8.bf16 %v597
        %v1530 = vunpack.c.l.s8.bf16 %v598
        %v1531 = vunpack.c.h.s8.bf16 %v595
        %v1532 = vunpack.c.h.s8.bf16 %v596
        %v1533 = vunpack.c.h.s8.bf16 %v597
        %v1534 = vunpack.c.h.s8.bf16 %v598
        %v1535 = vunpack.c.l.s8.bf16 %v599
        %v1536 = vunpack.c.l.s8.bf16 %v600
        %v1537 = vunpack.c.l.s8.bf16 %v601
        %v1538 = vunpack.c.l.s8.bf16 %v602
        %v1539 = vunpack.c.h.s8.bf16 %v599
        %v1540 = vunpack.c.h.s8.bf16 %v600
        %v1541 = vunpack.c.h.s8.bf16 %v601
        %v1542 = vunpack.c.h.s8.bf16 %v602
        %v1543 = vunpack.c.l.s8.bf16 %v603
        %v1544 = vunpack.c.l.s8.bf16 %v604
        %v1545 = vunpack.c.l.s8.bf16 %v605
        %v1546 = vunpack.c.l.s8.bf16 %v606
        %v1547 = vunpack.c.h.s8.bf16 %v603
        %v1548 = vunpack.c.h.s8.bf16 %v604
        %v1549 = vunpack.c.h.s8.bf16 %v605
        %v1550 = vunpack.c.h.s8.bf16 %v606
        %v1551 = vunpack.c.l.s8.bf16 %v607
        %v1552 = vunpack.c.l.s8.bf16 %v608
        %v1553 = vunpack.c.l.s8.bf16 %v609
        %v1554 = vunpack.c.l.s8.bf16 %v610
        %v1555 = vunpack.c.h.s8.bf16 %v607
        %v1556 = vunpack.c.h.s8.bf16 %v608
        %v1557 = vunpack.c.h.s8.bf16 %v609
        %v1558 = vunpack.c.h.s8.bf16 %v610
        %v1559 = vunpack.c.l.s8.bf16 %v611
        %v1560 = vunpack.c.l.s8.bf16 %v612
        %v1561 = vunpack.c.l.s8.bf16 %v613
        %v1562 = vunpack.c.l.s8.bf16 %v614
        %v1563 = vunpack.c.h.s8.bf16 %v611
        %v1564 = vunpack.c.h.s8.bf16 %v612
        %v1565 = vunpack.c.h.s8.bf16 %v613
        %v1566 = vunpack.c.h.s8.bf16 %v614
        %v1567 = vunpack.c.l.s8.bf16 %v615
        %v1568 = vunpack.c.l.s8.bf16 %v616
        %v1569 = vunpack.c.l.s8.bf16 %v617
        %v1570 = vunpack.c.l.s8.bf16 %v618
        %v1571 = vunpack.c.h.s8.bf16 %v615
        %v1572 = vunpack.c.h.s8.bf16 %v616
        %v1573 = vunpack.c.h.s8.bf16 %v617
        %v1574 = vunpack.c.h.s8.bf16 %v618
        %v1575 = vunpack.c.l.s8.bf16 %v619
        %v1576 = vunpack.c.l.s8.bf16 %v620
        %v1577 = vunpack.c.l.s8.bf16 %v621
        %v1578 = vunpack.c.l.s8.bf16 %v622
        %v1579 = vunpack.c.h.s8.bf16 %v619
        %v1580 = vunpack.c.h.s8.bf16 %v620
        %v1581 = vunpack.c.h.s8.bf16 %v621
        %v1582 = vunpack.c.h.s8.bf16 %v622
        %v1583 = vunpack.c.l.s8.bf16 %v623
        %v1584 = vunpack.c.l.s8.bf16 %v624
        %v1585 = vunpack.c.l.s8.bf16 %v625
        %v1586 = vunpack.c.l.s8.bf16 %v626
        %v1587 = vunpack.c.h.s8.bf16 %v623
        %v1588 = vunpack.c.h.s8.bf16 %v624
        %v1589 = vunpack.c.h.s8.bf16 %v625
        %v1590 = vunpack.c.h.s8.bf16 %v626
        %v1591 = vunpack.c.l.s8.bf16 %v627
        %v1592 = vunpack.c.l.s8.bf16 %v628
        %v1593 = vunpack.c.l.s8.bf16 %v629
        %v1594 = vunpack.c.l.s8.bf16 %v630
        %v1595 = vunpack.c.h.s8.bf16 %v627
        %v1596 = vunpack.c.h.s8.bf16 %v628
        %v1597 = vunpack.c.h.s8.bf16 %v629
        %v1598 = vunpack.c.h.s8.bf16 %v630
        %v1599 = vunpack.c.l.s8.bf16 %v631
        %v1600 = vunpack.c.l.s8.bf16 %v632
        %v1601 = vunpack.c.l.s8.bf16 %v633
        %v1602 = vunpack.c.l.s8.bf16 %v634
        %v1603 = vunpack.c.h.s8.bf16 %v631
        %v1604 = vunpack.c.h.s8.bf16 %v632
        %v1605 = vunpack.c.h.s8.bf16 %v633
        %v1606 = vunpack.c.h.s8.bf16 %v634
        %v1607 = vunpack.c.l.s8.bf16 %v635
        %v1608 = vunpack.c.l.s8.bf16 %v636
        %v1609 = vunpack.c.l.s8.bf16 %v637
        %v1610 = vunpack.c.l.s8.bf16 %v638
        %v1611 = vunpack.c.h.s8.bf16 %v635
        %v1612 = vunpack.c.h.s8.bf16 %v636
        %v1613 = vunpack.c.h.s8.bf16 %v637
        %v1614 = vunpack.c.h.s8.bf16 %v638
        %v1615 = vunpack.c.l.s8.bf16 %v639
        %v1616 = vunpack.c.l.s8.bf16 %v640
        %v1617 = vunpack.c.l.s8.bf16 %v641
        %v1618 = vunpack.c.l.s8.bf16 %v642
        %v1619 = vunpack.c.h.s8.bf16 %v639
        %v1620 = vunpack.c.h.s8.bf16 %v640
        %v1621 = vunpack.c.h.s8.bf16 %v641
        %v1622 = vunpack.c.h.s8.bf16 %v642
        %v1623 = vunpack.c.l.s8.bf16 %v643
        %v1624 = vunpack.c.l.s8.bf16 %v644
        %v1625 = vunpack.c.l.s8.bf16 %v645
        %v1626 = vunpack.c.l.s8.bf16 %v646
        %v1627 = vunpack.c.h.s8.bf16 %v643
        %v1628 = vunpack.c.h.s8.bf16 %v644
        %v1629 = vunpack.c.h.s8.bf16 %v645
        %v1630 = vunpack.c.h.s8.bf16 %v646
        %v1631 = vunpack.c.l.s8.bf16 %v647
        %v1632 = vunpack.c.l.s8.bf16 %v648
        %v1633 = vunpack.c.l.s8.bf16 %v649
        %v1634 = vunpack.c.l.s8.bf16 %v650
        %v1635 = vunpack.c.h.s8.bf16 %v647
        %v1636 = vunpack.c.h.s8.bf16 %v648
        %v1637 = vunpack.c.h.s8.bf16 %v649
        %v1638 = vunpack.c.h.s8.bf16 %v650
        %v1639 = vunpack.c.l.s8.bf16 %v651
        %v1640 = vunpack.c.l.s8.bf16 %v652
        %v1641 = vunpack.c.l.s8.bf16 %v653
        %v1642 = vunpack.c.l.s8.bf16 %v654
        %v1643 = vunpack.c.h.s8.bf16 %v651
        %v1644 = vunpack.c.h.s8.bf16 %v652
        %v1645 = vunpack.c.h.s8.bf16 %v653
        %v1646 = vunpack.c.h.s8.bf16 %v654
        %v1647 = vunpack.c.l.s8.bf16 %v655
        %v1648 = vunpack.c.l.s8.bf16 %v656
        %v1649 = vunpack.c.l.s8.bf16 %v657
        %v1650 = vunpack.c.l.s8.bf16 %v658
        %v1651 = vunpack.c.h.s8.bf16 %v655
        %v1652 = vunpack.c.h.s8.bf16 %v656
        %v1653 = vunpack.c.h.s8.bf16 %v657
        %v1654 = vunpack.c.h.s8.bf16 %v658
        %v1655 = vunpack.c.l.s8.bf16 %v659
        %v1656 = vunpack.c.l.s8.bf16 %v660
        %v1657 = vunpack.c.l.s8.bf16 %v661
        %v1658 = vunpack.c.l.s8.bf16 %v662
        %v1659 = vunpack.c.h.s8.bf16 %v659
        %v1660 = vunpack.c.h.s8.bf16 %v660
        %v1661 = vunpack.c.h.s8.bf16 %v661
        %v1662 = vunpack.c.h.s8.bf16 %v662
        %v1663 = vunpack.c.l.s8.bf16 %v663
        %v1664 = vunpack.c.l.s8.bf16 %v664
        %v1665 = vunpack.c.l.s8.bf16 %v665
        %v1666 = vunpack.c.l.s8.bf16 %v666
        %v1667 = vunpack.c.h.s8.bf16 %v663
        %v1668 = vunpack.c.h.s8.bf16 %v664
        %v1669 = vunpack.c.h.s8.bf16 %v665
        %v1670 = vunpack.c.h.s8.bf16 %v666
        %v1671 = vunpack.c.l.s8.bf16 %v667
        %v1672 = vunpack.c.l.s8.bf16 %v668
        %v1673 = vunpack.c.l.s8.bf16 %v669
        %v1674 = vunpack.c.l.s8.bf16 %v670
        %v1675 = vunpack.c.h.s8.bf16 %v667
        %v1676 = vunpack.c.h.s8.bf16 %v668
        %v1677 = vunpack.c.h.s8.bf16 %v669
        %v1678 = vunpack.c.h.s8.bf16 %v670
        %v1679 = vunpack.c.l.s8.bf16 %v671
        %v1680 = vunpack.c.l.s8.bf16 %v672
        %v1681 = vunpack.c.l.s8.bf16 %v673
        %v1682 = vunpack.c.l.s8.bf16 %v674
        %v1683 = vunpack.c.h.s8.bf16 %v671
        %v1684 = vunpack.c.h.s8.bf16 %v672
        %v1685 = vunpack.c.h.s8.bf16 %v673
        %v1686 = vunpack.c.h.s8.bf16 %v674
        %v1687 = vunpack.c.l.s8.bf16 %v675
        %v1688 = vunpack.c.l.s8.bf16 %v676
        %v1689 = vunpack.c.l.s8.bf16 %v677
        %v1690 = vunpack.c.l.s8.bf16 %v678
        %v1691 = vunpack.c.h.s8.bf16 %v675
        %v1692 = vunpack.c.h.s8.bf16 %v676
        %v1693 = vunpack.c.h.s8.bf16 %v677
        %v1694 = vunpack.c.h.s8.bf16 %v678
        %v1695 = vunpack.c.l.s8.bf16 %v679
        %v1696 = vunpack.c.l.s8.bf16 %v680
        %v1697 = vunpack.c.l.s8.bf16 %v681
        %v1698 = vunpack.c.l.s8.bf16 %v682
        %v1699 = vunpack.c.h.s8.bf16 %v679
        %v1700 = vunpack.c.h.s8.bf16 %v680
        %v1701 = vunpack.c.h.s8.bf16 %v681
        %v1702 = vunpack.c.h.s8.bf16 %v682
        %v1703 = vunpack.c.l.s8.bf16 %v683
        %v1704 = vunpack.c.l.s8.bf16 %v684
        %v1705 = vunpack.c.l.s8.bf16 %v685
        %v1706 = vunpack.c.l.s8.bf16 %v686
        %v1707 = vunpack.c.h.s8.bf16 %v683
        %v1708 = vunpack.c.h.s8.bf16 %v684
        %v1709 = vunpack.c.h.s8.bf16 %v685
        %v1710 = vunpack.c.h.s8.bf16 %v686
        %v1711 = vunpack.c.l.s8.bf16 %v687
        %v1712 = vunpack.c.l.s8.bf16 %v688
        %v1713 = vunpack.c.l.s8.bf16 %v689
        %v1714 = vunpack.c.l.s8.bf16 %v690
        %v1715 = vunpack.c.h.s8.bf16 %v687
        %v1716 = vunpack.c.h.s8.bf16 %v688
        %v1717 = vunpack.c.h.s8.bf16 %v689
        %v1718 = vunpack.c.h.s8.bf16 %v690
        %v1719 = vunpack.c.l.s8.bf16 %v691
        %v1720 = vunpack.c.l.s8.bf16 %v692
        %v1721 = vunpack.c.l.s8.bf16 %v693
        %v1722 = vunpack.c.l.s8.bf16 %v694
        %v1723 = vunpack.c.h.s8.bf16 %v691
        %v1724 = vunpack.c.h.s8.bf16 %v692
        %v1725 = vunpack.c.h.s8.bf16 %v693
        %v1726 = vunpack.c.h.s8.bf16 %v694
        %v1727 = vunpack.c.l.s8.bf16 %v695
        %v1728 = vunpack.c.l.s8.bf16 %v696
        %v1729 = vunpack.c.l.s8.bf16 %v697
        %v1730 = vunpack.c.l.s8.bf16 %v698
        %v1731 = vunpack.c.h.s8.bf16 %v695
        %v1732 = vunpack.c.h.s8.bf16 %v696
        %v1733 = vunpack.c.h.s8.bf16 %v697
        %v1734 = vunpack.c.h.s8.bf16 %v698
        %v1735 = vunpack.c.l.s8.bf16 %v699
        %v1736 = vunpack.c.l.s8.bf16 %v700
        %v1737 = vunpack.c.l.s8.bf16 %v701
        %v1738 = vunpack.c.l.s8.bf16 %v702
        %v1739 = vunpack.c.h.s8.bf16 %v699
        %v1740 = vunpack.c.h.s8.bf16 %v700
        %v1741 = vunpack.c.h.s8.bf16 %v701
        %v1742 = vunpack.c.h.s8.bf16 %v702
        %v1743 = vunpack.c.l.s8.bf16 %v703
        %v1744 = vunpack.c.l.s8.bf16 %v704
        %v1745 = vunpack.c.l.s8.bf16 %v705
        %v1746 = vunpack.c.l.s8.bf16 %v706
        %v1747 = vunpack.c.h.s8.bf16 %v703
        %v1748 = vunpack.c.h.s8.bf16 %v704
        %v1749 = vunpack.c.h.s8.bf16 %v705
        %v1750 = vunpack.c.h.s8.bf16 %v706
        %v1751 = vunpack.c.l.s8.bf16 %v707
        %v1752 = vunpack.c.l.s8.bf16 %v708
        %v1753 = vunpack.c.l.s8.bf16 %v709
        %v1754 = vunpack.c.l.s8.bf16 %v710
        %v1755 = vunpack.c.h.s8.bf16 %v707
        %v1756 = vunpack.c.h.s8.bf16 %v708
        %v1757 = vunpack.c.h.s8.bf16 %v709
        %v1758 = vunpack.c.h.s8.bf16 %v710
        %v1759 = vunpack.c.l.s8.bf16 %v711
        %v1760 = vunpack.c.l.s8.bf16 %v712
        %v1761 = vunpack.c.l.s8.bf16 %v713
        %v1762 = vunpack.c.l.s8.bf16 %v714
        %v1763 = vunpack.c.h.s8.bf16 %v711
        %v1764 = vunpack.c.h.s8.bf16 %v712
        %v1765 = vunpack.c.h.s8.bf16 %v713
        %v1766 = vunpack.c.h.s8.bf16 %v714
        %v1767 = vunpack.c.l.s8.bf16 %v715
        %v1768 = vunpack.c.l.s8.bf16 %v716
        %v1769 = vunpack.c.l.s8.bf16 %v717
        %v1770 = vunpack.c.l.s8.bf16 %v718
        %v1771 = vunpack.c.h.s8.bf16 %v715
        %v1772 = vunpack.c.h.s8.bf16 %v716
        %v1773 = vunpack.c.h.s8.bf16 %v717
        %v1774 = vunpack.c.h.s8.bf16 %v718
        %v1775 = vunpack.c.l.s8.bf16 %v719
        %v1776 = vunpack.c.l.s8.bf16 %v720
        %v1777 = vunpack.c.l.s8.bf16 %v721
        %v1778 = vunpack.c.l.s8.bf16 %v722
        %v1779 = vunpack.c.h.s8.bf16 %v719
        %v1780 = vunpack.c.h.s8.bf16 %v720
        %v1781 = vunpack.c.h.s8.bf16 %v721
        %v1782 = vunpack.c.h.s8.bf16 %v722
        %v1783 = vunpack.c.l.s8.bf16 %v723
        %v1784 = vunpack.c.l.s8.bf16 %v724
        %v1785 = vunpack.c.l.s8.bf16 %v725
        %v1786 = vunpack.c.l.s8.bf16 %v726
        %v1787 = vunpack.c.h.s8.bf16 %v723
        %v1788 = vunpack.c.h.s8.bf16 %v724
        %v1789 = vunpack.c.h.s8.bf16 %v725
        %v1790 = vunpack.c.h.s8.bf16 %v726
        %v1791 = vunpack.c.l.s8.bf16 %v727
        %v1792 = vunpack.c.l.s8.bf16 %v728
        %v1793 = vunpack.c.l.s8.bf16 %v729
        %v1794 = vunpack.c.l.s8.bf16 %v730
        %v1795 = vunpack.c.h.s8.bf16 %v727
        %v1796 = vunpack.c.h.s8.bf16 %v728
        %v1797 = vunpack.c.h.s8.bf16 %v729
        %v1798 = vunpack.c.h.s8.bf16 %v730
        %v1799 = vunpack.c.l.s8.bf16 %v731
        %v1800 = vunpack.c.l.s8.bf16 %v732
        %v1801 = vunpack.c.l.s8.bf16 %v733
        %v1802 = vunpack.c.l.s8.bf16 %v734
        %v1803 = vunpack.c.h.s8.bf16 %v731
        %v1804 = vunpack.c.h.s8.bf16 %v732
        %v1805 = vunpack.c.h.s8.bf16 %v733
        %v1806 = vunpack.c.h.s8.bf16 %v734
        %v1807 = vunpack.c.l.s8.bf16 %v735
        %v1808 = vunpack.c.l.s8.bf16 %v736
        %v1809 = vunpack.c.l.s8.bf16 %v737
        %v1810 = vunpack.c.l.s8.bf16 %v738
        %v1811 = vunpack.c.h.s8.bf16 %v735
        %v1812 = vunpack.c.h.s8.bf16 %v736
        %v1813 = vunpack.c.h.s8.bf16 %v737
        %v1814 = vunpack.c.h.s8.bf16 %v738
        %v1815 = vunpack.c.l.s8.bf16 %v739
        %v1816 = vunpack.c.l.s8.bf16 %v740
        %v1817 = vunpack.c.l.s8.bf16 %v741
        %v1818 = vunpack.c.l.s8.bf16 %v742
        %v1819 = vunpack.c.h.s8.bf16 %v739
        %v1820 = vunpack.c.h.s8.bf16 %v740
        %v1821 = vunpack.c.h.s8.bf16 %v741
        %v1822 = vunpack.c.h.s8.bf16 %v742
        %v1823 = vunpack.c.l.s8.bf16 %v743
        %v1824 = vunpack.c.l.s8.bf16 %v744
        %v1825 = vunpack.c.l.s8.bf16 %v745
        %v1826 = vunpack.c.l.s8.bf16 %v746
        %v1827 = vunpack.c.h.s8.bf16 %v743
        %v1828 = vunpack.c.h.s8.bf16 %v744
        %v1829 = vunpack.c.h.s8.bf16 %v745
        %v1830 = vunpack.c.h.s8.bf16 %v746
        %v1831 = vunpack.c.l.s8.bf16 %v747
        %v1832 = vunpack.c.l.s8.bf16 %v748
        %v1833 = vunpack.c.l.s8.bf16 %v749
        %v1834 = vunpack.c.l.s8.bf16 %v750
        %v1835 = vunpack.c.h.s8.bf16 %v747
        %v1836 = vunpack.c.h.s8.bf16 %v748
        %v1837 = vunpack.c.h.s8.bf16 %v749
        %v1838 = vunpack.c.h.s8.bf16 %v750
        %v1839 = vunpack.c.l.s8.bf16 %v751
        %v1840 = vunpack.c.l.s8.bf16 %v752
        %v1841 = vunpack.c.l.s8.bf16 %v753
        %v1842 = vunpack.c.l.s8.bf16 %v754
        %v1843 = vunpack.c.h.s8.bf16 %v751
        %v1844 = vunpack.c.h.s8.bf16 %v752
        %v1845 = vunpack.c.h.s8.bf16 %v753
        %v1846 = vunpack.c.h.s8.bf16 %v754
        %v1847 = vunpack.c.l.s8.bf16 %v755
        %v1848 = vunpack.c.l.s8.bf16 %v756
        %v1849 = vunpack.c.l.s8.bf16 %v757
        %v1850 = vunpack.c.l.s8.bf16 %v758
        %v1851 = vunpack.c.h.s8.bf16 %v755
        %v1852 = vunpack.c.h.s8.bf16 %v756
        %v1853 = vunpack.c.h.s8.bf16 %v757
        %v1854 = vunpack.c.h.s8.bf16 %v758
        %v1855 = vunpack.c.l.s8.bf16 %v759
        %v1856 = vunpack.c.l.s8.bf16 %v760
        %v1857 = vunpack.c.l.s8.bf16 %v761
        %v1858 = vunpack.c.l.s8.bf16 %v762
        %v1859 = vunpack.c.h.s8.bf16 %v759
        %v1860 = vunpack.c.h.s8.bf16 %v760
        %v1861 = vunpack.c.h.s8.bf16 %v761
        %v1862 = vunpack.c.h.s8.bf16 %v762
        %v1863 = vunpack.c.l.s8.bf16 %v763
        %v1864 = vunpack.c.l.s8.bf16 %v764
        %v1865 = vunpack.c.l.s8.bf16 %v765
        %v1866 = vunpack.c.l.s8.bf16 %v766
        %v1867 = vunpack.c.h.s8.bf16 %v763
        %v1868 = vunpack.c.h.s8.bf16 %v764
        %v1869 = vunpack.c.h.s8.bf16 %v765
        %v1870 = vunpack.c.h.s8.bf16 %v766
        %v1871 = vunpack.c.l.s8.bf16 %v767
        %v1872 = vunpack.c.l.s8.bf16 %v768
        %v1873 = vunpack.c.l.s8.bf16 %v769
        %v1874 = vunpack.c.l.s8.bf16 %v770
        %v1875 = vunpack.c.h.s8.bf16 %v767
        %v1876 = vunpack.c.h.s8.bf16 %v768
        %v1877 = vunpack.c.h.s8.bf16 %v769
        %v1878 = vunpack.c.h.s8.bf16 %v770
        %v1879 = vunpack.c.l.s8.bf16 %v771
        %v1880 = vunpack.c.l.s8.bf16 %v772
        %v1881 = vunpack.c.l.s8.bf16 %v773
        %v1882 = vunpack.c.l.s8.bf16 %v774
        %v1883 = vunpack.c.h.s8.bf16 %v771
        %v1884 = vunpack.c.h.s8.bf16 %v772
        %v1885 = vunpack.c.h.s8.bf16 %v773
        %v1886 = vunpack.c.h.s8.bf16 %v774
        %v1887 = vunpack.c.l.s8.bf16 %v775
        %v1888 = vunpack.c.l.s8.bf16 %v776
        %v1889 = vunpack.c.l.s8.bf16 %v777
        %v1890 = vunpack.c.l.s8.bf16 %v778
        %v1891 = vunpack.c.h.s8.bf16 %v775
        %v1892 = vunpack.c.h.s8.bf16 %v776
        %v1893 = vunpack.c.h.s8.bf16 %v777
        %v1894 = vunpack.c.h.s8.bf16 %v778
        %v1895 = vunpack.c.l.s8.bf16 %v779
        %v1896 = vunpack.c.l.s8.bf16 %v780
        %v1897 = vunpack.c.l.s8.bf16 %v781
        %v1898 = vunpack.c.l.s8.bf16 %v782
        %v1899 = vunpack.c.h.s8.bf16 %v779
        %v1900 = vunpack.c.h.s8.bf16 %v780
        %v1901 = vunpack.c.h.s8.bf16 %v781
        %v1902 = vunpack.c.h.s8.bf16 %v782
        %v1903 = vunpack.c.l.s8.bf16 %v783
        %v1904 = vunpack.c.l.s8.bf16 %v784
        %v1905 = vunpack.c.l.s8.bf16 %v785
        %v1906 = vunpack.c.l.s8.bf16 %v786
        %v1907 = vunpack.c.h.s8.bf16 %v783
        %v1908 = vunpack.c.h.s8.bf16 %v784
        %v1909 = vunpack.c.h.s8.bf16 %v785
        %v1910 = vunpack.c.h.s8.bf16 %v786
        %v1911 = vunpack.c.l.s8.bf16 %v787
        %v1912 = vunpack.c.l.s8.bf16 %v788
        %v1913 = vunpack.c.l.s8.bf16 %v789
        %v1914 = vunpack.c.l.s8.bf16 %v790
        %v1915 = vunpack.c.h.s8.bf16 %v787
        %v1916 = vunpack.c.h.s8.bf16 %v788
        %v1917 = vunpack.c.h.s8.bf16 %v789
        %v1918 = vunpack.c.h.s8.bf16 %v790
        %v1919 = vunpack.c.l.s8.bf16 %v791
        %v1920 = vunpack.c.l.s8.bf16 %v792
        %v1921 = vunpack.c.l.s8.bf16 %v793
        %v1922 = vunpack.c.l.s8.bf16 %v794
        %v1923 = vunpack.c.h.s8.bf16 %v791
        %v1924 = vunpack.c.h.s8.bf16 %v792
        %v1925 = vunpack.c.h.s8.bf16 %v793
        %v1926 = vunpack.c.h.s8.bf16 %v794
        %v1927 = vunpack.c.l.s8.bf16 %v795
        %v1928 = vunpack.c.l.s8.bf16 %v796
        %v1929 = vunpack.c.l.s8.bf16 %v797
        %v1930 = vunpack.c.l.s8.bf16 %v798
        %v1931 = vunpack.c.h.s8.bf16 %v795
        %v1932 = vunpack.c.h.s8.bf16 %v796
        %v1933 = vunpack.c.h.s8.bf16 %v797
        %v1934 = vunpack.c.h.s8.bf16 %v798
        %v1935 = vunpack.c.l.s8.bf16 %v799
        %v1936 = vunpack.c.l.s8.bf16 %v800
        %v1937 = vunpack.c.l.s8.bf16 %v801
        %v1938 = vunpack.c.l.s8.bf16 %v802
        %v1939 = vunpack.c.h.s8.bf16 %v799
        %v1940 = vunpack.c.h.s8.bf16 %v800
        %v1941 = vunpack.c.h.s8.bf16 %v801
        %v1942 = vunpack.c.h.s8.bf16 %v802
        %v1943 = vunpack.c.l.s8.bf16 %v803
        %v1944 = vunpack.c.l.s8.bf16 %v804
        %v1945 = vunpack.c.l.s8.bf16 %v805
        %v1946 = vunpack.c.l.s8.bf16 %v806
        %v1947 = vunpack.c.h.s8.bf16 %v803
        %v1948 = vunpack.c.h.s8.bf16 %v804
        %v1949 = vunpack.c.h.s8.bf16 %v805
        %v1950 = vunpack.c.h.s8.bf16 %v806
        %v1951 = vunpack.c.l.s8.bf16 %v807
        %v1952 = vunpack.c.l.s8.bf16 %v808
        %v1953 = vunpack.c.l.s8.bf16 %v809
        %v1954 = vunpack.c.l.s8.bf16 %v810
        %v1955 = vunpack.c.h.s8.bf16 %v807
        %v1956 = vunpack.c.h.s8.bf16 %v808
        %v1957 = vunpack.c.h.s8.bf16 %v809
        %v1958 = vunpack.c.h.s8.bf16 %v810
        %v1959 = vunpack.c.l.s8.bf16 %v811
        %v1960 = vunpack.c.l.s8.bf16 %v812
        %v1961 = vunpack.c.l.s8.bf16 %v813
        %v1962 = vunpack.c.l.s8.bf16 %v814
        %v1963 = vunpack.c.h.s8.bf16 %v811
        %v1964 = vunpack.c.h.s8.bf16 %v812
        %v1965 = vunpack.c.h.s8.bf16 %v813
        %v1966 = vunpack.c.h.s8.bf16 %v814
        %v1967 = vunpack.c.l.s8.bf16 %v815
        %v1968 = vunpack.c.l.s8.bf16 %v816
        %v1969 = vunpack.c.l.s8.bf16 %v817
        %v1970 = vunpack.c.l.s8.bf16 %v818
        %v1971 = vunpack.c.h.s8.bf16 %v815
        %v1972 = vunpack.c.h.s8.bf16 %v816
        %v1973 = vunpack.c.h.s8.bf16 %v817
        %v1974 = vunpack.c.h.s8.bf16 %v818
        %v1975 = vunpack.c.l.s8.bf16 %v819
        %v1976 = vunpack.c.l.s8.bf16 %v820
        %v1977 = vunpack.c.l.s8.bf16 %v821
        %v1978 = vunpack.c.l.s8.bf16 %v822
        %v1979 = vunpack.c.h.s8.bf16 %v819
        %v1980 = vunpack.c.h.s8.bf16 %v820
        %v1981 = vunpack.c.h.s8.bf16 %v821
        %v1982 = vunpack.c.h.s8.bf16 %v822
        %v1983 = vunpack.c.l.s8.bf16 %v823
        %v1984 = vunpack.c.l.s8.bf16 %v824
        %v1985 = vunpack.c.l.s8.bf16 %v825
        %v1986 = vunpack.c.l.s8.bf16 %v826
        %v1987 = vunpack.c.h.s8.bf16 %v823
        %v1988 = vunpack.c.h.s8.bf16 %v824
        %v1989 = vunpack.c.h.s8.bf16 %v825
        %v1990 = vunpack.c.h.s8.bf16 %v826
        %v1991 = vunpack.c.l.s8.bf16 %v827
        %v1992 = vunpack.c.l.s8.bf16 %v828
        %v1993 = vunpack.c.l.s8.bf16 %v829
        %v1994 = vunpack.c.l.s8.bf16 %v830
        %v1995 = vunpack.c.h.s8.bf16 %v827
        %v1996 = vunpack.c.h.s8.bf16 %v828
        %v1997 = vunpack.c.h.s8.bf16 %v829
        %v1998 = vunpack.c.h.s8.bf16 %v830
        %v1999 = vunpack.c.l.s8.bf16 %v831
        %v2000 = vunpack.c.l.s8.bf16 %v832
        %v2001 = vunpack.c.l.s8.bf16 %v833
        %v2002 = vunpack.c.l.s8.bf16 %v834
        %v2003 = vunpack.c.h.s8.bf16 %v831
        %v2004 = vunpack.c.h.s8.bf16 %v832
        %v2005 = vunpack.c.h.s8.bf16 %v833
        %v2006 = vunpack.c.h.s8.bf16 %v834
        %v2007 = vunpack.c.l.s8.bf16 %v835
        %v2008 = vunpack.c.l.s8.bf16 %v836
        %v2009 = vunpack.c.l.s8.bf16 %v837
        %v2010 = vunpack.c.l.s8.bf16 %v838
        %v2011 = vunpack.c.h.s8.bf16 %v835
        %v2012 = vunpack.c.h.s8.bf16 %v836
        %v2013 = vunpack.c.h.s8.bf16 %v837
        %v2014 = vunpack.c.h.s8.bf16 %v838
        %v2015 = vunpack.c.l.s8.bf16 %v839
        %v2016 = vunpack.c.l.s8.bf16 %v840
        %v2017 = vunpack.c.l.s8.bf16 %v841
        %v2018 = vunpack.c.l.s8.bf16 %v842
        %v2019 = vunpack.c.h.s8.bf16 %v839
        %v2020 = vunpack.c.h.s8.bf16 %v840
        %v2021 = vunpack.c.h.s8.bf16 %v841
        %v2022 = vunpack.c.h.s8.bf16 %v842
        %v2023 = vunpack.c.l.s8.bf16 %v843
        %v2024 = vunpack.c.l.s8.bf16 %v844
        %v2025 = vunpack.c.l.s8.bf16 %v845
        %v2026 = vunpack.c.l.s8.bf16 %v846
        %v2027 = vunpack.c.h.s8.bf16 %v843
        %v2028 = vunpack.c.h.s8.bf16 %v844
        %v2029 = vunpack.c.h.s8.bf16 %v845
        %v2030 = vunpack.c.h.s8.bf16 %v846
        %v2031 = vunpack.c.l.s8.bf16 %v847
        %v2032 = vunpack.c.l.s8.bf16 %v848
        %v2033 = vunpack.c.l.s8.bf16 %v849
        %v2034 = vunpack.c.l.s8.bf16 %v850
        %v2035 = vunpack.c.h.s8.bf16 %v847
        %v2036 = vunpack.c.h.s8.bf16 %v848
        %v2037 = vunpack.c.h.s8.bf16 %v849
        %v2038 = vunpack.c.h.s8.bf16 %v850
        %v2039 = vunpack.c.l.s8.bf16 %v851
        %v2040 = vunpack.c.l.s8.bf16 %v852
        %v2041 = vunpack.c.l.s8.bf16 %v853
        %v2042 = vunpack.c.l.s8.bf16 %v854
        %v2043 = vunpack.c.h.s8.bf16 %v851
        %v2044 = vunpack.c.h.s8.bf16 %v852
        %v2045 = vunpack.c.h.s8.bf16 %v853
        %v2046 = vunpack.c.h.s8.bf16 %v854
        %v2047 = vunpack.c.l.s8.bf16 %v855
        %v2048 = vunpack.c.l.s8.bf16 %v856
        %v2049 = vunpack.c.l.s8.bf16 %v857
        %v2050 = vunpack.c.l.s8.bf16 %v858
        %v2051 = vunpack.c.h.s8.bf16 %v855
        %v2052 = vunpack.c.h.s8.bf16 %v856
        %v2053 = vunpack.c.h.s8.bf16 %v857
        %v2054 = vunpack.c.h.s8.bf16 %v858
        %v2055 = vunpack.c.l.s8.bf16 %v859
        %v2056 = vunpack.c.l.s8.bf16 %v860
        %v2057 = vunpack.c.l.s8.bf16 %v861
        %v2058 = vunpack.c.l.s8.bf16 %v862
        %v2059 = vunpack.c.h.s8.bf16 %v859
        %v2060 = vunpack.c.h.s8.bf16 %v860
        %v2061 = vunpack.c.h.s8.bf16 %v861
        %v2062 = vunpack.c.h.s8.bf16 %v862
        %v2063 = vunpack.c.l.s8.bf16 %v863
        %v2064 = vunpack.c.l.s8.bf16 %v864
        %v2065 = vunpack.c.l.s8.bf16 %v865
        %v2066 = vunpack.c.l.s8.bf16 %v866
        %v2067 = vunpack.c.h.s8.bf16 %v863
        %v2068 = vunpack.c.h.s8.bf16 %v864
        %v2069 = vunpack.c.h.s8.bf16 %v865
        %v2070 = vunpack.c.h.s8.bf16 %v866
        %v2071 = vunpack.c.l.s8.bf16 %v867
        %v2072 = vunpack.c.l.s8.bf16 %v868
        %v2073 = vunpack.c.l.s8.bf16 %v869
        %v2074 = vunpack.c.l.s8.bf16 %v870
        %v2075 = vunpack.c.h.s8.bf16 %v867
        %v2076 = vunpack.c.h.s8.bf16 %v868
        %v2077 = vunpack.c.h.s8.bf16 %v869
        %v2078 = vunpack.c.h.s8.bf16 %v870
        %v2079 = vunpack.c.l.s8.bf16 %v871
        %v2080 = vunpack.c.l.s8.bf16 %v872
        %v2081 = vunpack.c.l.s8.bf16 %v873
        %v2082 = vunpack.c.l.s8.bf16 %v874
        %v2083 = vunpack.c.h.s8.bf16 %v871
        %v2084 = vunpack.c.h.s8.bf16 %v872
        %v2085 = vunpack.c.h.s8.bf16 %v873
        %v2086 = vunpack.c.h.s8.bf16 %v874
        %v2087 = vunpack.c.l.s8.bf16 %v875
        %v2088 = vunpack.c.l.s8.bf16 %v876
        %v2089 = vunpack.c.l.s8.bf16 %v877
        %v2090 = vunpack.c.l.s8.bf16 %v878
        %v2091 = vunpack.c.h.s8.bf16 %v875
        %v2092 = vunpack.c.h.s8.bf16 %v876
        %v2093 = vunpack.c.h.s8.bf16 %v877
        %v2094 = vunpack.c.h.s8.bf16 %v878
        %v2095 = vunpack.c.l.s8.bf16 %v879
        %v2096 = vunpack.c.l.s8.bf16 %v880
        %v2097 = vunpack.c.l.s8.bf16 %v881
        %v2098 = vunpack.c.l.s8.bf16 %v882
        %v2099 = vunpack.c.h.s8.bf16 %v879
        %v2100 = vunpack.c.h.s8.bf16 %v880
        %v2101 = vunpack.c.h.s8.bf16 %v881
        %v2102 = vunpack.c.h.s8.bf16 %v882
        %v2103 = vunpack.c.l.s8.bf16 %v883
        %v2104 = vunpack.c.l.s8.bf16 %v884
        %v2105 = vunpack.c.l.s8.bf16 %v885
        %v2106 = vunpack.c.l.s8.bf16 %v886
        %v2107 = vunpack.c.h.s8.bf16 %v883
        %v2108 = vunpack.c.h.s8.bf16 %v884
        %v2109 = vunpack.c.h.s8.bf16 %v885
        %v2110 = vunpack.c.h.s8.bf16 %v886
        %v2111 = vunpack.c.l.s8.bf16 %v887
        %v2112 = vunpack.c.l.s8.bf16 %v888
        %v2113 = vunpack.c.l.s8.bf16 %v889
        %v2114 = vunpack.c.l.s8.bf16 %v890
        %v2115 = vunpack.c.h.s8.bf16 %v887
        %v2116 = vunpack.c.h.s8.bf16 %v888
        %v2117 = vunpack.c.h.s8.bf16 %v889
        %v2118 = vunpack.c.h.s8.bf16 %v890
        %v2119 = vunpack.c.l.s8.bf16 %v891
        %v2120 = vunpack.c.l.s8.bf16 %v892
        %v2121 = vunpack.c.l.s8.bf16 %v893
        %v2122 = vunpack.c.l.s8.bf16 %v894
        %v2123 = vunpack.c.h.s8.bf16 %v891
        %v2124 = vunpack.c.h.s8.bf16 %v892
        %v2125 = vunpack.c.h.s8.bf16 %v893
        %v2126 = vunpack.c.h.s8.bf16 %v894
        %v2127 = vunpack.c.l.s8.bf16 %v895
        %v2128 = vunpack.c.l.s8.bf16 %v896
        %v2129 = vunpack.c.l.s8.bf16 %v897
        %v2130 = vunpack.c.l.s8.bf16 %v898
        %v2131 = vunpack.c.h.s8.bf16 %v895
        %v2132 = vunpack.c.h.s8.bf16 %v896
        %v2133 = vunpack.c.h.s8.bf16 %v897
        %v2134 = vunpack.c.h.s8.bf16 %v898
        %v2135 = vunpack.c.l.s8.bf16 %v899
        %v2136 = vunpack.c.l.s8.bf16 %v900
        %v2137 = vunpack.c.l.s8.bf16 %v901
        %v2138 = vunpack.c.l.s8.bf16 %v902
        %v2139 = vunpack.c.h.s8.bf16 %v899
        %v2140 = vunpack.c.h.s8.bf16 %v900
        %v2141 = vunpack.c.h.s8.bf16 %v901
        %v2142 = vunpack.c.h.s8.bf16 %v902
        %v2143 = vunpack.c.l.s8.bf16 %v903
        %v2144 = vunpack.c.l.s8.bf16 %v904
        %v2145 = vunpack.c.l.s8.bf16 %v905
        %v2146 = vunpack.c.l.s8.bf16 %v906
        %v2147 = vunpack.c.h.s8.bf16 %v903
        %v2148 = vunpack.c.h.s8.bf16 %v904
        %v2149 = vunpack.c.h.s8.bf16 %v905
        %v2150 = vunpack.c.h.s8.bf16 %v906
        %v2151 = vunpack.c.l.s8.bf16 %v907
        %v2152 = vunpack.c.l.s8.bf16 %v908
        %v2153 = vunpack.c.l.s8.bf16 %v909
        %v2154 = vunpack.c.l.s8.bf16 %v910
        %v2155 = vunpack.c.h.s8.bf16 %v907
        %v2156 = vunpack.c.h.s8.bf16 %v908
        %v2157 = vunpack.c.h.s8.bf16 %v909
        %v2158 = vunpack.c.h.s8.bf16 %v910
        %v2159 = vunpack.c.l.s8.bf16 %v911
        %v2160 = vunpack.c.l.s8.bf16 %v912
        %v2161 = vunpack.c.l.s8.bf16 %v913
        %v2162 = vunpack.c.l.s8.bf16 %v914
        %v2163 = vunpack.c.h.s8.bf16 %v911
        %v2164 = vunpack.c.h.s8.bf16 %v912
        %v2165 = vunpack.c.h.s8.bf16 %v913
        %v2166 = vunpack.c.h.s8.bf16 %v914
        %v2167 = vunpack.c.l.s8.bf16 %v915
        %v2168 = vunpack.c.l.s8.bf16 %v916
        %v2169 = vunpack.c.l.s8.bf16 %v917
        %v2170 = vunpack.c.l.s8.bf16 %v918
        %v2171 = vunpack.c.h.s8.bf16 %v915
        %v2172 = vunpack.c.h.s8.bf16 %v916
        %v2173 = vunpack.c.h.s8.bf16 %v917
        %v2174 = vunpack.c.h.s8.bf16 %v918
        %v2175 = vunpack.c.l.s8.bf16 %v919
        %v2176 = vunpack.c.l.s8.bf16 %v920
        %v2177 = vunpack.c.l.s8.bf16 %v921
        %v2178 = vunpack.c.l.s8.bf16 %v922
        %v2179 = vunpack.c.h.s8.bf16 %v919
        %v2180 = vunpack.c.h.s8.bf16 %v920
        %v2181 = vunpack.c.h.s8.bf16 %v921
        %v2182 = vunpack.c.h.s8.bf16 %v922
        %v2183 = vunpack.c.l.s8.bf16 %v923
        %v2184 = vunpack.c.l.s8.bf16 %v924
        %v2185 = vunpack.c.l.s8.bf16 %v925
        %v2186 = vunpack.c.l.s8.bf16 %v926
        %v2187 = vunpack.c.h.s8.bf16 %v923
        %v2188 = vunpack.c.h.s8.bf16 %v924
        %v2189 = vunpack.c.h.s8.bf16 %v925
        %v2190 = vunpack.c.h.s8.bf16 %v926
        %v2191 = vunpack.c.l.s8.bf16 %v927
        %v2192 = vunpack.c.l.s8.bf16 %v928
        %v2193 = vunpack.c.l.s8.bf16 %v929
        %v2194 = vunpack.c.l.s8.bf16 %v930
        %v2195 = vunpack.c.h.s8.bf16 %v927
        %v2196 = vunpack.c.h.s8.bf16 %v928
        %v2197 = vunpack.c.h.s8.bf16 %v929
        %v2198 = vunpack.c.h.s8.bf16 %v930
        %v2199 = vunpack.c.l.s8.bf16 %v931
        %v2200 = vunpack.c.l.s8.bf16 %v932
        %v2201 = vunpack.c.l.s8.bf16 %v933
        %v2202 = vunpack.c.l.s8.bf16 %v934
        %v2203 = vunpack.c.h.s8.bf16 %v931
        %v2204 = vunpack.c.h.s8.bf16 %v932
        %v2205 = vunpack.c.h.s8.bf16 %v933
        %v2206 = vunpack.c.h.s8.bf16 %v934
        %v2207 = vunpack.c.l.s8.bf16 %v935
        %v2208 = vunpack.c.l.s8.bf16 %v936
        %v2209 = vunpack.c.l.s8.bf16 %v937
        %v2210 = vunpack.c.l.s8.bf16 %v938
        %v2211 = vunpack.c.h.s8.bf16 %v935
        %v2212 = vunpack.c.h.s8.bf16 %v936
        %v2213 = vunpack.c.h.s8.bf16 %v937
        %v2214 = vunpack.c.h.s8.bf16 %v938
        %v2215 = vunpack.c.l.s8.bf16 %v939
        %v2216 = vunpack.c.l.s8.bf16 %v940
        %v2217 = vunpack.c.l.s8.bf16 %v941
        %v2218 = vunpack.c.l.s8.bf16 %v942
        %v2219 = vunpack.c.h.s8.bf16 %v939
        %v2220 = vunpack.c.h.s8.bf16 %v940
        %v2221 = vunpack.c.h.s8.bf16 %v941
        %v2222 = vunpack.c.h.s8.bf16 %v942
        %v2223 = vunpack.c.l.s8.bf16 %v943
        %v2224 = vunpack.c.l.s8.bf16 %v944
        %v2225 = vunpack.c.l.s8.bf16 %v945
        %v2226 = vunpack.c.l.s8.bf16 %v946
        %v2227 = vunpack.c.h.s8.bf16 %v943
        %v2228 = vunpack.c.h.s8.bf16 %v944
        %v2229 = vunpack.c.h.s8.bf16 %v945
        %v2230 = vunpack.c.h.s8.bf16 %v946
        %v2231 = vunpack.c.l.s8.bf16 %v947
        %v2232 = vunpack.c.l.s8.bf16 %v948
        %v2233 = vunpack.c.l.s8.bf16 %v949
        %v2234 = vunpack.c.l.s8.bf16 %v950
        %v2235 = vunpack.c.h.s8.bf16 %v947
        %v2236 = vunpack.c.h.s8.bf16 %v948
        %v2237 = vunpack.c.h.s8.bf16 %v949
        %v2238 = vunpack.c.h.s8.bf16 %v950
        %v2239 = vunpack.c.l.s8.bf16 %v951
        %v2240 = vunpack.c.l.s8.bf16 %v952
        %v2241 = vunpack.c.l.s8.bf16 %v953
        %v2242 = vunpack.c.l.s8.bf16 %v954
        %v2243 = vunpack.c.h.s8.bf16 %v951
        %v2244 = vunpack.c.h.s8.bf16 %v952
        %v2245 = vunpack.c.h.s8.bf16 %v953
        %v2246 = vunpack.c.h.s8.bf16 %v954
        %v2247 = vunpack.c.l.s8.bf16 %v955
        %v2248 = vunpack.c.l.s8.bf16 %v956
        %v2249 = vunpack.c.l.s8.bf16 %v957
        %v2250 = vunpack.c.l.s8.bf16 %v958
        %v2251 = vunpack.c.h.s8.bf16 %v955
        %v2252 = vunpack.c.h.s8.bf16 %v956
        %v2253 = vunpack.c.h.s8.bf16 %v957
        %v2254 = vunpack.c.h.s8.bf16 %v958
        %v2255 = vunpack.c.l.s8.bf16 %v959
        %v2256 = vunpack.c.l.s8.bf16 %v960
        %v2257 = vunpack.c.l.s8.bf16 %v961
        %v2258 = vunpack.c.l.s8.bf16 %v962
        %v2259 = vunpack.c.h.s8.bf16 %v959
        %v2260 = vunpack.c.h.s8.bf16 %v960
        %v2261 = vunpack.c.h.s8.bf16 %v961
        %v2262 = vunpack.c.h.s8.bf16 %v962
        %v2263 = vunpack.c.l.s8.bf16 %v963
        %v2264 = vunpack.c.l.s8.bf16 %v964
        %v2265 = vunpack.c.l.s8.bf16 %v965
        %v2266 = vunpack.c.l.s8.bf16 %v966
        %v2267 = vunpack.c.h.s8.bf16 %v963
        %v2268 = vunpack.c.h.s8.bf16 %v964
        %v2269 = vunpack.c.h.s8.bf16 %v965
        %v2270 = vunpack.c.h.s8.bf16 %v966
        %v2271 = vunpack.c.l.s8.bf16 %v967
        %v2272 = vunpack.c.l.s8.bf16 %v968
        %v2273 = vunpack.c.l.s8.bf16 %v969
        %v2274 = vunpack.c.l.s8.bf16 %v970
        %v2275 = vunpack.c.h.s8.bf16 %v967
        %v2276 = vunpack.c.h.s8.bf16 %v968
        %v2277 = vunpack.c.h.s8.bf16 %v969
        %v2278 = vunpack.c.h.s8.bf16 %v970
        %v2279 = vunpack.c.l.s8.bf16 %v971
        %v2280 = vunpack.c.l.s8.bf16 %v972
        %v2281 = vunpack.c.l.s8.bf16 %v973
        %v2282 = vunpack.c.l.s8.bf16 %v974
        %v2283 = vunpack.c.h.s8.bf16 %v971
        %v2284 = vunpack.c.h.s8.bf16 %v972
        %v2285 = vunpack.c.h.s8.bf16 %v973
        %v2286 = vunpack.c.h.s8.bf16 %v974
        %v2287 = vunpack.c.l.s8.bf16 %v975
        %v2288 = vunpack.c.l.s8.bf16 %v976
        %v2289 = vunpack.c.l.s8.bf16 %v977
        %v2290 = vunpack.c.l.s8.bf16 %v978
        %v2291 = vunpack.c.h.s8.bf16 %v975
        %v2292 = vunpack.c.h.s8.bf16 %v976
        %v2293 = vunpack.c.h.s8.bf16 %v977
        %v2294 = vunpack.c.h.s8.bf16 %v978
        %v2295 = vunpack.c.l.s8.bf16 %v979
        %v2296 = vunpack.c.l.s8.bf16 %v980
        %v2297 = vunpack.c.l.s8.bf16 %v981
        %v2298 = vunpack.c.l.s8.bf16 %v982
        %v2299 = vunpack.c.h.s8.bf16 %v979
        %v2300 = vunpack.c.h.s8.bf16 %v980
        %v2301 = vunpack.c.h.s8.bf16 %v981
        %v2302 = vunpack.c.h.s8.bf16 %v982
        %v2303 = vunpack.c.l.s8.bf16 %v983
        %v2304 = vunpack.c.l.s8.bf16 %v984
        %v2305 = vunpack.c.l.s8.bf16 %v985
        %v2306 = vunpack.c.l.s8.bf16 %v986
        %v2307 = vunpack.c.h.s8.bf16 %v983
        %v2308 = vunpack.c.h.s8.bf16 %v984
        %v2309 = vunpack.c.h.s8.bf16 %v985
        %v2310 = vunpack.c.h.s8.bf16 %v986
        %v2311 = vunpack.c.l.s8.bf16 %v987
        %v2312 = vunpack.c.l.s8.bf16 %v988
        %v2313 = vunpack.c.l.s8.bf16 %v989
        %v2314 = vunpack.c.l.s8.bf16 %v990
        %v2315 = vunpack.c.h.s8.bf16 %v987
        %v2316 = vunpack.c.h.s8.bf16 %v988
        %v2317 = vunpack.c.h.s8.bf16 %v989
        %v2318 = vunpack.c.h.s8.bf16 %v990
        %v2319 = vunpack.c.l.s8.bf16 %v991
        %v2320 = vunpack.c.l.s8.bf16 %v992
        %v2321 = vunpack.c.l.s8.bf16 %v993
        %v2322 = vunpack.c.l.s8.bf16 %v994
        %v2323 = vunpack.c.h.s8.bf16 %v991
        %v2324 = vunpack.c.h.s8.bf16 %v992
        %v2325 = vunpack.c.h.s8.bf16 %v993
        %v2326 = vunpack.c.h.s8.bf16 %v994
        %v2327 = vunpack.c.l.s8.bf16 %v995
        %v2328 = vunpack.c.l.s8.bf16 %v996
        %v2329 = vunpack.c.l.s8.bf16 %v997
        %v2330 = vunpack.c.l.s8.bf16 %v998
        %v2331 = vunpack.c.h.s8.bf16 %v995
        %v2332 = vunpack.c.h.s8.bf16 %v996
        %v2333 = vunpack.c.h.s8.bf16 %v997
        %v2334 = vunpack.c.h.s8.bf16 %v998
        %v2335 = vunpack.c.l.s8.bf16 %v999
        %v2336 = vunpack.c.l.s8.bf16 %v1000
        %v2337 = vunpack.c.l.s8.bf16 %v1001
        %v2338 = vunpack.c.l.s8.bf16 %v1002
        %v2339 = vunpack.c.h.s8.bf16 %v999
        %v2340 = vunpack.c.h.s8.bf16 %v1000
        %v2341 = vunpack.c.h.s8.bf16 %v1001
        %v2342 = vunpack.c.h.s8.bf16 %v1002
        %v2343 = vunpack.c.l.s8.bf16 %v1003
        %v2344 = vunpack.c.l.s8.bf16 %v1004
        %v2345 = vunpack.c.l.s8.bf16 %v1005
        %v2346 = vunpack.c.l.s8.bf16 %v1006
        %v2347 = vunpack.c.h.s8.bf16 %v1003
        %v2348 = vunpack.c.h.s8.bf16 %v1004
        %v2349 = vunpack.c.h.s8.bf16 %v1005
        %v2350 = vunpack.c.h.s8.bf16 %v1006
        %v2351 = vunpack.c.l.s8.bf16 %v1007
        %v2352 = vunpack.c.l.s8.bf16 %v1008
        %v2353 = vunpack.c.l.s8.bf16 %v1009
        %v2354 = vunpack.c.l.s8.bf16 %v1010
        %v2355 = vunpack.c.h.s8.bf16 %v1007
        %v2356 = vunpack.c.h.s8.bf16 %v1008
        %v2357 = vunpack.c.h.s8.bf16 %v1009
        %v2358 = vunpack.c.h.s8.bf16 %v1010
        %v2359 = vunpack.c.l.s8.bf16 %v1011
        %v2360 = vunpack.c.l.s8.bf16 %v1012
        %v2361 = vunpack.c.l.s8.bf16 %v1013
        %v2362 = vunpack.c.l.s8.bf16 %v1014
        %v2363 = vunpack.c.h.s8.bf16 %v1011
        %v2364 = vunpack.c.h.s8.bf16 %v1012
        %v2365 = vunpack.c.h.s8.bf16 %v1013
        %v2366 = vunpack.c.h.s8.bf16 %v1014
        %v2367 = vunpack.c.l.s8.bf16 %v1015
        %v2368 = vunpack.c.l.s8.bf16 %v1016
        %v2369 = vunpack.c.l.s8.bf16 %v1017
        %v2370 = vunpack.c.l.s8.bf16 %v1018
        %v2371 = vunpack.c.h.s8.bf16 %v1015
        %v2372 = vunpack.c.h.s8.bf16 %v1016
        %v2373 = vunpack.c.h.s8.bf16 %v1017
        %v2374 = vunpack.c.h.s8.bf16 %v1018
        %v2375 = vunpack.c.l.s8.bf16 %v1019
        %v2376 = vunpack.c.l.s8.bf16 %v1020
        %v2377 = vunpack.c.l.s8.bf16 %v1021
        %v2378 = vunpack.c.l.s8.bf16 %v1022
        %v2379 = vunpack.c.h.s8.bf16 %v1019
        %v2380 = vunpack.c.h.s8.bf16 %v1020
        %v2381 = vunpack.c.h.s8.bf16 %v1021
        %v2382 = vunpack.c.h.s8.bf16 %v1022
        %v2383 = vunpack.c.l.s8.bf16 %v1023
        %v2384 = vunpack.c.l.s8.bf16 %v1024
        %v2385 = vunpack.c.l.s8.bf16 %v1025
        %v2386 = vunpack.c.l.s8.bf16 %v1026
        %v2387 = vunpack.c.h.s8.bf16 %v1023
        %v2388 = vunpack.c.h.s8.bf16 %v1024
        %v2389 = vunpack.c.h.s8.bf16 %v1025
        %v2390 = vunpack.c.h.s8.bf16 %v1026
        %v2391 = vunpack.c.l.s8.bf16 %v1027
        %v2392 = vunpack.c.l.s8.bf16 %v1028
        %v2393 = vunpack.c.l.s8.bf16 %v1029
        %v2394 = vunpack.c.l.s8.bf16 %v1030
        %v2395 = vunpack.c.h.s8.bf16 %v1027
        %v2396 = vunpack.c.h.s8.bf16 %v1028
        %v2397 = vunpack.c.h.s8.bf16 %v1029
        %v2398 = vunpack.c.h.s8.bf16 %v1030
        %v2399 = vunpack.c.l.s8.bf16 %v1031
        %v2400 = vunpack.c.l.s8.bf16 %v1032
        %v2401 = vunpack.c.l.s8.bf16 %v1033
        %v2402 = vunpack.c.l.s8.bf16 %v1034
        %v2403 = vunpack.c.h.s8.bf16 %v1031
        %v2404 = vunpack.c.h.s8.bf16 %v1032
        %v2405 = vunpack.c.h.s8.bf16 %v1033
        %v2406 = vunpack.c.h.s8.bf16 %v1034
        %v2407 = vunpack.c.l.s8.bf16 %v1035
        %v2408 = vunpack.c.l.s8.bf16 %v1036
        %v2409 = vunpack.c.l.s8.bf16 %v1037
        %v2410 = vunpack.c.l.s8.bf16 %v1038
        %v2411 = vunpack.c.h.s8.bf16 %v1035
        %v2412 = vunpack.c.h.s8.bf16 %v1036
        %v2413 = vunpack.c.h.s8.bf16 %v1037
        %v2414 = vunpack.c.h.s8.bf16 %v1038
        %v2415 = vunpack.c.l.s8.bf16 %v1039
        %v2416 = vunpack.c.l.s8.bf16 %v1040
        %v2417 = vunpack.c.l.s8.bf16 %v1041
        %v2418 = vunpack.c.l.s8.bf16 %v1042
        %v2419 = vunpack.c.h.s8.bf16 %v1039
        %v2420 = vunpack.c.h.s8.bf16 %v1040
        %v2421 = vunpack.c.h.s8.bf16 %v1041
        %v2422 = vunpack.c.h.s8.bf16 %v1042
        %v2423 = vunpack.c.l.s8.bf16 %v1043
        %v2424 = vunpack.c.l.s8.bf16 %v1044
        %v2425 = vunpack.c.l.s8.bf16 %v1045
        %v2426 = vunpack.c.l.s8.bf16 %v1046
        %v2427 = vunpack.c.h.s8.bf16 %v1043
        %v2428 = vunpack.c.h.s8.bf16 %v1044
        %v2429 = vunpack.c.h.s8.bf16 %v1045
        %v2430 = vunpack.c.h.s8.bf16 %v1046
        %v2431 = vunpack.c.l.s8.bf16 %v1047
        %v2432 = vunpack.c.l.s8.bf16 %v1048
        %v2433 = vunpack.c.l.s8.bf16 %v1049
        %v2434 = vunpack.c.l.s8.bf16 %v1050
        %v2435 = vunpack.c.h.s8.bf16 %v1047
        %v2436 = vunpack.c.h.s8.bf16 %v1048
        %v2437 = vunpack.c.h.s8.bf16 %v1049
        %v2438 = vunpack.c.h.s8.bf16 %v1050
        %v2439 = vunpack.c.l.s8.bf16 %v1051
        %v2440 = vunpack.c.l.s8.bf16 %v1052
        %v2441 = vunpack.c.l.s8.bf16 %v1053
        %v2442 = vunpack.c.l.s8.bf16 %v1054
        %v2443 = vunpack.c.h.s8.bf16 %v1051
        %v2444 = vunpack.c.h.s8.bf16 %v1052
        %v2445 = vunpack.c.h.s8.bf16 %v1053
        %v2446 = vunpack.c.h.s8.bf16 %v1054
        %v2447 = vunpack.c.l.s8.bf16 %v1055
        %v2448 = vunpack.c.l.s8.bf16 %v1056
        %v2449 = vunpack.c.l.s8.bf16 %v1057
        %v2450 = vunpack.c.l.s8.bf16 %v1058
        %v2451 = vunpack.c.h.s8.bf16 %v1055
        %v2452 = vunpack.c.h.s8.bf16 %v1056
        %v2453 = vunpack.c.h.s8.bf16 %v1057
        %v2454 = vunpack.c.h.s8.bf16 %v1058
        %v2455 = vunpack.c.l.s8.bf16 %v1059
        %v2456 = vunpack.c.l.s8.bf16 %v1060
        %v2457 = vunpack.c.l.s8.bf16 %v1061
        %v2458 = vunpack.c.l.s8.bf16 %v1062
        %v2459 = vunpack.c.h.s8.bf16 %v1059
        %v2460 = vunpack.c.h.s8.bf16 %v1060
        %v2461 = vunpack.c.h.s8.bf16 %v1061
        %v2462 = vunpack.c.h.s8.bf16 %v1062
        %v2463 = vunpack.c.l.s8.bf16 %v1063
        %v2464 = vunpack.c.l.s8.bf16 %v1064
        %v2465 = vunpack.c.l.s8.bf16 %v1065
        %v2466 = vunpack.c.l.s8.bf16 %v1066
        %v2467 = vunpack.c.h.s8.bf16 %v1063
        %v2468 = vunpack.c.h.s8.bf16 %v1064
        %v2469 = vunpack.c.h.s8.bf16 %v1065
        %v2470 = vunpack.c.h.s8.bf16 %v1066
        %v2471 = vunpack.c.l.s8.bf16 %v1067
        %v2472 = vunpack.c.l.s8.bf16 %v1068
        %v2473 = vunpack.c.l.s8.bf16 %v1069
        %v2474 = vunpack.c.l.s8.bf16 %v1070
        %v2475 = vunpack.c.h.s8.bf16 %v1067
        %v2476 = vunpack.c.h.s8.bf16 %v1068
        %v2477 = vunpack.c.h.s8.bf16 %v1069
        %v2478 = vunpack.c.h.s8.bf16 %v1070
        %v2479 = vunpack.c.l.s8.bf16 %v1071
        %v2480 = vunpack.c.l.s8.bf16 %v1072
        %v2481 = vunpack.c.l.s8.bf16 %v1073
        %v2482 = vunpack.c.l.s8.bf16 %v1074
        %v2483 = vunpack.c.h.s8.bf16 %v1071
        %v2484 = vunpack.c.h.s8.bf16 %v1072
        %v2485 = vunpack.c.h.s8.bf16 %v1073
        %v2486 = vunpack.c.h.s8.bf16 %v1074
        %v2487 = vunpack.c.l.s8.bf16 %v1075
        %v2488 = vunpack.c.l.s8.bf16 %v1076
        %v2489 = vunpack.c.l.s8.bf16 %v1077
        %v2490 = vunpack.c.l.s8.bf16 %v1078
        %v2491 = vunpack.c.h.s8.bf16 %v1075
        %v2492 = vunpack.c.h.s8.bf16 %v1076
        %v2493 = vunpack.c.h.s8.bf16 %v1077
        %v2494 = vunpack.c.h.s8.bf16 %v1078
        %v2495 = vunpack.c.l.s8.bf16 %v1079
        %v2496 = vunpack.c.l.s8.bf16 %v1080
        %v2497 = vunpack.c.l.s8.bf16 %v1081
        %v2498 = vunpack.c.l.s8.bf16 %v1082
        %v2499 = vunpack.c.h.s8.bf16 %v1079
        %v2500 = vunpack.c.h.s8.bf16 %v1080
        %v2501 = vunpack.c.h.s8.bf16 %v1081
        %v2502 = vunpack.c.h.s8.bf16 %v1082
        %v2503 = vunpack.c.l.s8.bf16 %v1083
        %v2504 = vunpack.c.l.s8.bf16 %v1084
        %v2505 = vunpack.c.l.s8.bf16 %v1085
        %v2506 = vunpack.c.l.s8.bf16 %v1086
        %v2507 = vunpack.c.h.s8.bf16 %v1083
        %v2508 = vunpack.c.h.s8.bf16 %v1084
        %v2509 = vunpack.c.h.s8.bf16 %v1085
        %v2510 = vunpack.c.h.s8.bf16 %v1086
        %v2511 = vunpack.c.l.s8.bf16 %v1087
        %v2512 = vunpack.c.l.s8.bf16 %v1088
        %v2513 = vunpack.c.l.s8.bf16 %v1089
        %v2514 = vunpack.c.l.s8.bf16 %v1090
        %v2515 = vunpack.c.h.s8.bf16 %v1087
        %v2516 = vunpack.c.h.s8.bf16 %v1088
        %v2517 = vunpack.c.h.s8.bf16 %v1089
        %v2518 = vunpack.c.h.s8.bf16 %v1090
        %v2519 = vunpack.c.l.s8.bf16 %v1091
        %v2520 = vunpack.c.l.s8.bf16 %v1092
        %v2521 = vunpack.c.l.s8.bf16 %v1093
        %v2522 = vunpack.c.l.s8.bf16 %v1094
        %v2523 = vunpack.c.h.s8.bf16 %v1091
        %v2524 = vunpack.c.h.s8.bf16 %v1092
        %v2525 = vunpack.c.h.s8.bf16 %v1093
        %v2526 = vunpack.c.h.s8.bf16 %v1094
        %v2527 = vunpack.c.l.s8.bf16 %v1095
        %v2528 = vunpack.c.l.s8.bf16 %v1096
        %v2529 = vunpack.c.l.s8.bf16 %v1097
        %v2530 = vunpack.c.l.s8.bf16 %v1098
        %v2531 = vunpack.c.h.s8.bf16 %v1095
        %v2532 = vunpack.c.h.s8.bf16 %v1096
        %v2533 = vunpack.c.h.s8.bf16 %v1097
        %v2534 = vunpack.c.h.s8.bf16 %v1098
        %v2535 = vunpack.c.l.s8.bf16 %v1099
        %v2536 = vunpack.c.l.s8.bf16 %v1100
        %v2537 = vunpack.c.l.s8.bf16 %v1101
        %v2538 = vunpack.c.l.s8.bf16 %v1102
        %v2539 = vunpack.c.h.s8.bf16 %v1099
        %v2540 = vunpack.c.h.s8.bf16 %v1100
        %v2541 = vunpack.c.h.s8.bf16 %v1101
        %v2542 = vunpack.c.h.s8.bf16 %v1102
        %v2543 = vunpack.c.l.s8.bf16 %v1103
        %v2544 = vunpack.c.l.s8.bf16 %v1104
        %v2545 = vunpack.c.l.s8.bf16 %v1105
        %v2546 = vunpack.c.l.s8.bf16 %v1106
        %v2547 = vunpack.c.h.s8.bf16 %v1103
        %v2548 = vunpack.c.h.s8.bf16 %v1104
        %v2549 = vunpack.c.h.s8.bf16 %v1105
        %v2550 = vunpack.c.h.s8.bf16 %v1106
        %v2551 = vunpack.c.l.s8.bf16 %v1107
        %v2552 = vunpack.c.l.s8.bf16 %v1108
        %v2553 = vunpack.c.l.s8.bf16 %v1109
        %v2554 = vunpack.c.l.s8.bf16 %v1110
        %v2555 = vunpack.c.h.s8.bf16 %v1107
        %v2556 = vunpack.c.h.s8.bf16 %v1108
        %v2557 = vunpack.c.h.s8.bf16 %v1109
        %v2558 = vunpack.c.h.s8.bf16 %v1110
        %v2559 = vunpack.c.l.s8.bf16 %v1111
        %v2560 = vunpack.c.l.s8.bf16 %v1112
        %v2561 = vunpack.c.l.s8.bf16 %v1113
        %v2562 = vunpack.c.l.s8.bf16 %v1114
        %v2563 = vunpack.c.h.s8.bf16 %v1111
        %v2564 = vunpack.c.h.s8.bf16 %v1112
        %v2565 = vunpack.c.h.s8.bf16 %v1113
        %v2566 = vunpack.c.h.s8.bf16 %v1114
        %v2567 = vunpack.c.l.s8.bf16 %v1115
        %v2568 = vunpack.c.l.s8.bf16 %v1116
        %v2569 = vunpack.c.l.s8.bf16 %v1117
        %v2570 = vunpack.c.l.s8.bf16 %v1118
        %v2571 = vunpack.c.h.s8.bf16 %v1115
        %v2572 = vunpack.c.h.s8.bf16 %v1116
        %v2573 = vunpack.c.h.s8.bf16 %v1117
        %v2574 = vunpack.c.h.s8.bf16 %v1118
        %v2575 = vunpack.c.l.s8.bf16 %v1119
        %v2576 = vunpack.c.l.s8.bf16 %v1120
        %v2577 = vunpack.c.l.s8.bf16 %v1121
        %v2578 = vunpack.c.l.s8.bf16 %v1122
        %v2579 = vunpack.c.h.s8.bf16 %v1119
        %v2580 = vunpack.c.h.s8.bf16 %v1120
        %v2581 = vunpack.c.h.s8.bf16 %v1121
        %v2582 = vunpack.c.h.s8.bf16 %v1122
        %v2583 = vunpack.c.l.s8.bf16 %v1123
        %v2584 = vunpack.c.l.s8.bf16 %v1124
        %v2585 = vunpack.c.l.s8.bf16 %v1125
        %v2586 = vunpack.c.l.s8.bf16 %v1126
        %v2587 = vunpack.c.h.s8.bf16 %v1123
        %v2588 = vunpack.c.h.s8.bf16 %v1124
        %v2589 = vunpack.c.h.s8.bf16 %v1125
        %v2590 = vunpack.c.h.s8.bf16 %v1126
        %v2591 = vunpack.c.l.s8.bf16 %v1127
        %v2592 = vunpack.c.l.s8.bf16 %v1128
        %v2593 = vunpack.c.l.s8.bf16 %v1129
        %v2594 = vunpack.c.l.s8.bf16 %v1130
        %v2595 = vunpack.c.h.s8.bf16 %v1127
        %v2596 = vunpack.c.h.s8.bf16 %v1128
        %v2597 = vunpack.c.h.s8.bf16 %v1129
        %v2598 = vunpack.c.h.s8.bf16 %v1130
        %v2599 = vunpack.c.l.s8.bf16 %v1131
        %v2600 = vunpack.c.l.s8.bf16 %v1132
        %v2601 = vunpack.c.l.s8.bf16 %v1133
        %v2602 = vunpack.c.l.s8.bf16 %v1134
        %v2603 = vunpack.c.h.s8.bf16 %v1131
        %v2604 = vunpack.c.h.s8.bf16 %v1132
        %v2605 = vunpack.c.h.s8.bf16 %v1133
        %v2606 = vunpack.c.h.s8.bf16 %v1134
        %v2607 = vunpack.c.l.s8.bf16 %v1135
        %v2608 = vunpack.c.l.s8.bf16 %v1136
        %v2609 = vunpack.c.l.s8.bf16 %v1137
        %v2610 = vunpack.c.l.s8.bf16 %v1138
        %v2611 = vunpack.c.h.s8.bf16 %v1135
        %v2612 = vunpack.c.h.s8.bf16 %v1136
        %v2613 = vunpack.c.h.s8.bf16 %v1137
        %v2614 = vunpack.c.h.s8.bf16 %v1138
        %v2615 = vunpack.c.l.s8.bf16 %v1139
        %v2616 = vunpack.c.l.s8.bf16 %v1140
        %v2617 = vunpack.c.l.s8.bf16 %v1141
        %v2618 = vunpack.c.l.s8.bf16 %v1142
        %v2619 = vunpack.c.h.s8.bf16 %v1139
        %v2620 = vunpack.c.h.s8.bf16 %v1140
        %v2621 = vunpack.c.h.s8.bf16 %v1141
        %v2622 = vunpack.c.h.s8.bf16 %v1142
        %v2623 = vunpack.c.l.s8.bf16 %v1143
        %v2624 = vunpack.c.l.s8.bf16 %v1144
        %v2625 = vunpack.c.l.s8.bf16 %v1145
        %v2626 = vunpack.c.l.s8.bf16 %v1146
        %v2627 = vunpack.c.h.s8.bf16 %v1143
        %v2628 = vunpack.c.h.s8.bf16 %v1144
        %v2629 = vunpack.c.h.s8.bf16 %v1145
        %v2630 = vunpack.c.h.s8.bf16 %v1146
        %v2631 = vunpack.c.l.s8.bf16 %v1147
        %v2632 = vunpack.c.l.s8.bf16 %v1148
        %v2633 = vunpack.c.l.s8.bf16 %v1149
        %v2634 = vunpack.c.l.s8.bf16 %v1150
        %v2635 = vunpack.c.h.s8.bf16 %v1147
        %v2636 = vunpack.c.h.s8.bf16 %v1148
        %v2637 = vunpack.c.h.s8.bf16 %v1149
        %v2638 = vunpack.c.h.s8.bf16 %v1150
        %v2639 = vunpack.c.l.s8.bf16 %v1151
        %v2640 = vunpack.c.l.s8.bf16 %v1152
        %v2641 = vunpack.c.l.s8.bf16 %v1153
        %v2642 = vunpack.c.l.s8.bf16 %v1154
        %v2643 = vunpack.c.h.s8.bf16 %v1151
        %v2644 = vunpack.c.h.s8.bf16 %v1152
        %v2645 = vunpack.c.h.s8.bf16 %v1153
        %v2646 = vunpack.c.h.s8.bf16 %v1154
        %v2647 = vunpack.c.l.s8.bf16 %v1155
        %v2648 = vunpack.c.l.s8.bf16 %v1156
        %v2649 = vunpack.c.l.s8.bf16 %v1157
        %v2650 = vunpack.c.l.s8.bf16 %v1158
        %v2651 = vunpack.c.h.s8.bf16 %v1155
        %v2652 = vunpack.c.h.s8.bf16 %v1156
        %v2653 = vunpack.c.h.s8.bf16 %v1157
        %v2654 = vunpack.c.h.s8.bf16 %v1158
        %v2655 = vunpack.c.l.s8.bf16 %v1159
        %v2656 = vunpack.c.l.s8.bf16 %v1160
        %v2657 = vunpack.c.l.s8.bf16 %v1161
        %v2658 = vunpack.c.l.s8.bf16 %v1162
        %v2659 = vunpack.c.h.s8.bf16 %v1159
        %v2660 = vunpack.c.h.s8.bf16 %v1160
        %v2661 = vunpack.c.h.s8.bf16 %v1161
        %v2662 = vunpack.c.h.s8.bf16 %v1162
        %v2663 = vunpack.c.l.s8.bf16 %v1163
        %v2664 = vunpack.c.l.s8.bf16 %v1164
        %v2665 = vunpack.c.l.s8.bf16 %v1165
        %v2666 = vunpack.c.l.s8.bf16 %v1166
        %v2667 = vunpack.c.h.s8.bf16 %v1163
        %v2668 = vunpack.c.h.s8.bf16 %v1164
        %v2669 = vunpack.c.h.s8.bf16 %v1165
        %v2670 = vunpack.c.h.s8.bf16 %v1166
        %v2671 = vld [vmem:[%s0] sm:$0xff]
        %v2672 = vld [vmem:[%s0 + $0x8] sm:$0xff]
        %v2673 = vld [vmem:[%s0 + $0x10] sm:$0xff]
        %v2674 = vld [vmem:[%s0 + $0x18] sm:$0xff]
        %v2675 = vld [vmem:[%s0 + $0x20] sm:$0xff]
        %v2676 = vld [vmem:[%s0 + $0x28] sm:$0xff]
        %v2677 = vld [vmem:[%s0 + $0x30] sm:$0xff]
        %v2678 = vld [vmem:[%s0 + $0x38] sm:$0xff]
        %v2679 = vld [vmem:[%s0 + $0x40] sm:$0xff]
        %v2680 = vld [vmem:[%s0 + $0x48] sm:$0xff]
        %v2681 = vld [vmem:[%s0 + $0x50] sm:$0xff]
        %v2682 = vld [vmem:[%s0 + $0x58] sm:$0xff]
        %v2683 = vld [vmem:[%s0 + $0x60] sm:$0xff]
        %v2684 = vld [vmem:[%s0 + $0x68] sm:$0xff]
        %v2685 = vld [vmem:[%s0 + $0x70] sm:$0xff]
        %v2686 = vld [vmem:[%s0 + $0x78] sm:$0xff]
        %v2687 = vld [vmem:[%s0 + $0x80] sm:$0xff]
        %v2688 = vld [vmem:[%s0 + $0x88] sm:$0xff]
        %v2689 = vld [vmem:[%s0 + $0x90] sm:$0xff]
        %v2690 = vld [vmem:[%s0 + $0x98] sm:$0xff]
        %v2691 = vld [vmem:[%s0 + $0xa0] sm:$0xff]
        %v2692 = vld [vmem:[%s0 + $0xa8] sm:$0xff]
        %v2693 = vld [vmem:[%s0 + $0xb0] sm:$0xff]
        %v2694 = vld [vmem:[%s0 + $0xb8] sm:$0xf]
        %v2719 = vunpack.c.l.b16 %v2671
        %v2720 = vunpack.c.h.b16 %v2671
        %v2721 = vunpack.c.l.b16 %v2672
        %v2722 = vunpack.c.h.b16 %v2672
        %v2723 = vunpack.c.l.b16 %v2673
        %v2724 = vunpack.c.h.b16 %v2673
        %v2725 = vunpack.c.l.b16 %v2674
        %v2726 = vunpack.c.h.b16 %v2674
        %v2727 = vunpack.c.l.b16 %v2675
        %v2728 = vunpack.c.h.b16 %v2675
        %v2729 = vunpack.c.l.b16 %v2676
        %v2730 = vunpack.c.h.b16 %v2676
        %v2731 = vunpack.c.l.b16 %v2677
        %v2732 = vunpack.c.h.b16 %v2677
        %v2733 = vunpack.c.l.b16 %v2678
        %v2734 = vunpack.c.h.b16 %v2678
        %v2735 = vunpack.c.l.b16 %v2679
        %v2736 = vunpack.c.h.b16 %v2679
        %v2737 = vunpack.c.l.b16 %v2680
        %v2738 = vunpack.c.h.b16 %v2680
        %v2739 = vunpack.c.l.b16 %v2681
        %v2740 = vunpack.c.h.b16 %v2681
        %v2741 = vunpack.c.l.b16 %v2682
        %v2742 = vunpack.c.h.b16 %v2682
        %v2743 = vunpack.c.l.b16 %v2683
        %v2744 = vunpack.c.h.b16 %v2683
        %v2745 = vunpack.c.l.b16 %v2684
        %v2746 = vunpack.c.h.b16 %v2684
        %v2747 = vunpack.c.l.b16 %v2685
        %v2748 = vunpack.c.h.b16 %v2685
        %v2749 = vunpack.c.l.b16 %v2686
        %v2750 = vunpack.c.h.b16 %v2686
        %v2751 = vunpack.c.l.b16 %v2687
        %v2752 = vunpack.c.h.b16 %v2687
        %v2753 = vunpack.c.l.b16 %v2688
        %v2754 = vunpack.c.h.b16 %v2688
        %v2755 = vunpack.c.l.b16 %v2689
        %v2756 = vunpack.c.h.b16 %v2689
        %v2757 = vunpack.c.l.b16 %v2690
        %v2758 = vunpack.c.h.b16 %v2690
        %v2759 = vunpack.c.l.b16 %v2691
        %v2760 = vunpack.c.h.b16 %v2691
        %v2761 = vunpack.c.l.b16 %v2692
        %v2762 = vunpack.c.h.b16 %v2692
        %v2763 = vunpack.c.l.b16 %v2693
        %v2764 = vunpack.c.h.b16 %v2693
        %v2765 = vunpack.c.l.b16 %v2694
        %v2766 = vpack.c.b16 %v2719, %v2719
        %v2767 = vpack.c.b16 %v2720, %v2720
        %v2768 = vpack.c.b16 %v2721, %v2721
        %v2769 = vpack.c.b16 %v2722, %v2722
        %v2770 = vpack.c.b16 %v2723, %v2723
        %v2771 = vpack.c.b16 %v2724, %v2724
        %v2772 = vpack.c.b16 %v2725, %v2725
        %v2773 = vpack.c.b16 %v2726, %v2726
        %v2774 = vpack.c.b16 %v2727, %v2727
        %v2775 = vpack.c.b16 %v2728, %v2728
        %v2776 = vpack.c.b16 %v2729, %v2729
        %v2777 = vpack.c.b16 %v2730, %v2730
        %v2778 = vpack.c.b16 %v2731, %v2731
        %v2779 = vpack.c.b16 %v2732, %v2732
        %v2780 = vpack.c.b16 %v2733, %v2733
        %v2781 = vpack.c.b16 %v2734, %v2734
        %v2782 = vpack.c.b16 %v2735, %v2735
        %v2783 = vpack.c.b16 %v2736, %v2736
        %v2784 = vpack.c.b16 %v2737, %v2737
        %v2785 = vpack.c.b16 %v2738, %v2738
        %v2786 = vpack.c.b16 %v2739, %v2739
        %v2787 = vpack.c.b16 %v2740, %v2740
        %v2788 = vpack.c.b16 %v2741, %v2741
        %v2789 = vpack.c.b16 %v2742, %v2742
        %v2790 = vpack.c.b16 %v2743, %v2743
        %v2791 = vpack.c.b16 %v2744, %v2744
        %v2792 = vpack.c.b16 %v2745, %v2745
        %v2793 = vpack.c.b16 %v2746, %v2746
        %v2794 = vpack.c.b16 %v2747, %v2747
        %v2795 = vpack.c.b16 %v2748, %v2748
        %v2796 = vpack.c.b16 %v2749, %v2749
        %v2797 = vpack.c.b16 %v2750, %v2750
        %v2798 = vpack.c.b16 %v2751, %v2751
        %v2799 = vpack.c.b16 %v2752, %v2752
        %v2800 = vpack.c.b16 %v2753, %v2753
        %v2801 = vpack.c.b16 %v2754, %v2754
        %v2802 = vpack.c.b16 %v2755, %v2755
        %v2803 = vpack.c.b16 %v2756, %v2756
        %v2804 = vpack.c.b16 %v2757, %v2757
        %v2805 = vpack.c.b16 %v2758, %v2758
        %v2806 = vpack.c.b16 %v2759, %v2759
        %v2807 = vpack.c.b16 %v2760, %v2760
        %v2808 = vpack.c.b16 %v2761, %v2761
        %v2809 = vpack.c.b16 %v2762, %v2762
        %v2810 = vpack.c.b16 %v2763, %v2763
        %v2811 = vpack.c.b16 %v2764, %v2764
        %v2812 = vpack.c.b16 %v2765, %v2765
        %2860 = vmatprep.subr.bf16.mxu0 %v1168
        %2861 = vmatpush1.bf16.msra.mxu0 %v1167
        %2862 = vmatprep.subr.bf16.mxu0 %v1172
        %2863 = vmatpush1.bf16.msra.mxu0 %v1171
        %2864 = vmatprep.subr.bf16.mxu0 %v1176
        %2865 = vmatpush1.bf16.msra.mxu0 %v1175
        %2866 = vmatprep.subr.bf16.mxu0 %v1180
        %2867 = vmatpush1.bf16.msra.mxu0 %v1179
        %2868 = vmatprep.subr.bf16.mxu0 %v1184
        %2869 = vmatpush1.bf16.msra.mxu0 %v1183
        %2870 = vmatprep.subr.bf16.mxu0 %v1188
        %2871 = vmatpush1.bf16.msra.mxu0 %v1187
        %2872 = vmatprep.subr.bf16.mxu0 %v1192
        %2873 = vmatpush1.bf16.msra.mxu0 %v1191
        %2874 = vmatprep.subr.bf16.mxu0 %v1196
        %2875 = vmatpush1.bf16.msra.mxu0 %v1195
        %2876 = vmatprep.subr.bf16.mxu0 %v1200
        %2877 = vmatpush1.bf16.msra.mxu0 %v1199
        %2878 = vmatprep.subr.bf16.mxu0 %v1204
        %2879 = vmatpush1.bf16.msra.mxu0 %v1203
        %2880 = vmatprep.subr.bf16.mxu0 %v1208
        %2881 = vmatpush1.bf16.msra.mxu0 %v1207
        %2882 = vmatprep.subr.bf16.mxu0 %v1212
        %2883 = vmatpush1.bf16.msra.mxu0 %v1211
        %2884 = vmatprep.subr.bf16.mxu0 %v1216
        %2885 = vmatpush1.bf16.msra.mxu0 %v1215
        %2886 = vmatprep.subr.bf16.mxu0 %v1220
        %2887 = vmatpush1.bf16.msra.mxu0 %v1219
        %2888 = vmatprep.subr.bf16.mxu0 %v1224
        %2889 = vmatpush1.bf16.msra.mxu0 %v1223
        %2890 = vmatprep.subr.bf16.mxu0 %v1228
        %2891 = vmatpush1.bf16.msra.mxu0 %v1227
        %2892 = vmatprep.mubr.bf16.mxu0 %v2767
        %2893 = vmatmul.mubr.bf16.gmra.mrb[0].mxu0 %v2766
        %v2894 = vpop.f32.mrb[0].mxu0
        %v2895 = vadd.f32 0.0, %v2894
        %v2896 = vpop.f32.mrb[0].mxu0
        %v2897 = vadd.f32 0.0, %v2896
        %v2898 = vpop.f32.mrb[0].mxu0
        %v2899 = vpop.f32.mrb[0].mxu0
        %2900 = vdwg.mxu0
        %2901 = vmatprep.subr.bf16.mxu0 %v1232
        %2902 = vmatpush1.bf16.msra.mxu0 %v1231
        %2903 = vmatprep.subr.bf16.mxu0 %v1236
        %2904 = vmatpush1.bf16.msra.mxu0 %v1235
        %2905 = vmatprep.subr.bf16.mxu0 %v1240
        %2906 = vmatpush1.bf16.msra.mxu0 %v1239
        %2907 = vmatprep.subr.bf16.mxu0 %v1244
        %2908 = vmatpush1.bf16.msra.mxu0 %v1243
        %2909 = vmatprep.subr.bf16.mxu0 %v1248
        %2910 = vmatpush1.bf16.msra.mxu0 %v1247
        %2911 = vmatprep.subr.bf16.mxu0 %v1252
        %2912 = vmatpush1.bf16.msra.mxu0 %v1251
        %2913 = vmatprep.subr.bf16.mxu0 %v1256
        %2914 = vmatpush1.bf16.msra.mxu0 %v1255
        %2915 = vmatprep.subr.bf16.mxu0 %v1260
        %2916 = vmatpush1.bf16.msra.mxu0 %v1259
        %2917 = vmatprep.subr.bf16.mxu0 %v1264
        %2918 = vmatpush1.bf16.msra.mxu0 %v1263
        %2919 = vmatprep.subr.bf16.mxu0 %v1268
        %2920 = vmatpush1.bf16.msra.mxu0 %v1267
        %2921 = vmatprep.subr.bf16.mxu0 %v1272
        %2922 = vmatpush1.bf16.msra.mxu0 %v1271
        %2923 = vmatprep.subr.bf16.mxu0 %v1276
        %2924 = vmatpush1.bf16.msra.mxu0 %v1275
        %2925 = vmatprep.subr.bf16.mxu0 %v1280
        %2926 = vmatpush1.bf16.msra.mxu0 %v1279
        %2927 = vmatprep.subr.bf16.mxu0 %v1284
        %2928 = vmatpush1.bf16.msra.mxu0 %v1283
        %2929 = vmatprep.subr.bf16.mxu0 %v1288
        %2930 = vmatpush1.bf16.msra.mxu0 %v1287
        %2931 = vmatprep.subr.bf16.mxu0 %v1292
        %2932 = vmatpush1.bf16.msra.mxu0 %v1291
        %2933 = vmatprep.mubr.bf16.mxu0 %v2769
        %2934 = vmatmul.mubr.bf16.gmra.mrb[0].mxu0 %v2768
        %v2935 = vpop.f32.mrb[0].mxu0
        %v2936 = vadd.f32 %v2895, %v2935
        %v2937 = vpop.f32.mrb[0].mxu0
        %v2938 = vadd.f32 %v2897, %v2937
        %v2939 = vpop.f32.mrb[0].mxu0
        %v2940 = vpop.f32.mrb[0].mxu0
        %2941 = vdwg.mxu0
        %2942 = vmatprep.subr.bf16.mxu0 %v1296
        %2943 = vmatpush1.bf16.msra.mxu0 %v1295
        %2944 = vmatprep.subr.bf16.mxu0 %v1300
        %2945 = vmatpush1.bf16.msra.mxu0 %v1299
        %2946 = vmatprep.subr.bf16.mxu0 %v1304
        %2947 = vmatpush1.bf16.msra.mxu0 %v1303
        %2948 = vmatprep.subr.bf16.mxu0 %v1308
        %2949 = vmatpush1.bf16.msra.mxu0 %v1307
        %2950 = vmatprep.subr.bf16.mxu0 %v1312
        %2951 = vmatpush1.bf16.msra.mxu0 %v1311
        %2952 = vmatprep.subr.bf16.mxu0 %v1316
        %2953 = vmatpush1.bf16.msra.mxu0 %v1315
        %2954 = vmatprep.subr.bf16.mxu0 %v1320
        %2955 = vmatpush1.bf16.msra.mxu0 %v1319
        %2956 = vmatprep.subr.bf16.mxu0 %v1324
        %2957 = vmatpush1.bf16.msra.mxu0 %v1323
        %2958 = vmatprep.subr.bf16.mxu0 %v1328
        %2959 = vmatpush1.bf16.msra.mxu0 %v1327
        %2960 = vmatprep.subr.bf16.mxu0 %v1332
        %2961 = vmatpush1.bf16.msra.mxu0 %v1331
        %2962 = vmatprep.subr.bf16.mxu0 %v1336
        %2963 = vmatpush1.bf16.msra.mxu0 %v1335
        %2964 = vmatprep.subr.bf16.mxu0 %v1340
        %2965 = vmatpush1.bf16.msra.mxu0 %v1339
        %2966 = vmatprep.subr.bf16.mxu0 %v1344
        %2967 = vmatpush1.bf16.msra.mxu0 %v1343
        %2968 = vmatprep.subr.bf16.mxu0 %v1348
        %2969 = vmatpush1.bf16.msra.mxu0 %v1347
        %2970 = vmatprep.subr.bf16.mxu0 %v1352
        %2971 = vmatpush1.bf16.msra.mxu0 %v1351
        %2972 = vmatprep.subr.bf16.mxu0 %v1356
        %2973 = vmatpush1.bf16.msra.mxu0 %v1355
        %2974 = vmatprep.mubr.bf16.mxu0 %v2771
        %2975 = vmatmul.mubr.bf16.gmra.mrb[0].mxu0 %v2770
        %v2976 = vpop.f32.mrb[0].mxu0
        %v2977 = vadd.f32 %v2936, %v2976
        %v2978 = vpop.f32.mrb[0].mxu0
        %v2979 = vadd.f32 %v2938, %v2978
        %v2980 = vpop.f32.mrb[0].mxu0
        %v2981 = vpop.f32.mrb[0].mxu0
        %2982 = vdwg.mxu0
        %2983 = vmatprep.subr.bf16.mxu0 %v1360
        %2984 = vmatpush1.bf16.msra.mxu0 %v1359
        %2985 = vmatprep.subr.bf16.mxu0 %v1364
        %2986 = vmatpush1.bf16.msra.mxu0 %v1363
        %2987 = vmatprep.subr.bf16.mxu0 %v1368
        %2988 = vmatpush1.bf16.msra.mxu0 %v1367
        %2989 = vmatprep.subr.bf16.mxu0 %v1372
        %2990 = vmatpush1.bf16.msra.mxu0 %v1371
        %2991 = vmatprep.subr.bf16.mxu0 %v1376
        %2992 = vmatpush1.bf16.msra.mxu0 %v1375
        %2993 = vmatprep.subr.bf16.mxu0 %v1380
        %2994 = vmatpush1.bf16.msra.mxu0 %v1379
        %2995 = vmatprep.subr.bf16.mxu0 %v1384
        %2996 = vmatpush1.bf16.msra.mxu0 %v1383
        %2997 = vmatprep.subr.bf16.mxu0 %v1388
        %2998 = vmatpush1.bf16.msra.mxu0 %v1387
        %2999 = vmatprep.subr.bf16.mxu0 %v1392
        %3000 = vmatpush1.bf16.msra.mxu0 %v1391
        %3001 = vmatprep.subr.bf16.mxu0 %v1396
        %3002 = vmatpush1.bf16.msra.mxu0 %v1395
        %3003 = vmatprep.subr.bf16.mxu0 %v1400
        %3004 = vmatpush1.bf16.msra.mxu0 %v1399
        %3005 = vmatprep.subr.bf16.mxu0 %v1404
        %3006 = vmatpush1.bf16.msra.mxu0 %v1403
        %3007 = vmatprep.subr.bf16.mxu0 %v1408
        %3008 = vmatpush1.bf16.msra.mxu0 %v1407
        %3009 = vmatprep.subr.bf16.mxu0 %v1412
        %3010 = vmatpush1.bf16.msra.mxu0 %v1411
        %3011 = vmatprep.subr.bf16.mxu0 %v1416
        %3012 = vmatpush1.bf16.msra.mxu0 %v1415
        %3013 = vmatprep.subr.bf16.mxu0 %v1420
        %3014 = vmatpush1.bf16.msra.mxu0 %v1419
        %3015 = vmatprep.mubr.bf16.mxu0 %v2773
        %3016 = vmatmul.mubr.bf16.gmra.mrb[0].mxu0 %v2772
        %v3017 = vpop.f32.mrb[0].mxu0
        %v3018 = vadd.f32 %v2977, %v3017
        %v3019 = vpop.f32.mrb[0].mxu0
        %v3020 = vadd.f32 %v2979, %v3019
        %v3021 = vpop.f32.mrb[0].mxu0
        %v3022 = vpop.f32.mrb[0].mxu0
        %3023 = vdwg.mxu0
        %3024 = vmatprep.subr.bf16.mxu0 %v1424
        %3025 = vmatpush1.bf16.msra.mxu0 %v1423
        %3026 = vmatprep.subr.bf16.mxu0 %v1428
        %3027 = vmatpush1.bf16.msra.mxu0 %v1427
        %3028 = vmatprep.subr.bf16.mxu0 %v1432
        %3029 = vmatpush1.bf16.msra.mxu0 %v1431
        %3030 = vmatprep.subr.bf16.mxu0 %v1436
        %3031 = vmatpush1.bf16.msra.mxu0 %v1435
        %3032 = vmatprep.subr.bf16.mxu0 %v1440
        %3033 = vmatpush1.bf16.msra.mxu0 %v1439
        %3034 = vmatprep.subr.bf16.mxu0 %v1444
        %3035 = vmatpush1.bf16.msra.mxu0 %v1443
        %3036 = vmatprep.subr.bf16.mxu0 %v1448
        %3037 = vmatpush1.bf16.msra.mxu0 %v1447
        %3038 = vmatprep.subr.bf16.mxu0 %v1452
        %3039 = vmatpush1.bf16.msra.mxu0 %v1451
        %3040 = vmatprep.subr.bf16.mxu0 %v1456
        %3041 = vmatpush1.bf16.msra.mxu0 %v1455
        %3042 = vmatprep.subr.bf16.mxu0 %v1460
        %3043 = vmatpush1.bf16.msra.mxu0 %v1459
        %3044 = vmatprep.subr.bf16.mxu0 %v1464
        %3045 = vmatpush1.bf16.msra.mxu0 %v1463
        %3046 = vmatprep.subr.bf16.mxu0 %v1468
        %3047 = vmatpush1.bf16.msra.mxu0 %v1467
        %3048 = vmatprep.subr.bf16.mxu0 %v1472
        %3049 = vmatpush1.bf16.msra.mxu0 %v1471
        %3050 = vmatprep.subr.bf16.mxu0 %v1476
        %3051 = vmatpush1.bf16.msra.mxu0 %v1475
        %3052 = vmatprep.subr.bf16.mxu0 %v1480
        %3053 = vmatpush1.bf16.msra.mxu0 %v1479
        %3054 = vmatprep.subr.bf16.mxu0 %v1484
        %3055 = vmatpush1.bf16.msra.mxu0 %v1483
        %3056 = vmatprep.mubr.bf16.mxu0 %v2775
        %3057 = vmatmul.mubr.bf16.gmra.mrb[0].mxu0 %v2774
        %v3058 = vpop.f32.mrb[0].mxu0
        %v3059 = vadd.f32 %v3018, %v3058
        %v3060 = vpop.f32.mrb[0].mxu0
        %v3061 = vadd.f32 %v3020, %v3060
        %v3062 = vpop.f32.mrb[0].mxu0
        %v3063 = vpop.f32.mrb[0].mxu0
        %3064 = vdwg.mxu0
        %3065 = vmatprep.subr.bf16.mxu0 %v1488
        %3066 = vmatpush1.bf16.msra.mxu0 %v1487
        %3067 = vmatprep.subr.bf16.mxu0 %v1492
        %3068 = vmatpush1.bf16.msra.mxu0 %v1491
        %3069 = vmatprep.subr.bf16.mxu0 %v1496
        %3070 = vmatpush1.bf16.msra.mxu0 %v1495
        %3071 = vmatprep.subr.bf16.mxu0 %v1500
        %3072 = vmatpush1.bf16.msra.mxu0 %v1499
        %3073 = vmatprep.subr.bf16.mxu0 %v1504
        %3074 = vmatpush1.bf16.msra.mxu0 %v1503
        %3075 = vmatprep.subr.bf16.mxu0 %v1508
        %3076 = vmatpush1.bf16.msra.mxu0 %v1507
        %3077 = vmatprep.subr.bf16.mxu0 %v1512
        %3078 = vmatpush1.bf16.msra.mxu0 %v1511
        %3079 = vmatprep.subr.bf16.mxu0 %v1516
        %3080 = vmatpush1.bf16.msra.mxu0 %v1515
        %3081 = vmatprep.subr.bf16.mxu0 %v1520
        %3082 = vmatpush1.bf16.msra.mxu0 %v1519
        %3083 = vmatprep.subr.bf16.mxu0 %v1524
        %3084 = vmatpush1.bf16.msra.mxu0 %v1523
        %3085 = vmatprep.subr.bf16.mxu0 %v1528
        %3086 = vmatpush1.bf16.msra.mxu0 %v1527
        %3087 = vmatprep.subr.bf16.mxu0 %v1532
        %3088 = vmatpush1.bf16.msra.mxu0 %v1531
        %3089 = vmatprep.subr.bf16.mxu0 %v1536
        %3090 = vmatpush1.bf16.msra.mxu0 %v1535
        %3091 = vmatprep.subr.bf16.mxu0 %v1540
        %3092 = vmatpush1.bf16.msra.mxu0 %v1539
        %3093 = vmatprep.subr.bf16.mxu0 %v1544
        %3094 = vmatpush1.bf16.msra.mxu0 %v1543
        %3095 = vmatprep.subr.bf16.mxu0 %v1548
        %3096 = vmatpush1.bf16.msra.mxu0 %v1547
        %3097 = vmatprep.mubr.bf16.mxu0 %v2777
        %3098 = vmatmul.mubr.bf16.gmra.mrb[0].mxu0 %v2776
        %v3099 = vpop.f32.mrb[0].mxu0
        %v3100 = vadd.f32 %v3059, %v3099
        %v3101 = vpop.f32.mrb[0].mxu0
        %v3102 = vadd.f32 %v3061, %v3101
        %v3103 = vpop.f32.mrb[0].mxu0
        %v3104 = vpop.f32.mrb[0].mxu0
        %3105 = vdwg.mxu0
        %3106 = vmatprep.subr.bf16.mxu0 %v1552
        %3107 = vmatpush1.bf16.msra.mxu0 %v1551
        %3108 = vmatprep.subr.bf16.mxu0 %v1556
        %3109 = vmatpush1.bf16.msra.mxu0 %v1555
        %3110 = vmatprep.subr.bf16.mxu0 %v1560
        %3111 = vmatpush1.bf16.msra.mxu0 %v1559
        %3112 = vmatprep.subr.bf16.mxu0 %v1564
        %3113 = vmatpush1.bf16.msra.mxu0 %v1563
        %3114 = vmatprep.subr.bf16.mxu0 %v1568
        %3115 = vmatpush1.bf16.msra.mxu0 %v1567
        %3116 = vmatprep.subr.bf16.mxu0 %v1572
        %3117 = vmatpush1.bf16.msra.mxu0 %v1571
        %3118 = vmatprep.subr.bf16.mxu0 %v1576
        %3119 = vmatpush1.bf16.msra.mxu0 %v1575
        %3120 = vmatprep.subr.bf16.mxu0 %v1580
        %3121 = vmatpush1.bf16.msra.mxu0 %v1579
        %3122 = vmatprep.subr.bf16.mxu0 %v1584
        %3123 = vmatpush1.bf16.msra.mxu0 %v1583
        %3124 = vmatprep.subr.bf16.mxu0 %v1588
        %3125 = vmatpush1.bf16.msra.mxu0 %v1587
        %3126 = vmatprep.subr.bf16.mxu0 %v1592
        %3127 = vmatpush1.bf16.msra.mxu0 %v1591
        %3128 = vmatprep.subr.bf16.mxu0 %v1596
        %3129 = vmatpush1.bf16.msra.mxu0 %v1595
        %3130 = vmatprep.subr.bf16.mxu0 %v1600
        %3131 = vmatpush1.bf16.msra.mxu0 %v1599
        %3132 = vmatprep.subr.bf16.mxu0 %v1604
        %3133 = vmatpush1.bf16.msra.mxu0 %v1603
        %3134 = vmatprep.subr.bf16.mxu0 %v1608
        %3135 = vmatpush1.bf16.msra.mxu0 %v1607
        %3136 = vmatprep.subr.bf16.mxu0 %v1612
        %3137 = vmatpush1.bf16.msra.mxu0 %v1611
        %3138 = vmatprep.mubr.bf16.mxu0 %v2779
        %3139 = vmatmul.mubr.bf16.gmra.mrb[0].mxu0 %v2778
        %v3140 = vpop.f32.mrb[0].mxu0
        %v3141 = vadd.f32 %v3100, %v3140
        %v3142 = vpop.f32.mrb[0].mxu0
        %v3143 = vadd.f32 %v3102, %v3142
        %v3144 = vpop.f32.mrb[0].mxu0
        %v3145 = vpop.f32.mrb[0].mxu0
        %3146 = vdwg.mxu0
        %3147 = vmatprep.subr.bf16.mxu0 %v1616
        %3148 = vmatpush1.bf16.msra.mxu0 %v1615
        %3149 = vmatprep.subr.bf16.mxu0 %v1620
        %3150 = vmatpush1.bf16.msra.mxu0 %v1619
        %3151 = vmatprep.subr.bf16.mxu0 %v1624
        %3152 = vmatpush1.bf16.msra.mxu0 %v1623
        %3153 = vmatprep.subr.bf16.mxu0 %v1628
        %3154 = vmatpush1.bf16.msra.mxu0 %v1627
        %3155 = vmatprep.subr.bf16.mxu0 %v1632
        %3156 = vmatpush1.bf16.msra.mxu0 %v1631
        %3157 = vmatprep.subr.bf16.mxu0 %v1636
        %3158 = vmatpush1.bf16.msra.mxu0 %v1635
        %3159 = vmatprep.subr.bf16.mxu0 %v1640
        %3160 = vmatpush1.bf16.msra.mxu0 %v1639
        %3161 = vmatprep.subr.bf16.mxu0 %v1644
        %3162 = vmatpush1.bf16.msra.mxu0 %v1643
        %3163 = vmatprep.subr.bf16.mxu0 %v1648
        %3164 = vmatpush1.bf16.msra.mxu0 %v1647
        %3165 = vmatprep.subr.bf16.mxu0 %v1652
        %3166 = vmatpush1.bf16.msra.mxu0 %v1651
        %3167 = vmatprep.subr.bf16.mxu0 %v1656
        %3168 = vmatpush1.bf16.msra.mxu0 %v1655
        %3169 = vmatprep.subr.bf16.mxu0 %v1660
        %3170 = vmatpush1.bf16.msra.mxu0 %v1659
        %3171 = vmatprep.subr.bf16.mxu0 %v1664
        %3172 = vmatpush1.bf16.msra.mxu0 %v1663
        %3173 = vmatprep.subr.bf16.mxu0 %v1668
        %3174 = vmatpush1.bf16.msra.mxu0 %v1667
        %3175 = vmatprep.subr.bf16.mxu0 %v1672
        %3176 = vmatpush1.bf16.msra.mxu0 %v1671
        %3177 = vmatprep.subr.bf16.mxu0 %v1676
        %3178 = vmatpush1.bf16.msra.mxu0 %v1675
        %3179 = vmatprep.mubr.bf16.mxu0 %v2781
        %3180 = vmatmul.mubr.bf16.gmra.mrb[0].mxu0 %v2780
        %v3181 = vpop.f32.mrb[0].mxu0
        %v3182 = vadd.f32 %v3141, %v3181
        %v3183 = vpop.f32.mrb[0].mxu0
        %v3184 = vadd.f32 %v3143, %v3183
        %v3185 = vpop.f32.mrb[0].mxu0
        %v3186 = vpop.f32.mrb[0].mxu0
        %3187 = vdwg.mxu0
        %3188 = vmatprep.subr.bf16.mxu0 %v1680
        %3189 = vmatpush1.bf16.msra.mxu0 %v1679
        %3190 = vmatprep.subr.bf16.mxu0 %v1684
        %3191 = vmatpush1.bf16.msra.mxu0 %v1683
        %3192 = vmatprep.subr.bf16.mxu0 %v1688
        %3193 = vmatpush1.bf16.msra.mxu0 %v1687
        %3194 = vmatprep.subr.bf16.mxu0 %v1692
        %3195 = vmatpush1.bf16.msra.mxu0 %v1691
        %3196 = vmatprep.subr.bf16.mxu0 %v1696
        %3197 = vmatpush1.bf16.msra.mxu0 %v1695
        %3198 = vmatprep.subr.bf16.mxu0 %v1700
        %3199 = vmatpush1.bf16.msra.mxu0 %v1699
        %3200 = vmatprep.subr.bf16.mxu0 %v1704
        %3201 = vmatpush1.bf16.msra.mxu0 %v1703
        %3202 = vmatprep.subr.bf16.mxu0 %v1708
        %3203 = vmatpush1.bf16.msra.mxu0 %v1707
        %3204 = vmatprep.subr.bf16.mxu0 %v1712
        %3205 = vmatpush1.bf16.msra.mxu0 %v1711
        %3206 = vmatprep.subr.bf16.mxu0 %v1716
        %3207 = vmatpush1.bf16.msra.mxu0 %v1715
        %3208 = vmatprep.subr.bf16.mxu0 %v1720
        %3209 = vmatpush1.bf16.msra.mxu0 %v1719
        %3210 = vmatprep.subr.bf16.mxu0 %v1724
        %3211 = vmatpush1.bf16.msra.mxu0 %v1723
        %3212 = vmatprep.subr.bf16.mxu0 %v1728
        %3213 = vmatpush1.bf16.msra.mxu0 %v1727
        %3214 = vmatprep.subr.bf16.mxu0 %v1732
        %3215 = vmatpush1.bf16.msra.mxu0 %v1731
        %3216 = vmatprep.subr.bf16.mxu0 %v1736
        %3217 = vmatpush1.bf16.msra.mxu0 %v1735
        %3218 = vmatprep.subr.bf16.mxu0 %v1740
        %3219 = vmatpush1.bf16.msra.mxu0 %v1739
        %3220 = vmatprep.mubr.bf16.mxu0 %v2783
        %3221 = vmatmul.mubr.bf16.gmra.mrb[0].mxu0 %v2782
        %v3222 = vpop.f32.mrb[0].mxu0
        %v3223 = vadd.f32 %v3182, %v3222
        %v3224 = vpop.f32.mrb[0].mxu0
        %v3225 = vadd.f32 %v3184, %v3224
        %v3226 = vpop.f32.mrb[0].mxu0
        %v3227 = vpop.f32.mrb[0].mxu0
        %3228 = vdwg.mxu0
        %3229 = vmatprep.subr.bf16.mxu0 %v1744
        %3230 = vmatpush1.bf16.msra.mxu0 %v1743
        %3231 = vmatprep.subr.bf16.mxu0 %v1748
        %3232 = vmatpush1.bf16.msra.mxu0 %v1747
        %3233 = vmatprep.subr.bf16.mxu0 %v1752
        %3234 = vmatpush1.bf16.msra.mxu0 %v1751
        %3235 = vmatprep.subr.bf16.mxu0 %v1756
        %3236 = vmatpush1.bf16.msra.mxu0 %v1755
        %3237 = vmatprep.subr.bf16.mxu0 %v1760
        %3238 = vmatpush1.bf16.msra.mxu0 %v1759
        %3239 = vmatprep.subr.bf16.mxu0 %v1764
        %3240 = vmatpush1.bf16.msra.mxu0 %v1763
        %3241 = vmatprep.subr.bf16.mxu0 %v1768
        %3242 = vmatpush1.bf16.msra.mxu0 %v1767
        %3243 = vmatprep.subr.bf16.mxu0 %v1772
        %3244 = vmatpush1.bf16.msra.mxu0 %v1771
        %3245 = vmatprep.subr.bf16.mxu0 %v1776
        %3246 = vmatpush1.bf16.msra.mxu0 %v1775
        %3247 = vmatprep.subr.bf16.mxu0 %v1780
        %3248 = vmatpush1.bf16.msra.mxu0 %v1779
        %3249 = vmatprep.subr.bf16.mxu0 %v1784
        %3250 = vmatpush1.bf16.msra.mxu0 %v1783
        %3251 = vmatprep.subr.bf16.mxu0 %v1788
        %3252 = vmatpush1.bf16.msra.mxu0 %v1787
        %3253 = vmatprep.subr.bf16.mxu0 %v1792
        %3254 = vmatpush1.bf16.msra.mxu0 %v1791
        %3255 = vmatprep.subr.bf16.mxu0 %v1796
        %3256 = vmatpush1.bf16.msra.mxu0 %v1795
        %3257 = vmatprep.subr.bf16.mxu0 %v1800
        %3258 = vmatpush1.bf16.msra.mxu0 %v1799
        %3259 = vmatprep.subr.bf16.mxu0 %v1804
        %3260 = vmatpush1.bf16.msra.mxu0 %v1803
        %3261 = vmatprep.mubr.bf16.mxu0 %v2785
        %3262 = vmatmul.mubr.bf16.gmra.mrb[0].mxu0 %v2784
        %v3263 = vpop.f32.mrb[0].mxu0
        %v3264 = vadd.f32 %v3223, %v3263
        %v3265 = vpop.f32.mrb[0].mxu0
        %v3266 = vadd.f32 %v3225, %v3265
        %v3267 = vpop.f32.mrb[0].mxu0
        %v3268 = vpop.f32.mrb[0].mxu0
        %3269 = vdwg.mxu0
        %3270 = vmatprep.subr.bf16.mxu0 %v1808
        %3271 = vmatpush1.bf16.msra.mxu0 %v1807
        %3272 = vmatprep.subr.bf16.mxu0 %v1812
        %3273 = vmatpush1.bf16.msra.mxu0 %v1811
        %3274 = vmatprep.subr.bf16.mxu0 %v1816
        %3275 = vmatpush1.bf16.msra.mxu0 %v1815
        %3276 = vmatprep.subr.bf16.mxu0 %v1820
        %3277 = vmatpush1.bf16.msra.mxu0 %v1819
        %3278 = vmatprep.subr.bf16.mxu0 %v1824
        %3279 = vmatpush1.bf16.msra.mxu0 %v1823
        %3280 = vmatprep.subr.bf16.mxu0 %v1828
        %3281 = vmatpush1.bf16.msra.mxu0 %v1827
        %3282 = vmatprep.subr.bf16.mxu0 %v1832
        %3283 = vmatpush1.bf16.msra.mxu0 %v1831
        %3284 = vmatprep.subr.bf16.mxu0 %v1836
        %3285 = vmatpush1.bf16.msra.mxu0 %v1835
        %3286 = vmatprep.subr.bf16.mxu0 %v1840
        %3287 = vmatpush1.bf16.msra.mxu0 %v1839
        %3288 = vmatprep.subr.bf16.mxu0 %v1844
        %3289 = vmatpush1.bf16.msra.mxu0 %v1843
        %3290 = vmatprep.subr.bf16.mxu0 %v1848
        %3291 = vmatpush1.bf16.msra.mxu0 %v1847
        %3292 = vmatprep.subr.bf16.mxu0 %v1852
        %3293 = vmatpush1.bf16.msra.mxu0 %v1851
        %3294 = vmatprep.subr.bf16.mxu0 %v1856
        %3295 = vmatpush1.bf16.msra.mxu0 %v1855
        %3296 = vmatprep.subr.bf16.mxu0 %v1860
        %3297 = vmatpush1.bf16.msra.mxu0 %v1859
        %3298 = vmatprep.subr.bf16.mxu0 %v1864
        %3299 = vmatpush1.bf16.msra.mxu0 %v1863
        %3300 = vmatprep.subr.bf16.mxu0 %v1868
        %3301 = vmatpush1.bf16.msra.mxu0 %v1867
        %3302 = vmatprep.mubr.bf16.mxu0 %v2787
        %3303 = vmatmul.mubr.bf16.gmra.mrb[0].mxu0 %v2786
        %v3304 = vpop.f32.mrb[0].mxu0
        %v3305 = vadd.f32 %v3264, %v3304
        %v3306 = vpop.f32.mrb[0].mxu0
        %v3307 = vadd.f32 %v3266, %v3306
        %v3308 = vpop.f32.mrb[0].mxu0
        %v3309 = vpop.f32.mrb[0].mxu0
        %3310 = vdwg.mxu0
        %3311 = vmatprep.subr.bf16.mxu0 %v1872
        %3312 = vmatpush1.bf16.msra.mxu0 %v1871
        %3313 = vmatprep.subr.bf16.mxu0 %v1876
        %3314 = vmatpush1.bf16.msra.mxu0 %v1875
        %3315 = vmatprep.subr.bf16.mxu0 %v1880
        %3316 = vmatpush1.bf16.msra.mxu0 %v1879
        %3317 = vmatprep.subr.bf16.mxu0 %v1884
        %3318 = vmatpush1.bf16.msra.mxu0 %v1883
        %3319 = vmatprep.subr.bf16.mxu0 %v1888
        %3320 = vmatpush1.bf16.msra.mxu0 %v1887
        %3321 = vmatprep.subr.bf16.mxu0 %v1892
        %3322 = vmatpush1.bf16.msra.mxu0 %v1891
        %3323 = vmatprep.subr.bf16.mxu0 %v1896
        %3324 = vmatpush1.bf16.msra.mxu0 %v1895
        %3325 = vmatprep.subr.bf16.mxu0 %v1900
        %3326 = vmatpush1.bf16.msra.mxu0 %v1899
        %3327 = vmatprep.subr.bf16.mxu0 %v1904
        %3328 = vmatpush1.bf16.msra.mxu0 %v1903
        %3329 = vmatprep.subr.bf16.mxu0 %v1908
        %3330 = vmatpush1.bf16.msra.mxu0 %v1907
        %3331 = vmatprep.subr.bf16.mxu0 %v1912
        %3332 = vmatpush1.bf16.msra.mxu0 %v1911
        %3333 = vmatprep.subr.bf16.mxu0 %v1916
        %3334 = vmatpush1.bf16.msra.mxu0 %v1915
        %3335 = vmatprep.subr.bf16.mxu0 %v1920
        %3336 = vmatpush1.bf16.msra.mxu0 %v1919
        %3337 = vmatprep.subr.bf16.mxu0 %v1924
        %3338 = vmatpush1.bf16.msra.mxu0 %v1923
        %3339 = vmatprep.subr.bf16.mxu0 %v1928
        %3340 = vmatpush1.bf16.msra.mxu0 %v1927
        %3341 = vmatprep.subr.bf16.mxu0 %v1932
        %3342 = vmatpush1.bf16.msra.mxu0 %v1931
        %3343 = vmatprep.mubr.bf16.mxu0 %v2789
        %3344 = vmatmul.mubr.bf16.gmra.mrb[0].mxu0 %v2788
        %v3345 = vpop.f32.mrb[0].mxu0
        %v3346 = vadd.f32 %v3305, %v3345
        %v3347 = vpop.f32.mrb[0].mxu0
        %v3348 = vadd.f32 %v3307, %v3347
        %v3349 = vpop.f32.mrb[0].mxu0
        %v3350 = vpop.f32.mrb[0].mxu0
        %3351 = vdwg.mxu0
        %3352 = vmatprep.subr.bf16.mxu0 %v1936
        %3353 = vmatpush1.bf16.msra.mxu0 %v1935
        %3354 = vmatprep.subr.bf16.mxu0 %v1940
        %3355 = vmatpush1.bf16.msra.mxu0 %v1939
        %3356 = vmatprep.subr.bf16.mxu0 %v1944
        %3357 = vmatpush1.bf16.msra.mxu0 %v1943
        %3358 = vmatprep.subr.bf16.mxu0 %v1948
        %3359 = vmatpush1.bf16.msra.mxu0 %v1947
        %3360 = vmatprep.subr.bf16.mxu0 %v1952
        %3361 = vmatpush1.bf16.msra.mxu0 %v1951
        %3362 = vmatprep.subr.bf16.mxu0 %v1956
        %3363 = vmatpush1.bf16.msra.mxu0 %v1955
        %3364 = vmatprep.subr.bf16.mxu0 %v1960
        %3365 = vmatpush1.bf16.msra.mxu0 %v1959
        %3366 = vmatprep.subr.bf16.mxu0 %v1964
        %3367 = vmatpush1.bf16.msra.mxu0 %v1963
        %3368 = vmatprep.subr.bf16.mxu0 %v1968
        %3369 = vmatpush1.bf16.msra.mxu0 %v1967
        %3370 = vmatprep.subr.bf16.mxu0 %v1972
        %3371 = vmatpush1.bf16.msra.mxu0 %v1971
        %3372 = vmatprep.subr.bf16.mxu0 %v1976
        %3373 = vmatpush1.bf16.msra.mxu0 %v1975
        %3374 = vmatprep.subr.bf16.mxu0 %v1980
        %3375 = vmatpush1.bf16.msra.mxu0 %v1979
        %3376 = vmatprep.subr.bf16.mxu0 %v1984
        %3377 = vmatpush1.bf16.msra.mxu0 %v1983
        %3378 = vmatprep.subr.bf16.mxu0 %v1988
        %3379 = vmatpush1.bf16.msra.mxu0 %v1987
        %3380 = vmatprep.subr.bf16.mxu0 %v1992
        %3381 = vmatpush1.bf16.msra.mxu0 %v1991
        %3382 = vmatprep.subr.bf16.mxu0 %v1996
        %3383 = vmatpush1.bf16.msra.mxu0 %v1995
        %3384 = vmatprep.mubr.bf16.mxu0 %v2791
        %3385 = vmatmul.mubr.bf16.gmra.mrb[0].mxu0 %v2790
        %v3386 = vpop.f32.mrb[0].mxu0
        %v3387 = vadd.f32 %v3346, %v3386
        %v3388 = vpop.f32.mrb[0].mxu0
        %v3389 = vadd.f32 %v3348, %v3388
        %v3390 = vpop.f32.mrb[0].mxu0
        %v3391 = vpop.f32.mrb[0].mxu0
        %3392 = vdwg.mxu0
        %3393 = vmatprep.subr.bf16.mxu0 %v2000
        %3394 = vmatpush1.bf16.msra.mxu0 %v1999
        %3395 = vmatprep.subr.bf16.mxu0 %v2004
        %3396 = vmatpush1.bf16.msra.mxu0 %v2003
        %3397 = vmatprep.subr.bf16.mxu0 %v2008
        %3398 = vmatpush1.bf16.msra.mxu0 %v2007
        %3399 = vmatprep.subr.bf16.mxu0 %v2012
        %3400 = vmatpush1.bf16.msra.mxu0 %v2011
        %3401 = vmatprep.subr.bf16.mxu0 %v2016
        %3402 = vmatpush1.bf16.msra.mxu0 %v2015
        %3403 = vmatprep.subr.bf16.mxu0 %v2020
        %3404 = vmatpush1.bf16.msra.mxu0 %v2019
        %3405 = vmatprep.subr.bf16.mxu0 %v2024
        %3406 = vmatpush1.bf16.msra.mxu0 %v2023
        %3407 = vmatprep.subr.bf16.mxu0 %v2028
        %3408 = vmatpush1.bf16.msra.mxu0 %v2027
        %3409 = vmatprep.subr.bf16.mxu0 %v2032
        %3410 = vmatpush1.bf16.msra.mxu0 %v2031
        %3411 = vmatprep.subr.bf16.mxu0 %v2036
        %3412 = vmatpush1.bf16.msra.mxu0 %v2035
        %3413 = vmatprep.subr.bf16.mxu0 %v2040
        %3414 = vmatpush1.bf16.msra.mxu0 %v2039
        %3415 = vmatprep.subr.bf16.mxu0 %v2044
        %3416 = vmatpush1.bf16.msra.mxu0 %v2043
        %3417 = vmatprep.subr.bf16.mxu0 %v2048
        %3418 = vmatpush1.bf16.msra.mxu0 %v2047
        %3419 = vmatprep.subr.bf16.mxu0 %v2052
        %3420 = vmatpush1.bf16.msra.mxu0 %v2051
        %3421 = vmatprep.subr.bf16.mxu0 %v2056
        %3422 = vmatpush1.bf16.msra.mxu0 %v2055
        %3423 = vmatprep.subr.bf16.mxu0 %v2060
        %3424 = vmatpush1.bf16.msra.mxu0 %v2059
        %3425 = vmatprep.mubr.bf16.mxu0 %v2793
        %3426 = vmatmul.mubr.bf16.gmra.mrb[0].mxu0 %v2792
        %v3427 = vpop.f32.mrb[0].mxu0
        %v3428 = vadd.f32 %v3387, %v3427
        %v3429 = vpop.f32.mrb[0].mxu0
        %v3430 = vadd.f32 %v3389, %v3429
        %v3431 = vpop.f32.mrb[0].mxu0
        %v3432 = vpop.f32.mrb[0].mxu0
        %3433 = vdwg.mxu0
        %3434 = vmatprep.subr.bf16.mxu0 %v2064
        %3435 = vmatpush1.bf16.msra.mxu0 %v2063
        %3436 = vmatprep.subr.bf16.mxu0 %v2068
        %3437 = vmatpush1.bf16.msra.mxu0 %v2067
        %3438 = vmatprep.subr.bf16.mxu0 %v2072
        %3439 = vmatpush1.bf16.msra.mxu0 %v2071
        %3440 = vmatprep.subr.bf16.mxu0 %v2076
        %3441 = vmatpush1.bf16.msra.mxu0 %v2075
        %3442 = vmatprep.subr.bf16.mxu0 %v2080
        %3443 = vmatpush1.bf16.msra.mxu0 %v2079
        %3444 = vmatprep.subr.bf16.mxu0 %v2084
        %3445 = vmatpush1.bf16.msra.mxu0 %v2083
        %3446 = vmatprep.subr.bf16.mxu0 %v2088
        %3447 = vmatpush1.bf16.msra.mxu0 %v2087
        %3448 = vmatprep.subr.bf16.mxu0 %v2092
        %3449 = vmatpush1.bf16.msra.mxu0 %v2091
        %3450 = vmatprep.subr.bf16.mxu0 %v2096
        %3451 = vmatpush1.bf16.msra.mxu0 %v2095
        %3452 = vmatprep.subr.bf16.mxu0 %v2100
        %3453 = vmatpush1.bf16.msra.mxu0 %v2099
        %3454 = vmatprep.subr.bf16.mxu0 %v2104
        %3455 = vmatpush1.bf16.msra.mxu0 %v2103
        %3456 = vmatprep.subr.bf16.mxu0 %v2108
        %3457 = vmatpush1.bf16.msra.mxu0 %v2107
        %3458 = vmatprep.subr.bf16.mxu0 %v2112
        %3459 = vmatpush1.bf16.msra.mxu0 %v2111
        %3460 = vmatprep.subr.bf16.mxu0 %v2116
        %3461 = vmatpush1.bf16.msra.mxu0 %v2115
        %3462 = vmatprep.subr.bf16.mxu0 %v2120
        %3463 = vmatpush1.bf16.msra.mxu0 %v2119
        %3464 = vmatprep.subr.bf16.mxu0 %v2124
        %3465 = vmatpush1.bf16.msra.mxu0 %v2123
        %3466 = vmatprep.mubr.bf16.mxu0 %v2795
        %3467 = vmatmul.mubr.bf16.gmra.mrb[0].mxu0 %v2794
        %v3468 = vpop.f32.mrb[0].mxu0
        %v3469 = vadd.f32 %v3428, %v3468
        %v3470 = vpop.f32.mrb[0].mxu0
        %v3471 = vadd.f32 %v3430, %v3470
        %v3472 = vpop.f32.mrb[0].mxu0
        %v3473 = vpop.f32.mrb[0].mxu0
        %3474 = vdwg.mxu0
        %3475 = vmatprep.subr.bf16.mxu0 %v2128
        %3476 = vmatpush1.bf16.msra.mxu0 %v2127
        %3477 = vmatprep.subr.bf16.mxu0 %v2132
        %3478 = vmatpush1.bf16.msra.mxu0 %v2131
        %3479 = vmatprep.subr.bf16.mxu0 %v2136
        %3480 = vmatpush1.bf16.msra.mxu0 %v2135
        %3481 = vmatprep.subr.bf16.mxu0 %v2140
        %3482 = vmatpush1.bf16.msra.mxu0 %v2139
        %3483 = vmatprep.subr.bf16.mxu0 %v2144
        %3484 = vmatpush1.bf16.msra.mxu0 %v2143
        %3485 = vmatprep.subr.bf16.mxu0 %v2148
        %3486 = vmatpush1.bf16.msra.mxu0 %v2147
        %3487 = vmatprep.subr.bf16.mxu0 %v2152
        %3488 = vmatpush1.bf16.msra.mxu0 %v2151
        %3489 = vmatprep.subr.bf16.mxu0 %v2156
        %3490 = vmatpush1.bf16.msra.mxu0 %v2155
        %3491 = vmatprep.subr.bf16.mxu0 %v2160
        %3492 = vmatpush1.bf16.msra.mxu0 %v2159
        %3493 = vmatprep.subr.bf16.mxu0 %v2164
        %3494 = vmatpush1.bf16.msra.mxu0 %v2163
        %3495 = vmatprep.subr.bf16.mxu0 %v2168
        %3496 = vmatpush1.bf16.msra.mxu0 %v2167
        %3497 = vmatprep.subr.bf16.mxu0 %v2172
        %3498 = vmatpush1.bf16.msra.mxu0 %v2171
        %3499 = vmatprep.subr.bf16.mxu0 %v2176
        %3500 = vmatpush1.bf16.msra.mxu0 %v2175
        %3501 = vmatprep.subr.bf16.mxu0 %v2180
        %3502 = vmatpush1.bf16.msra.mxu0 %v2179
        %3503 = vmatprep.subr.bf16.mxu0 %v2184
        %3504 = vmatpush1.bf16.msra.mxu0 %v2183
        %3505 = vmatprep.subr.bf16.mxu0 %v2188
        %3506 = vmatpush1.bf16.msra.mxu0 %v2187
        %3507 = vmatprep.mubr.bf16.mxu0 %v2797
        %3508 = vmatmul.mubr.bf16.gmra.mrb[0].mxu0 %v2796
        %v3509 = vpop.f32.mrb[0].mxu0
        %v3510 = vadd.f32 %v3469, %v3509
        %v3511 = vpop.f32.mrb[0].mxu0
        %v3512 = vadd.f32 %v3471, %v3511
        %v3513 = vpop.f32.mrb[0].mxu0
        %v3514 = vpop.f32.mrb[0].mxu0
        %3515 = vdwg.mxu0
        %3516 = vmatprep.subr.bf16.mxu0 %v2192
        %3517 = vmatpush1.bf16.msra.mxu0 %v2191
        %3518 = vmatprep.subr.bf16.mxu0 %v2196
        %3519 = vmatpush1.bf16.msra.mxu0 %v2195
        %3520 = vmatprep.subr.bf16.mxu0 %v2200
        %3521 = vmatpush1.bf16.msra.mxu0 %v2199
        %3522 = vmatprep.subr.bf16.mxu0 %v2204
        %3523 = vmatpush1.bf16.msra.mxu0 %v2203
        %3524 = vmatprep.subr.bf16.mxu0 %v2208
        %3525 = vmatpush1.bf16.msra.mxu0 %v2207
        %3526 = vmatprep.subr.bf16.mxu0 %v2212
        %3527 = vmatpush1.bf16.msra.mxu0 %v2211
        %3528 = vmatprep.subr.bf16.mxu0 %v2216
        %3529 = vmatpush1.bf16.msra.mxu0 %v2215
        %3530 = vmatprep.subr.bf16.mxu0 %v2220
        %3531 = vmatpush1.bf16.msra.mxu0 %v2219
        %3532 = vmatprep.subr.bf16.mxu0 %v2224
        %3533 = vmatpush1.bf16.msra.mxu0 %v2223
        %3534 = vmatprep.subr.bf16.mxu0 %v2228
        %3535 = vmatpush1.bf16.msra.mxu0 %v2227
        %3536 = vmatprep.subr.bf16.mxu0 %v2232
        %3537 = vmatpush1.bf16.msra.mxu0 %v2231
        %3538 = vmatprep.subr.bf16.mxu0 %v2236
        %3539 = vmatpush1.bf16.msra.mxu0 %v2235
        %3540 = vmatprep.subr.bf16.mxu0 %v2240
        %3541 = vmatpush1.bf16.msra.mxu0 %v2239
        %3542 = vmatprep.subr.bf16.mxu0 %v2244
        %3543 = vmatpush1.bf16.msra.mxu0 %v2243
        %3544 = vmatprep.subr.bf16.mxu0 %v2248
        %3545 = vmatpush1.bf16.msra.mxu0 %v2247
        %3546 = vmatprep.subr.bf16.mxu0 %v2252
        %3547 = vmatpush1.bf16.msra.mxu0 %v2251
        %3548 = vmatprep.mubr.bf16.mxu0 %v2799
        %3549 = vmatmul.mubr.bf16.gmra.mrb[0].mxu0 %v2798
        %v3550 = vpop.f32.mrb[0].mxu0
        %v3551 = vadd.f32 %v3510, %v3550
        %v3552 = vpop.f32.mrb[0].mxu0
        %v3553 = vadd.f32 %v3512, %v3552
        %v3554 = vpop.f32.mrb[0].mxu0
        %v3555 = vpop.f32.mrb[0].mxu0
        %3556 = vdwg.mxu0
        %3557 = vmatprep.subr.bf16.mxu0 %v2256
        %3558 = vmatpush1.bf16.msra.mxu0 %v2255
        %3559 = vmatprep.subr.bf16.mxu0 %v2260
        %3560 = vmatpush1.bf16.msra.mxu0 %v2259
        %3561 = vmatprep.subr.bf16.mxu0 %v2264
        %3562 = vmatpush1.bf16.msra.mxu0 %v2263
        %3563 = vmatprep.subr.bf16.mxu0 %v2268
        %3564 = vmatpush1.bf16.msra.mxu0 %v2267
        %3565 = vmatprep.subr.bf16.mxu0 %v2272
        %3566 = vmatpush1.bf16.msra.mxu0 %v2271
        %3567 = vmatprep.subr.bf16.mxu0 %v2276
        %3568 = vmatpush1.bf16.msra.mxu0 %v2275
        %3569 = vmatprep.subr.bf16.mxu0 %v2280
        %3570 = vmatpush1.bf16.msra.mxu0 %v2279
        %3571 = vmatprep.subr.bf16.mxu0 %v2284
        %3572 = vmatpush1.bf16.msra.mxu0 %v2283
        %3573 = vmatprep.subr.bf16.mxu0 %v2288
        %3574 = vmatpush1.bf16.msra.mxu0 %v2287
        %3575 = vmatprep.subr.bf16.mxu0 %v2292
        %3576 = vmatpush1.bf16.msra.mxu0 %v2291
        %3577 = vmatprep.subr.bf16.mxu0 %v2296
        %3578 = vmatpush1.bf16.msra.mxu0 %v2295
        %3579 = vmatprep.subr.bf16.mxu0 %v2300
        %3580 = vmatpush1.bf16.msra.mxu0 %v2299
        %3581 = vmatprep.subr.bf16.mxu0 %v2304
        %3582 = vmatpush1.bf16.msra.mxu0 %v2303
        %3583 = vmatprep.subr.bf16.mxu0 %v2308
        %3584 = vmatpush1.bf16.msra.mxu0 %v2307
        %3585 = vmatprep.subr.bf16.mxu0 %v2312
        %3586 = vmatpush1.bf16.msra.mxu0 %v2311
        %3587 = vmatprep.subr.bf16.mxu0 %v2316
        %3588 = vmatpush1.bf16.msra.mxu0 %v2315
        %3589 = vmatprep.mubr.bf16.mxu0 %v2801
        %3590 = vmatmul.mubr.bf16.gmra.mrb[0].mxu0 %v2800
        %v3591 = vpop.f32.mrb[0].mxu0
        %v3592 = vadd.f32 %v3551, %v3591
        %v3593 = vpop.f32.mrb[0].mxu0
        %v3594 = vadd.f32 %v3553, %v3593
        %v3595 = vpop.f32.mrb[0].mxu0
        %v3596 = vpop.f32.mrb[0].mxu0
        %3597 = vdwg.mxu0
        %3598 = vmatprep.subr.bf16.mxu0 %v2320
        %3599 = vmatpush1.bf16.msra.mxu0 %v2319
        %3600 = vmatprep.subr.bf16.mxu0 %v2324
        %3601 = vmatpush1.bf16.msra.mxu0 %v2323
        %3602 = vmatprep.subr.bf16.mxu0 %v2328
        %3603 = vmatpush1.bf16.msra.mxu0 %v2327
        %3604 = vmatprep.subr.bf16.mxu0 %v2332
        %3605 = vmatpush1.bf16.msra.mxu0 %v2331
        %3606 = vmatprep.subr.bf16.mxu0 %v2336
        %3607 = vmatpush1.bf16.msra.mxu0 %v2335
        %3608 = vmatprep.subr.bf16.mxu0 %v2340
        %3609 = vmatpush1.bf16.msra.mxu0 %v2339
        %3610 = vmatprep.subr.bf16.mxu0 %v2344
        %3611 = vmatpush1.bf16.msra.mxu0 %v2343
        %3612 = vmatprep.subr.bf16.mxu0 %v2348
        %3613 = vmatpush1.bf16.msra.mxu0 %v2347
        %3614 = vmatprep.subr.bf16.mxu0 %v2352
        %3615 = vmatpush1.bf16.msra.mxu0 %v2351
        %3616 = vmatprep.subr.bf16.mxu0 %v2356
        %3617 = vmatpush1.bf16.msra.mxu0 %v2355
        %3618 = vmatprep.subr.bf16.mxu0 %v2360
        %3619 = vmatpush1.bf16.msra.mxu0 %v2359
        %3620 = vmatprep.subr.bf16.mxu0 %v2364
        %3621 = vmatpush1.bf16.msra.mxu0 %v2363
        %3622 = vmatprep.subr.bf16.mxu0 %v2368
        %3623 = vmatpush1.bf16.msra.mxu0 %v2367
        %3624 = vmatprep.subr.bf16.mxu0 %v2372
        %3625 = vmatpush1.bf16.msra.mxu0 %v2371
        %3626 = vmatprep.subr.bf16.mxu0 %v2376
        %3627 = vmatpush1.bf16.msra.mxu0 %v2375
        %3628 = vmatprep.subr.bf16.mxu0 %v2380
        %3629 = vmatpush1.bf16.msra.mxu0 %v2379
        %3630 = vmatprep.mubr.bf16.mxu0 %v2803
        %3631 = vmatmul.mubr.bf16.gmra.mrb[0].mxu0 %v2802
        %v3632 = vpop.f32.mrb[0].mxu0
        %v3633 = vadd.f32 %v3592, %v3632
        %v3634 = vpop.f32.mrb[0].mxu0
        %v3635 = vadd.f32 %v3594, %v3634
        %v3636 = vpop.f32.mrb[0].mxu0
        %v3637 = vpop.f32.mrb[0].mxu0
        %3638 = vdwg.mxu0
        %3639 = vmatprep.subr.bf16.mxu0 %v2384
        %3640 = vmatpush1.bf16.msra.mxu0 %v2383
        %3641 = vmatprep.subr.bf16.mxu0 %v2388
        %3642 = vmatpush1.bf16.msra.mxu0 %v2387
        %3643 = vmatprep.subr.bf16.mxu0 %v2392
        %3644 = vmatpush1.bf16.msra.mxu0 %v2391
        %3645 = vmatprep.subr.bf16.mxu0 %v2396
        %3646 = vmatpush1.bf16.msra.mxu0 %v2395
        %3647 = vmatprep.subr.bf16.mxu0 %v2400
        %3648 = vmatpush1.bf16.msra.mxu0 %v2399
        %3649 = vmatprep.subr.bf16.mxu0 %v2404
        %3650 = vmatpush1.bf16.msra.mxu0 %v2403
        %3651 = vmatprep.subr.bf16.mxu0 %v2408
        %3652 = vmatpush1.bf16.msra.mxu0 %v2407
        %3653 = vmatprep.subr.bf16.mxu0 %v2412
        %3654 = vmatpush1.bf16.msra.mxu0 %v2411
        %3655 = vmatprep.subr.bf16.mxu0 %v2416
        %3656 = vmatpush1.bf16.msra.mxu0 %v2415
        %3657 = vmatprep.subr.bf16.mxu0 %v2420
        %3658 = vmatpush1.bf16.msra.mxu0 %v2419
        %3659 = vmatprep.subr.bf16.mxu0 %v2424
        %3660 = vmatpush1.bf16.msra.mxu0 %v2423
        %3661 = vmatprep.subr.bf16.mxu0 %v2428
        %3662 = vmatpush1.bf16.msra.mxu0 %v2427
        %3663 = vmatprep.subr.bf16.mxu0 %v2432
        %3664 = vmatpush1.bf16.msra.mxu0 %v2431
        %3665 = vmatprep.subr.bf16.mxu0 %v2436
        %3666 = vmatpush1.bf16.msra.mxu0 %v2435
        %3667 = vmatprep.subr.bf16.mxu0 %v2440
        %3668 = vmatpush1.bf16.msra.mxu0 %v2439
        %3669 = vmatprep.subr.bf16.mxu0 %v2444
        %3670 = vmatpush1.bf16.msra.mxu0 %v2443
        %3671 = vmatprep.mubr.bf16.mxu0 %v2805
        %3672 = vmatmul.mubr.bf16.gmra.mrb[0].mxu0 %v2804
        %v3673 = vpop.f32.mrb[0].mxu0
        %v3674 = vadd.f32 %v3633, %v3673
        %v3675 = vpop.f32.mrb[0].mxu0
        %v3676 = vadd.f32 %v3635, %v3675
        %v3677 = vpop.f32.mrb[0].mxu0
        %v3678 = vpop.f32.mrb[0].mxu0
        %3679 = vdwg.mxu0
        %3680 = vmatprep.subr.bf16.mxu0 %v2448
        %3681 = vmatpush1.bf16.msra.mxu0 %v2447
        %3682 = vmatprep.subr.bf16.mxu0 %v2452
        %3683 = vmatpush1.bf16.msra.mxu0 %v2451
        %3684 = vmatprep.subr.bf16.mxu0 %v2456
        %3685 = vmatpush1.bf16.msra.mxu0 %v2455
        %3686 = vmatprep.subr.bf16.mxu0 %v2460
        %3687 = vmatpush1.bf16.msra.mxu0 %v2459
        %3688 = vmatprep.subr.bf16.mxu0 %v2464
        %3689 = vmatpush1.bf16.msra.mxu0 %v2463
        %3690 = vmatprep.subr.bf16.mxu0 %v2468
        %3691 = vmatpush1.bf16.msra.mxu0 %v2467
        %3692 = vmatprep.subr.bf16.mxu0 %v2472
        %3693 = vmatpush1.bf16.msra.mxu0 %v2471
        %3694 = vmatprep.subr.bf16.mxu0 %v2476
        %3695 = vmatpush1.bf16.msra.mxu0 %v2475
        %3696 = vmatprep.subr.bf16.mxu0 %v2480
        %3697 = vmatpush1.bf16.msra.mxu0 %v2479
        %3698 = vmatprep.subr.bf16.mxu0 %v2484
        %3699 = vmatpush1.bf16.msra.mxu0 %v2483
        %3700 = vmatprep.subr.bf16.mxu0 %v2488
        %3701 = vmatpush1.bf16.msra.mxu0 %v2487
        %3702 = vmatprep.subr.bf16.mxu0 %v2492
        %3703 = vmatpush1.bf16.msra.mxu0 %v2491
        %3704 = vmatprep.subr.bf16.mxu0 %v2496
        %3705 = vmatpush1.bf16.msra.mxu0 %v2495
        %3706 = vmatprep.subr.bf16.mxu0 %v2500
        %3707 = vmatpush1.bf16.msra.mxu0 %v2499
        %3708 = vmatprep.subr.bf16.mxu0 %v2504
        %3709 = vmatpush1.bf16.msra.mxu0 %v2503
        %3710 = vmatprep.subr.bf16.mxu0 %v2508
        %3711 = vmatpush1.bf16.msra.mxu0 %v2507
        %3712 = vmatprep.mubr.bf16.mxu0 %v2807
        %3713 = vmatmul.mubr.bf16.gmra.mrb[0].mxu0 %v2806
        %v3714 = vpop.f32.mrb[0].mxu0
        %v3715 = vadd.f32 %v3674, %v3714
        %v3716 = vpop.f32.mrb[0].mxu0
        %v3717 = vadd.f32 %v3676, %v3716
        %v3718 = vpop.f32.mrb[0].mxu0
        %v3719 = vpop.f32.mrb[0].mxu0
        %3720 = vdwg.mxu0
        %3721 = vmatprep.subr.bf16.mxu0 %v2512
        %3722 = vmatpush1.bf16.msra.mxu0 %v2511
        %3723 = vmatprep.subr.bf16.mxu0 %v2516
        %3724 = vmatpush1.bf16.msra.mxu0 %v2515
        %3725 = vmatprep.subr.bf16.mxu0 %v2520
        %3726 = vmatpush1.bf16.msra.mxu0 %v2519
        %3727 = vmatprep.subr.bf16.mxu0 %v2524
        %3728 = vmatpush1.bf16.msra.mxu0 %v2523
        %3729 = vmatprep.subr.bf16.mxu0 %v2528
        %3730 = vmatpush1.bf16.msra.mxu0 %v2527
        %3731 = vmatprep.subr.bf16.mxu0 %v2532
        %3732 = vmatpush1.bf16.msra.mxu0 %v2531
        %3733 = vmatprep.subr.bf16.mxu0 %v2536
        %3734 = vmatpush1.bf16.msra.mxu0 %v2535
        %3735 = vmatprep.subr.bf16.mxu0 %v2540
        %3736 = vmatpush1.bf16.msra.mxu0 %v2539
        %3737 = vmatprep.subr.bf16.mxu0 %v2544
        %3738 = vmatpush1.bf16.msra.mxu0 %v2543
        %3739 = vmatprep.subr.bf16.mxu0 %v2548
        %3740 = vmatpush1.bf16.msra.mxu0 %v2547
        %3741 = vmatprep.subr.bf16.mxu0 %v2552
        %3742 = vmatpush1.bf16.msra.mxu0 %v2551
        %3743 = vmatprep.subr.bf16.mxu0 %v2556
        %3744 = vmatpush1.bf16.msra.mxu0 %v2555
        %3745 = vmatprep.subr.bf16.mxu0 %v2560
        %3746 = vmatpush1.bf16.msra.mxu0 %v2559
        %3747 = vmatprep.subr.bf16.mxu0 %v2564
        %3748 = vmatpush1.bf16.msra.mxu0 %v2563
        %3749 = vmatprep.subr.bf16.mxu0 %v2568
        %3750 = vmatpush1.bf16.msra.mxu0 %v2567
        %3751 = vmatprep.subr.bf16.mxu0 %v2572
        %3752 = vmatpush1.bf16.msra.mxu0 %v2571
        %3753 = vmatprep.mubr.bf16.mxu0 %v2809
        %3754 = vmatmul.mubr.bf16.gmra.mrb[0].mxu0 %v2808
        %v3755 = vpop.f32.mrb[0].mxu0
        %v3756 = vadd.f32 %v3715, %v3755
        %v3757 = vpop.f32.mrb[0].mxu0
        %v3758 = vadd.f32 %v3717, %v3757
        %v3759 = vpop.f32.mrb[0].mxu0
        %v3760 = vpop.f32.mrb[0].mxu0
        %3761 = vdwg.mxu0
        %3762 = vmatprep.subr.bf16.mxu0 %v2576
        %3763 = vmatpush1.bf16.msra.mxu0 %v2575
        %3764 = vmatprep.subr.bf16.mxu0 %v2580
        %3765 = vmatpush1.bf16.msra.mxu0 %v2579
        %3766 = vmatprep.subr.bf16.mxu0 %v2584
        %3767 = vmatpush1.bf16.msra.mxu0 %v2583
        %3768 = vmatprep.subr.bf16.mxu0 %v2588
        %3769 = vmatpush1.bf16.msra.mxu0 %v2587
        %3770 = vmatprep.subr.bf16.mxu0 %v2592
        %3771 = vmatpush1.bf16.msra.mxu0 %v2591
        %3772 = vmatprep.subr.bf16.mxu0 %v2596
        %3773 = vmatpush1.bf16.msra.mxu0 %v2595
        %3774 = vmatprep.subr.bf16.mxu0 %v2600
        %3775 = vmatpush1.bf16.msra.mxu0 %v2599
        %3776 = vmatprep.subr.bf16.mxu0 %v2604
        %3777 = vmatpush1.bf16.msra.mxu0 %v2603
        %3778 = vmatprep.subr.bf16.mxu0 %v2608
        %3779 = vmatpush1.bf16.msra.mxu0 %v2607
        %3780 = vmatprep.subr.bf16.mxu0 %v2612
        %3781 = vmatpush1.bf16.msra.mxu0 %v2611
        %3782 = vmatprep.subr.bf16.mxu0 %v2616
        %3783 = vmatpush1.bf16.msra.mxu0 %v2615
        %3784 = vmatprep.subr.bf16.mxu0 %v2620
        %3785 = vmatpush1.bf16.msra.mxu0 %v2619
        %3786 = vmatprep.subr.bf16.mxu0 %v2624
        %3787 = vmatpush1.bf16.msra.mxu0 %v2623
        %3788 = vmatprep.subr.bf16.mxu0 %v2628
        %3789 = vmatpush1.bf16.msra.mxu0 %v2627
        %3790 = vmatprep.subr.bf16.mxu0 %v2632
        %3791 = vmatpush1.bf16.msra.mxu0 %v2631
        %3792 = vmatprep.subr.bf16.mxu0 %v2636
        %3793 = vmatpush1.bf16.msra.mxu0 %v2635
        %3794 = vmatprep.mubr.bf16.mxu0 %v2811
        %3795 = vmatmul.mubr.bf16.gmra.mrb[0].mxu0 %v2810
        %v3796 = vpop.f32.mrb[0].mxu0
        %v3797 = vadd.f32 %v3756, %v3796
        %v3798 = vpop.f32.mrb[0].mxu0
        %v3799 = vadd.f32 %v3758, %v3798
        %v3800 = vpop.f32.mrb[0].mxu0
        %v3801 = vpop.f32.mrb[0].mxu0
        %3802 = vdwg.mxu0
        %3803 = vmatprep.subr.bf16.mxu0 %v2640
        %3804 = vmatpush1.bf16.msra.mxu0 %v2639
        %3805 = vmatprep.subr.bf16.mxu0 %v2644
        %3806 = vmatpush1.bf16.msra.mxu0 %v2643
        %3807 = vmatprep.subr.bf16.mxu0 %v2648
        %3808 = vmatpush1.bf16.msra.mxu0 %v2647
        %3809 = vmatprep.subr.bf16.mxu0 %v2652
        %3810 = vmatpush1.bf16.msra.mxu0 %v2651
        %3811 = vmatprep.subr.bf16.mxu0 %v2656
        %3812 = vmatpush1.bf16.msra.mxu0 %v2655
        %3813 = vmatprep.subr.bf16.mxu0 %v2660
        %3814 = vmatpush1.bf16.msra.mxu0 %v2659
        %3815 = vmatprep.subr.bf16.mxu0 %v2664
        %3816 = vmatpush1.bf16.msra.mxu0 %v2663
        %3817 = vmatprep.subr.bf16.mxu0 %v2668
        %3818 = vmatpush1.bf16.msra.mxu0 %v2667
        %3819 = vmatprep.subr.bf16.mxu0 0
        %3820 = vmatpush1.bf16.msra.mxu0 0
        %3821 = vmatprep.subr.bf16.mxu0 0
        %3822 = vmatpush1.bf16.msra.mxu0 0
        %3823 = vmatprep.subr.bf16.mxu0 0
        %3824 = vmatpush1.bf16.msra.mxu0 0
        %3825 = vmatprep.subr.bf16.mxu0 0
        %3826 = vmatpush1.bf16.msra.mxu0 0
        %3827 = vmatprep.subr.bf16.mxu0 0
        %3828 = vmatpush1.bf16.msra.mxu0 0
        %3829 = vmatprep.subr.bf16.mxu0 0
        %3830 = vmatpush1.bf16.msra.mxu0 0
        %3831 = vmatprep.subr.bf16.mxu0 0
        %3832 = vmatpush1.bf16.msra.mxu0 0
        %3833 = vmatprep.subr.bf16.mxu0 0
        %3834 = vmatpush1.bf16.msra.mxu0 0
        %3835 = vmatprep.mubr.bf16.mxu0 0
        %3836 = vmatmul.mubr.bf16.gmra.mrb[0].mxu0 %v2812
        %v3837 = vpop.f32.mrb[0].mxu0
        %v3838 = vadd.f32 %v3797, %v3837
        %v3839 = vpop.f32.mrb[0].mxu0
        %v3840 = vadd.f32 %v3799, %v3839
        %v3841 = vpop.f32.mrb[0].mxu0
        %v3842 = vpop.f32.mrb[0].mxu0
        %3843 = vdwg.mxu0
        %3844 = vmatprep.subr.bf16.mxu0 %v1170
        %3845 = vmatpush1.bf16.msra.mxu0 %v1169
        %3846 = vmatprep.subr.bf16.mxu0 %v1174
        %3847 = vmatpush1.bf16.msra.mxu0 %v1173
        %3848 = vmatprep.subr.bf16.mxu0 %v1178
        %3849 = vmatpush1.bf16.msra.mxu0 %v1177
        %3850 = vmatprep.subr.bf16.mxu0 %v1182
        %3851 = vmatpush1.bf16.msra.mxu0 %v1181
        %3852 = vmatprep.subr.bf16.mxu0 %v1186
        %3853 = vmatpush1.bf16.msra.mxu0 %v1185
        %3854 = vmatprep.subr.bf16.mxu0 %v1190
        %3855 = vmatpush1.bf16.msra.mxu0 %v1189
        %3856 = vmatprep.subr.bf16.mxu0 %v1194
        %3857 = vmatpush1.bf16.msra.mxu0 %v1193
        %3858 = vmatprep.subr.bf16.mxu0 %v1198
        %3859 = vmatpush1.bf16.msra.mxu0 %v1197
        %3860 = vmatprep.subr.bf16.mxu0 %v1202
        %3861 = vmatpush1.bf16.msra.mxu0 %v1201
        %3862 = vmatprep.subr.bf16.mxu0 %v1206
        %3863 = vmatpush1.bf16.msra.mxu0 %v1205
        %3864 = vmatprep.subr.bf16.mxu0 %v1210
        %3865 = vmatpush1.bf16.msra.mxu0 %v1209
        %3866 = vmatprep.subr.bf16.mxu0 %v1214
        %3867 = vmatpush1.bf16.msra.mxu0 %v1213
        %3868 = vmatprep.subr.bf16.mxu0 %v1218
        %3869 = vmatpush1.bf16.msra.mxu0 %v1217
        %3870 = vmatprep.subr.bf16.mxu0 %v1222
        %3871 = vmatpush1.bf16.msra.mxu0 %v1221
        %3872 = vmatprep.subr.bf16.mxu0 %v1226
        %3873 = vmatpush1.bf16.msra.mxu0 %v1225
        %3874 = vmatprep.subr.bf16.mxu0 %v1230
        %3875 = vmatpush1.bf16.msra.mxu0 %v1229
        %3876 = vmatprep.mubr.bf16.mxu0 %v2767
        %3877 = vmatmul.mubr.bf16.gmra.mrb[0].mxu0 %v2766
        %v3878 = vpop.f32.mrb[0].mxu0
        %v3879 = vadd.f32 0.0, %v3878
        %v3880 = vpop.f32.mrb[0].mxu0
        %v3881 = vadd.f32 0.0, %v3880
        %v3882 = vpop.f32.mrb[0].mxu0
        %v3883 = vpop.f32.mrb[0].mxu0
        %3884 = vdwg.mxu0
        %3885 = vmatprep.subr.bf16.mxu0 %v1234
        %3886 = vmatpush1.bf16.msra.mxu0 %v1233
        %3887 = vmatprep.subr.bf16.mxu0 %v1238
        %3888 = vmatpush1.bf16.msra.mxu0 %v1237
        %3889 = vmatprep.subr.bf16.mxu0 %v1242
        %3890 = vmatpush1.bf16.msra.mxu0 %v1241
        %3891 = vmatprep.subr.bf16.mxu0 %v1246
        %3892 = vmatpush1.bf16.msra.mxu0 %v1245
        %3893 = vmatprep.subr.bf16.mxu0 %v1250
        %3894 = vmatpush1.bf16.msra.mxu0 %v1249
        %3895 = vmatprep.subr.bf16.mxu0 %v1254
        %3896 = vmatpush1.bf16.msra.mxu0 %v1253
        %3897 = vmatprep.subr.bf16.mxu0 %v1258
        %3898 = vmatpush1.bf16.msra.mxu0 %v1257
        %3899 = vmatprep.subr.bf16.mxu0 %v1262
        %3900 = vmatpush1.bf16.msra.mxu0 %v1261
        %3901 = vmatprep.subr.bf16.mxu0 %v1266
        %3902 = vmatpush1.bf16.msra.mxu0 %v1265
        %3903 = vmatprep.subr.bf16.mxu0 %v1270
        %3904 = vmatpush1.bf16.msra.mxu0 %v1269
        %3905 = vmatprep.subr.bf16.mxu0 %v1274
        %3906 = vmatpush1.bf16.msra.mxu0 %v1273
        %3907 = vmatprep.subr.bf16.mxu0 %v1278
        %3908 = vmatpush1.bf16.msra.mxu0 %v1277
        %3909 = vmatprep.subr.bf16.mxu0 %v1282
        %3910 = vmatpush1.bf16.msra.mxu0 %v1281
        %3911 = vmatprep.subr.bf16.mxu0 %v1286
        %3912 = vmatpush1.bf16.msra.mxu0 %v1285
        %3913 = vmatprep.subr.bf16.mxu0 %v1290
        %3914 = vmatpush1.bf16.msra.mxu0 %v1289
        %3915 = vmatprep.subr.bf16.mxu0 %v1294
        %3916 = vmatpush1.bf16.msra.mxu0 %v1293
        %3917 = vmatprep.mubr.bf16.mxu0 %v2769
        %3918 = vmatmul.mubr.bf16.gmra.mrb[0].mxu0 %v2768
        %v3919 = vpop.f32.mrb[0].mxu0
        %v3920 = vadd.f32 %v3879, %v3919
        %v3921 = vpop.f32.mrb[0].mxu0
        %v3922 = vadd.f32 %v3881, %v3921
        %v3923 = vpop.f32.mrb[0].mxu0
        %v3924 = vpop.f32.mrb[0].mxu0
        %3925 = vdwg.mxu0
        %3926 = vmatprep.subr.bf16.mxu0 %v1298
        %3927 = vmatpush1.bf16.msra.mxu0 %v1297
        %3928 = vmatprep.subr.bf16.mxu0 %v1302
        %3929 = vmatpush1.bf16.msra.mxu0 %v1301
        %3930 = vmatprep.subr.bf16.mxu0 %v1306
        %3931 = vmatpush1.bf16.msra.mxu0 %v1305
        %3932 = vmatprep.subr.bf16.mxu0 %v1310
        %3933 = vmatpush1.bf16.msra.mxu0 %v1309
        %3934 = vmatprep.subr.bf16.mxu0 %v1314
        %3935 = vmatpush1.bf16.msra.mxu0 %v1313
        %3936 = vmatprep.subr.bf16.mxu0 %v1318
        %3937 = vmatpush1.bf16.msra.mxu0 %v1317
        %3938 = vmatprep.subr.bf16.mxu0 %v1322
        %3939 = vmatpush1.bf16.msra.mxu0 %v1321
        %3940 = vmatprep.subr.bf16.mxu0 %v1326
        %3941 = vmatpush1.bf16.msra.mxu0 %v1325
        %3942 = vmatprep.subr.bf16.mxu0 %v1330
        %3943 = vmatpush1.bf16.msra.mxu0 %v1329
        %3944 = vmatprep.subr.bf16.mxu0 %v1334
        %3945 = vmatpush1.bf16.msra.mxu0 %v1333
        %3946 = vmatprep.subr.bf16.mxu0 %v1338
        %3947 = vmatpush1.bf16.msra.mxu0 %v1337
        %3948 = vmatprep.subr.bf16.mxu0 %v1342
        %3949 = vmatpush1.bf16.msra.mxu0 %v1341
        %3950 = vmatprep.subr.bf16.mxu0 %v1346
        %3951 = vmatpush1.bf16.msra.mxu0 %v1345
        %3952 = vmatprep.subr.bf16.mxu0 %v1350
        %3953 = vmatpush1.bf16.msra.mxu0 %v1349
        %3954 = vmatprep.subr.bf16.mxu0 %v1354
        %3955 = vmatpush1.bf16.msra.mxu0 %v1353
        %3956 = vmatprep.subr.bf16.mxu0 %v1358
        %3957 = vmatpush1.bf16.msra.mxu0 %v1357
        %3958 = vmatprep.mubr.bf16.mxu0 %v2771
        %3959 = vmatmul.mubr.bf16.gmra.mrb[0].mxu0 %v2770
        %v3960 = vpop.f32.mrb[0].mxu0
        %v3961 = vadd.f32 %v3920, %v3960
        %v3962 = vpop.f32.mrb[0].mxu0
        %v3963 = vadd.f32 %v3922, %v3962
        %v3964 = vpop.f32.mrb[0].mxu0
        %v3965 = vpop.f32.mrb[0].mxu0
        %3966 = vdwg.mxu0
        %3967 = vmatprep.subr.bf16.mxu0 %v1362
        %3968 = vmatpush1.bf16.msra.mxu0 %v1361
        %3969 = vmatprep.subr.bf16.mxu0 %v1366
        %3970 = vmatpush1.bf16.msra.mxu0 %v1365
        %3971 = vmatprep.subr.bf16.mxu0 %v1370
        %3972 = vmatpush1.bf16.msra.mxu0 %v1369
        %3973 = vmatprep.subr.bf16.mxu0 %v1374
        %3974 = vmatpush1.bf16.msra.mxu0 %v1373
        %3975 = vmatprep.subr.bf16.mxu0 %v1378
        %3976 = vmatpush1.bf16.msra.mxu0 %v1377
        %3977 = vmatprep.subr.bf16.mxu0 %v1382
        %3978 = vmatpush1.bf16.msra.mxu0 %v1381
        %3979 = vmatprep.subr.bf16.mxu0 %v1386
        %3980 = vmatpush1.bf16.msra.mxu0 %v1385
        %3981 = vmatprep.subr.bf16.mxu0 %v1390
        %3982 = vmatpush1.bf16.msra.mxu0 %v1389
        %3983 = vmatprep.subr.bf16.mxu0 %v1394
        %3984 = vmatpush1.bf16.msra.mxu0 %v1393
        %3985 = vmatprep.subr.bf16.mxu0 %v1398
        %3986 = vmatpush1.bf16.msra.mxu0 %v1397
        %3987 = vmatprep.subr.bf16.mxu0 %v1402
        %3988 = vmatpush1.bf16.msra.mxu0 %v1401
        %3989 = vmatprep.subr.bf16.mxu0 %v1406
        %3990 = vmatpush1.bf16.msra.mxu0 %v1405
        %3991 = vmatprep.subr.bf16.mxu0 %v1410
        %3992 = vmatpush1.bf16.msra.mxu0 %v1409
        %3993 = vmatprep.subr.bf16.mxu0 %v1414
        %3994 = vmatpush1.bf16.msra.mxu0 %v1413
        %3995 = vmatprep.subr.bf16.mxu0 %v1418
        %3996 = vmatpush1.bf16.msra.mxu0 %v1417
        %3997 = vmatprep.subr.bf16.mxu0 %v1422
        %3998 = vmatpush1.bf16.msra.mxu0 %v1421
        %3999 = vmatprep.mubr.bf16.mxu0 %v2773
        %4000 = vmatmul.mubr.bf16.gmra.mrb[0].mxu0 %v2772
        %v4001 = vpop.f32.mrb[0].mxu0
        %v4002 = vadd.f32 %v3961, %v4001
        %v4003 = vpop.f32.mrb[0].mxu0
        %v4004 = vadd.f32 %v3963, %v4003
        %v4005 = vpop.f32.mrb[0].mxu0
        %v4006 = vpop.f32.mrb[0].mxu0
        %4007 = vdwg.mxu0
        %4008 = vmatprep.subr.bf16.mxu0 %v1426
        %4009 = vmatpush1.bf16.msra.mxu0 %v1425
        %4010 = vmatprep.subr.bf16.mxu0 %v1430
        %4011 = vmatpush1.bf16.msra.mxu0 %v1429
        %4012 = vmatprep.subr.bf16.mxu0 %v1434
        %4013 = vmatpush1.bf16.msra.mxu0 %v1433
        %4014 = vmatprep.subr.bf16.mxu0 %v1438
        %4015 = vmatpush1.bf16.msra.mxu0 %v1437
        %4016 = vmatprep.subr.bf16.mxu0 %v1442
        %4017 = vmatpush1.bf16.msra.mxu0 %v1441
        %4018 = vmatprep.subr.bf16.mxu0 %v1446
        %4019 = vmatpush1.bf16.msra.mxu0 %v1445
        %4020 = vmatprep.subr.bf16.mxu0 %v1450
        %4021 = vmatpush1.bf16.msra.mxu0 %v1449
        %4022 = vmatprep.subr.bf16.mxu0 %v1454
        %4023 = vmatpush1.bf16.msra.mxu0 %v1453
        %4024 = vmatprep.subr.bf16.mxu0 %v1458
        %4025 = vmatpush1.bf16.msra.mxu0 %v1457
        %4026 = vmatprep.subr.bf16.mxu0 %v1462
        %4027 = vmatpush1.bf16.msra.mxu0 %v1461
        %4028 = vmatprep.subr.bf16.mxu0 %v1466
        %4029 = vmatpush1.bf16.msra.mxu0 %v1465
        %4030 = vmatprep.subr.bf16.mxu0 %v1470
        %4031 = vmatpush1.bf16.msra.mxu0 %v1469
        %4032 = vmatprep.subr.bf16.mxu0 %v1474
        %4033 = vmatpush1.bf16.msra.mxu0 %v1473
        %4034 = vmatprep.subr.bf16.mxu0 %v1478
        %4035 = vmatpush1.bf16.msra.mxu0 %v1477
        %4036 = vmatprep.subr.bf16.mxu0 %v1482
        %4037 = vmatpush1.bf16.msra.mxu0 %v1481
        %4038 = vmatprep.subr.bf16.mxu0 %v1486
        %4039 = vmatpush1.bf16.msra.mxu0 %v1485
        %4040 = vmatprep.mubr.bf16.mxu0 %v2775
        %4041 = vmatmul.mubr.bf16.gmra.mrb[0].mxu0 %v2774
        %v4042 = vpop.f32.mrb[0].mxu0
        %v4043 = vadd.f32 %v4002, %v4042
        %v4044 = vpop.f32.mrb[0].mxu0
        %v4045 = vadd.f32 %v4004, %v4044
        %v4046 = vpop.f32.mrb[0].mxu0
        %v4047 = vpop.f32.mrb[0].mxu0
        %4048 = vdwg.mxu0
        %4049 = vmatprep.subr.bf16.mxu0 %v1490
        %4050 = vmatpush1.bf16.msra.mxu0 %v1489
        %4051 = vmatprep.subr.bf16.mxu0 %v1494
        %4052 = vmatpush1.bf16.msra.mxu0 %v1493
        %4053 = vmatprep.subr.bf16.mxu0 %v1498
        %4054 = vmatpush1.bf16.msra.mxu0 %v1497
        %4055 = vmatprep.subr.bf16.mxu0 %v1502
        %4056 = vmatpush1.bf16.msra.mxu0 %v1501
        %4057 = vmatprep.subr.bf16.mxu0 %v1506
        %4058 = vmatpush1.bf16.msra.mxu0 %v1505
        %4059 = vmatprep.subr.bf16.mxu0 %v1510
        %4060 = vmatpush1.bf16.msra.mxu0 %v1509
        %4061 = vmatprep.subr.bf16.mxu0 %v1514
        %4062 = vmatpush1.bf16.msra.mxu0 %v1513
        %4063 = vmatprep.subr.bf16.mxu0 %v1518
        %4064 = vmatpush1.bf16.msra.mxu0 %v1517
        %4065 = vmatprep.subr.bf16.mxu0 %v1522
        %4066 = vmatpush1.bf16.msra.mxu0 %v1521
        %4067 = vmatprep.subr.bf16.mxu0 %v1526
        %4068 = vmatpush1.bf16.msra.mxu0 %v1525
        %4069 = vmatprep.subr.bf16.mxu0 %v1530
        %4070 = vmatpush1.bf16.msra.mxu0 %v1529
        %4071 = vmatprep.subr.bf16.mxu0 %v1534
        %4072 = vmatpush1.bf16.msra.mxu0 %v1533
        %4073 = vmatprep.subr.bf16.mxu0 %v1538
        %4074 = vmatpush1.bf16.msra.mxu0 %v1537
        %4075 = vmatprep.subr.bf16.mxu0 %v1542
        %4076 = vmatpush1.bf16.msra.mxu0 %v1541
        %4077 = vmatprep.subr.bf16.mxu0 %v1546
        %4078 = vmatpush1.bf16.msra.mxu0 %v1545
        %4079 = vmatprep.subr.bf16.mxu0 %v1550
        %4080 = vmatpush1.bf16.msra.mxu0 %v1549
        %4081 = vmatprep.mubr.bf16.mxu0 %v2777
        %4082 = vmatmul.mubr.bf16.gmra.mrb[0].mxu0 %v2776
        %v4083 = vpop.f32.mrb[0].mxu0
        %v4084 = vadd.f32 %v4043, %v4083
        %v4085 = vpop.f32.mrb[0].mxu0
        %v4086 = vadd.f32 %v4045, %v4085
        %v4087 = vpop.f32.mrb[0].mxu0
        %v4088 = vpop.f32.mrb[0].mxu0
        %4089 = vdwg.mxu0
        %4090 = vmatprep.subr.bf16.mxu0 %v1554
        %4091 = vmatpush1.bf16.msra.mxu0 %v1553
        %4092 = vmatprep.subr.bf16.mxu0 %v1558
        %4093 = vmatpush1.bf16.msra.mxu0 %v1557
        %4094 = vmatprep.subr.bf16.mxu0 %v1562
        %4095 = vmatpush1.bf16.msra.mxu0 %v1561
        %4096 = vmatprep.subr.bf16.mxu0 %v1566
        %4097 = vmatpush1.bf16.msra.mxu0 %v1565
        %4098 = vmatprep.subr.bf16.mxu0 %v1570
        %4099 = vmatpush1.bf16.msra.mxu0 %v1569
        %4100 = vmatprep.subr.bf16.mxu0 %v1574
        %4101 = vmatpush1.bf16.msra.mxu0 %v1573
        %4102 = vmatprep.subr.bf16.mxu0 %v1578
        %4103 = vmatpush1.bf16.msra.mxu0 %v1577
        %4104 = vmatprep.subr.bf16.mxu0 %v1582
        %4105 = vmatpush1.bf16.msra.mxu0 %v1581
        %4106 = vmatprep.subr.bf16.mxu0 %v1586
        %4107 = vmatpush1.bf16.msra.mxu0 %v1585
        %4108 = vmatprep.subr.bf16.mxu0 %v1590
        %4109 = vmatpush1.bf16.msra.mxu0 %v1589
        %4110 = vmatprep.subr.bf16.mxu0 %v1594
        %4111 = vmatpush1.bf16.msra.mxu0 %v1593
        %4112 = vmatprep.subr.bf16.mxu0 %v1598
        %4113 = vmatpush1.bf16.msra.mxu0 %v1597
        %4114 = vmatprep.subr.bf16.mxu0 %v1602
        %4115 = vmatpush1.bf16.msra.mxu0 %v1601
        %4116 = vmatprep.subr.bf16.mxu0 %v1606
        %4117 = vmatpush1.bf16.msra.mxu0 %v1605
        %4118 = vmatprep.subr.bf16.mxu0 %v1610
        %4119 = vmatpush1.bf16.msra.mxu0 %v1609
        %4120 = vmatprep.subr.bf16.mxu0 %v1614
        %4121 = vmatpush1.bf16.msra.mxu0 %v1613
        %4122 = vmatprep.mubr.bf16.mxu0 %v2779
        %4123 = vmatmul.mubr.bf16.gmra.mrb[0].mxu0 %v2778
        %v4124 = vpop.f32.mrb[0].mxu0
        %v4125 = vadd.f32 %v4084, %v4124
        %v4126 = vpop.f32.mrb[0].mxu0
        %v4127 = vadd.f32 %v4086, %v4126
        %v4128 = vpop.f32.mrb[0].mxu0
        %v4129 = vpop.f32.mrb[0].mxu0
        %4130 = vdwg.mxu0
        %4131 = vmatprep.subr.bf16.mxu0 %v1618
        %4132 = vmatpush1.bf16.msra.mxu0 %v1617
        %4133 = vmatprep.subr.bf16.mxu0 %v1622
        %4134 = vmatpush1.bf16.msra.mxu0 %v1621
        %4135 = vmatprep.subr.bf16.mxu0 %v1626
        %4136 = vmatpush1.bf16.msra.mxu0 %v1625
        %4137 = vmatprep.subr.bf16.mxu0 %v1630
        %4138 = vmatpush1.bf16.msra.mxu0 %v1629
        %4139 = vmatprep.subr.bf16.mxu0 %v1634
        %4140 = vmatpush1.bf16.msra.mxu0 %v1633
        %4141 = vmatprep.subr.bf16.mxu0 %v1638
        %4142 = vmatpush1.bf16.msra.mxu0 %v1637
        %4143 = vmatprep.subr.bf16.mxu0 %v1642
        %4144 = vmatpush1.bf16.msra.mxu0 %v1641
        %4145 = vmatprep.subr.bf16.mxu0 %v1646
        %4146 = vmatpush1.bf16.msra.mxu0 %v1645
        %4147 = vmatprep.subr.bf16.mxu0 %v1650
        %4148 = vmatpush1.bf16.msra.mxu0 %v1649
        %4149 = vmatprep.subr.bf16.mxu0 %v1654
        %4150 = vmatpush1.bf16.msra.mxu0 %v1653
        %4151 = vmatprep.subr.bf16.mxu0 %v1658
        %4152 = vmatpush1.bf16.msra.mxu0 %v1657
        %4153 = vmatprep.subr.bf16.mxu0 %v1662
        %4154 = vmatpush1.bf16.msra.mxu0 %v1661
        %4155 = vmatprep.subr.bf16.mxu0 %v1666
        %4156 = vmatpush1.bf16.msra.mxu0 %v1665
        %4157 = vmatprep.subr.bf16.mxu0 %v1670
        %4158 = vmatpush1.bf16.msra.mxu0 %v1669
        %4159 = vmatprep.subr.bf16.mxu0 %v1674
        %4160 = vmatpush1.bf16.msra.mxu0 %v1673
        %4161 = vmatprep.subr.bf16.mxu0 %v1678
        %4162 = vmatpush1.bf16.msra.mxu0 %v1677
        %4163 = vmatprep.mubr.bf16.mxu0 %v2781
        %4164 = vmatmul.mubr.bf16.gmra.mrb[0].mxu0 %v2780
        %v4165 = vpop.f32.mrb[0].mxu0
        %v4166 = vadd.f32 %v4125, %v4165
        %v4167 = vpop.f32.mrb[0].mxu0
        %v4168 = vadd.f32 %v4127, %v4167
        %v4169 = vpop.f32.mrb[0].mxu0
        %v4170 = vpop.f32.mrb[0].mxu0
        %4171 = vdwg.mxu0
        %4172 = vmatprep.subr.bf16.mxu0 %v1682
        %4173 = vmatpush1.bf16.msra.mxu0 %v1681
        %4174 = vmatprep.subr.bf16.mxu0 %v1686
        %4175 = vmatpush1.bf16.msra.mxu0 %v1685
        %4176 = vmatprep.subr.bf16.mxu0 %v1690
        %4177 = vmatpush1.bf16.msra.mxu0 %v1689
        %4178 = vmatprep.subr.bf16.mxu0 %v1694
        %4179 = vmatpush1.bf16.msra.mxu0 %v1693
        %4180 = vmatprep.subr.bf16.mxu0 %v1698
        %4181 = vmatpush1.bf16.msra.mxu0 %v1697
        %4182 = vmatprep.subr.bf16.mxu0 %v1702
        %4183 = vmatpush1.bf16.msra.mxu0 %v1701
        %4184 = vmatprep.subr.bf16.mxu0 %v1706
        %4185 = vmatpush1.bf16.msra.mxu0 %v1705
        %4186 = vmatprep.subr.bf16.mxu0 %v1710
        %4187 = vmatpush1.bf16.msra.mxu0 %v1709
        %4188 = vmatprep.subr.bf16.mxu0 %v1714
        %4189 = vmatpush1.bf16.msra.mxu0 %v1713
        %4190 = vmatprep.subr.bf16.mxu0 %v1718
        %4191 = vmatpush1.bf16.msra.mxu0 %v1717
        %4192 = vmatprep.subr.bf16.mxu0 %v1722
        %4193 = vmatpush1.bf16.msra.mxu0 %v1721
        %4194 = vmatprep.subr.bf16.mxu0 %v1726
        %4195 = vmatpush1.bf16.msra.mxu0 %v1725
        %4196 = vmatprep.subr.bf16.mxu0 %v1730
        %4197 = vmatpush1.bf16.msra.mxu0 %v1729
        %4198 = vmatprep.subr.bf16.mxu0 %v1734
        %4199 = vmatpush1.bf16.msra.mxu0 %v1733
        %4200 = vmatprep.subr.bf16.mxu0 %v1738
        %4201 = vmatpush1.bf16.msra.mxu0 %v1737
        %4202 = vmatprep.subr.bf16.mxu0 %v1742
        %4203 = vmatpush1.bf16.msra.mxu0 %v1741
        %4204 = vmatprep.mubr.bf16.mxu0 %v2783
        %4205 = vmatmul.mubr.bf16.gmra.mrb[0].mxu0 %v2782
        %v4206 = vpop.f32.mrb[0].mxu0
        %v4207 = vadd.f32 %v4166, %v4206
        %v4208 = vpop.f32.mrb[0].mxu0
        %v4209 = vadd.f32 %v4168, %v4208
        %v4210 = vpop.f32.mrb[0].mxu0
        %v4211 = vpop.f32.mrb[0].mxu0
        %4212 = vdwg.mxu0
        %4213 = vmatprep.subr.bf16.mxu0 %v1746
        %4214 = vmatpush1.bf16.msra.mxu0 %v1745
        %4215 = vmatprep.subr.bf16.mxu0 %v1750
        %4216 = vmatpush1.bf16.msra.mxu0 %v1749
        %4217 = vmatprep.subr.bf16.mxu0 %v1754
        %4218 = vmatpush1.bf16.msra.mxu0 %v1753
        %4219 = vmatprep.subr.bf16.mxu0 %v1758
        %4220 = vmatpush1.bf16.msra.mxu0 %v1757
        %4221 = vmatprep.subr.bf16.mxu0 %v1762
        %4222 = vmatpush1.bf16.msra.mxu0 %v1761
        %4223 = vmatprep.subr.bf16.mxu0 %v1766
        %4224 = vmatpush1.bf16.msra.mxu0 %v1765
        %4225 = vmatprep.subr.bf16.mxu0 %v1770
        %4226 = vmatpush1.bf16.msra.mxu0 %v1769
        %4227 = vmatprep.subr.bf16.mxu0 %v1774
        %4228 = vmatpush1.bf16.msra.mxu0 %v1773
        %4229 = vmatprep.subr.bf16.mxu0 %v1778
        %4230 = vmatpush1.bf16.msra.mxu0 %v1777
        %4231 = vmatprep.subr.bf16.mxu0 %v1782
        %4232 = vmatpush1.bf16.msra.mxu0 %v1781
        %4233 = vmatprep.subr.bf16.mxu0 %v1786
        %4234 = vmatpush1.bf16.msra.mxu0 %v1785
        %4235 = vmatprep.subr.bf16.mxu0 %v1790
        %4236 = vmatpush1.bf16.msra.mxu0 %v1789
        %4237 = vmatprep.subr.bf16.mxu0 %v1794
        %4238 = vmatpush1.bf16.msra.mxu0 %v1793
        %4239 = vmatprep.subr.bf16.mxu0 %v1798
        %4240 = vmatpush1.bf16.msra.mxu0 %v1797
        %4241 = vmatprep.subr.bf16.mxu0 %v1802
        %4242 = vmatpush1.bf16.msra.mxu0 %v1801
        %4243 = vmatprep.subr.bf16.mxu0 %v1806
        %4244 = vmatpush1.bf16.msra.mxu0 %v1805
        %4245 = vmatprep.mubr.bf16.mxu0 %v2785
        %4246 = vmatmul.mubr.bf16.gmra.mrb[0].mxu0 %v2784
        %v4247 = vpop.f32.mrb[0].mxu0
        %v4248 = vadd.f32 %v4207, %v4247
        %v4249 = vpop.f32.mrb[0].mxu0
        %v4250 = vadd.f32 %v4209, %v4249
        %v4251 = vpop.f32.mrb[0].mxu0
        %v4252 = vpop.f32.mrb[0].mxu0
        %4253 = vdwg.mxu0
        %4254 = vmatprep.subr.bf16.mxu0 %v1810
        %4255 = vmatpush1.bf16.msra.mxu0 %v1809
        %4256 = vmatprep.subr.bf16.mxu0 %v1814
        %4257 = vmatpush1.bf16.msra.mxu0 %v1813
        %4258 = vmatprep.subr.bf16.mxu0 %v1818
        %4259 = vmatpush1.bf16.msra.mxu0 %v1817
        %4260 = vmatprep.subr.bf16.mxu0 %v1822
        %4261 = vmatpush1.bf16.msra.mxu0 %v1821
        %4262 = vmatprep.subr.bf16.mxu0 %v1826
        %4263 = vmatpush1.bf16.msra.mxu0 %v1825
        %4264 = vmatprep.subr.bf16.mxu0 %v1830
        %4265 = vmatpush1.bf16.msra.mxu0 %v1829
        %4266 = vmatprep.subr.bf16.mxu0 %v1834
        %4267 = vmatpush1.bf16.msra.mxu0 %v1833
        %4268 = vmatprep.subr.bf16.mxu0 %v1838
        %4269 = vmatpush1.bf16.msra.mxu0 %v1837
        %4270 = vmatprep.subr.bf16.mxu0 %v1842
        %4271 = vmatpush1.bf16.msra.mxu0 %v1841
        %4272 = vmatprep.subr.bf16.mxu0 %v1846
        %4273 = vmatpush1.bf16.msra.mxu0 %v1845
        %4274 = vmatprep.subr.bf16.mxu0 %v1850
        %4275 = vmatpush1.bf16.msra.mxu0 %v1849
        %4276 = vmatprep.subr.bf16.mxu0 %v1854
        %4277 = vmatpush1.bf16.msra.mxu0 %v1853
        %4278 = vmatprep.subr.bf16.mxu0 %v1858
        %4279 = vmatpush1.bf16.msra.mxu0 %v1857
        %4280 = vmatprep.subr.bf16.mxu0 %v1862
        %4281 = vmatpush1.bf16.msra.mxu0 %v1861
        %4282 = vmatprep.subr.bf16.mxu0 %v1866
        %4283 = vmatpush1.bf16.msra.mxu0 %v1865
        %4284 = vmatprep.subr.bf16.mxu0 %v1870
        %4285 = vmatpush1.bf16.msra.mxu0 %v1869
        %4286 = vmatprep.mubr.bf16.mxu0 %v2787
        %4287 = vmatmul.mubr.bf16.gmra.mrb[0].mxu0 %v2786
        %v4288 = vpop.f32.mrb[0].mxu0
        %v4289 = vadd.f32 %v4248, %v4288
        %v4290 = vpop.f32.mrb[0].mxu0
        %v4291 = vadd.f32 %v4250, %v4290
        %v4292 = vpop.f32.mrb[0].mxu0
        %v4293 = vpop.f32.mrb[0].mxu0
        %4294 = vdwg.mxu0
        %4295 = vmatprep.subr.bf16.mxu0 %v1874
        %4296 = vmatpush1.bf16.msra.mxu0 %v1873
        %4297 = vmatprep.subr.bf16.mxu0 %v1878
        %4298 = vmatpush1.bf16.msra.mxu0 %v1877
        %4299 = vmatprep.subr.bf16.mxu0 %v1882
        %4300 = vmatpush1.bf16.msra.mxu0 %v1881
        %4301 = vmatprep.subr.bf16.mxu0 %v1886
        %4302 = vmatpush1.bf16.msra.mxu0 %v1885
        %4303 = vmatprep.subr.bf16.mxu0 %v1890
        %4304 = vmatpush1.bf16.msra.mxu0 %v1889
        %4305 = vmatprep.subr.bf16.mxu0 %v1894
        %4306 = vmatpush1.bf16.msra.mxu0 %v1893
        %4307 = vmatprep.subr.bf16.mxu0 %v1898
        %4308 = vmatpush1.bf16.msra.mxu0 %v1897
        %4309 = vmatprep.subr.bf16.mxu0 %v1902
        %4310 = vmatpush1.bf16.msra.mxu0 %v1901
        %4311 = vmatprep.subr.bf16.mxu0 %v1906
        %4312 = vmatpush1.bf16.msra.mxu0 %v1905
        %4313 = vmatprep.subr.bf16.mxu0 %v1910
        %4314 = vmatpush1.bf16.msra.mxu0 %v1909
        %4315 = vmatprep.subr.bf16.mxu0 %v1914
        %4316 = vmatpush1.bf16.msra.mxu0 %v1913
        %4317 = vmatprep.subr.bf16.mxu0 %v1918
        %4318 = vmatpush1.bf16.msra.mxu0 %v1917
        %4319 = vmatprep.subr.bf16.mxu0 %v1922
        %4320 = vmatpush1.bf16.msra.mxu0 %v1921
        %4321 = vmatprep.subr.bf16.mxu0 %v1926
        %4322 = vmatpush1.bf16.msra.mxu0 %v1925
        %4323 = vmatprep.subr.bf16.mxu0 %v1930
        %4324 = vmatpush1.bf16.msra.mxu0 %v1929
        %4325 = vmatprep.subr.bf16.mxu0 %v1934
        %4326 = vmatpush1.bf16.msra.mxu0 %v1933
        %4327 = vmatprep.mubr.bf16.mxu0 %v2789
        %4328 = vmatmul.mubr.bf16.gmra.mrb[0].mxu0 %v2788
        %v4329 = vpop.f32.mrb[0].mxu0
        %v4330 = vadd.f32 %v4289, %v4329
        %v4331 = vpop.f32.mrb[0].mxu0
        %v4332 = vadd.f32 %v4291, %v4331
        %v4333 = vpop.f32.mrb[0].mxu0
        %v4334 = vpop.f32.mrb[0].mxu0
        %4335 = vdwg.mxu0
        %4336 = vmatprep.subr.bf16.mxu0 %v1938
        %4337 = vmatpush1.bf16.msra.mxu0 %v1937
        %4338 = vmatprep.subr.bf16.mxu0 %v1942
        %4339 = vmatpush1.bf16.msra.mxu0 %v1941
        %4340 = vmatprep.subr.bf16.mxu0 %v1946
        %4341 = vmatpush1.bf16.msra.mxu0 %v1945
        %4342 = vmatprep.subr.bf16.mxu0 %v1950
        %4343 = vmatpush1.bf16.msra.mxu0 %v1949
        %4344 = vmatprep.subr.bf16.mxu0 %v1954
        %4345 = vmatpush1.bf16.msra.mxu0 %v1953
        %4346 = vmatprep.subr.bf16.mxu0 %v1958
        %4347 = vmatpush1.bf16.msra.mxu0 %v1957
        %4348 = vmatprep.subr.bf16.mxu0 %v1962
        %4349 = vmatpush1.bf16.msra.mxu0 %v1961
        %4350 = vmatprep.subr.bf16.mxu0 %v1966
        %4351 = vmatpush1.bf16.msra.mxu0 %v1965
        %4352 = vmatprep.subr.bf16.mxu0 %v1970
        %4353 = vmatpush1.bf16.msra.mxu0 %v1969
        %4354 = vmatprep.subr.bf16.mxu0 %v1974
        %4355 = vmatpush1.bf16.msra.mxu0 %v1973
        %4356 = vmatprep.subr.bf16.mxu0 %v1978
        %4357 = vmatpush1.bf16.msra.mxu0 %v1977
        %4358 = vmatprep.subr.bf16.mxu0 %v1982
        %4359 = vmatpush1.bf16.msra.mxu0 %v1981
        %4360 = vmatprep.subr.bf16.mxu0 %v1986
        %4361 = vmatpush1.bf16.msra.mxu0 %v1985
        %4362 = vmatprep.subr.bf16.mxu0 %v1990
        %4363 = vmatpush1.bf16.msra.mxu0 %v1989
        %4364 = vmatprep.subr.bf16.mxu0 %v1994
        %4365 = vmatpush1.bf16.msra.mxu0 %v1993
        %4366 = vmatprep.subr.bf16.mxu0 %v1998
        %4367 = vmatpush1.bf16.msra.mxu0 %v1997
        %4368 = vmatprep.mubr.bf16.mxu0 %v2791
        %4369 = vmatmul.mubr.bf16.gmra.mrb[0].mxu0 %v2790
        %v4370 = vpop.f32.mrb[0].mxu0
        %v4371 = vadd.f32 %v4330, %v4370
        %v4372 = vpop.f32.mrb[0].mxu0
        %v4373 = vadd.f32 %v4332, %v4372
        %v4374 = vpop.f32.mrb[0].mxu0
        %v4375 = vpop.f32.mrb[0].mxu0
        %4376 = vdwg.mxu0
        %4377 = vmatprep.subr.bf16.mxu0 %v2002
        %4378 = vmatpush1.bf16.msra.mxu0 %v2001
        %4379 = vmatprep.subr.bf16.mxu0 %v2006
        %4380 = vmatpush1.bf16.msra.mxu0 %v2005
        %4381 = vmatprep.subr.bf16.mxu0 %v2010
        %4382 = vmatpush1.bf16.msra.mxu0 %v2009
        %4383 = vmatprep.subr.bf16.mxu0 %v2014
        %4384 = vmatpush1.bf16.msra.mxu0 %v2013
        %4385 = vmatprep.subr.bf16.mxu0 %v2018
        %4386 = vmatpush1.bf16.msra.mxu0 %v2017
        %4387 = vmatprep.subr.bf16.mxu0 %v2022
        %4388 = vmatpush1.bf16.msra.mxu0 %v2021
        %4389 = vmatprep.subr.bf16.mxu0 %v2026
        %4390 = vmatpush1.bf16.msra.mxu0 %v2025
        %4391 = vmatprep.subr.bf16.mxu0 %v2030
        %4392 = vmatpush1.bf16.msra.mxu0 %v2029
        %4393 = vmatprep.subr.bf16.mxu0 %v2034
        %4394 = vmatpush1.bf16.msra.mxu0 %v2033
        %4395 = vmatprep.subr.bf16.mxu0 %v2038
        %4396 = vmatpush1.bf16.msra.mxu0 %v2037
        %4397 = vmatprep.subr.bf16.mxu0 %v2042
        %4398 = vmatpush1.bf16.msra.mxu0 %v2041
        %4399 = vmatprep.subr.bf16.mxu0 %v2046
        %4400 = vmatpush1.bf16.msra.mxu0 %v2045
        %4401 = vmatprep.subr.bf16.mxu0 %v2050
        %4402 = vmatpush1.bf16.msra.mxu0 %v2049
        %4403 = vmatprep.subr.bf16.mxu0 %v2054
        %4404 = vmatpush1.bf16.msra.mxu0 %v2053
        %4405 = vmatprep.subr.bf16.mxu0 %v2058
        %4406 = vmatpush1.bf16.msra.mxu0 %v2057
        %4407 = vmatprep.subr.bf16.mxu0 %v2062
        %4408 = vmatpush1.bf16.msra.mxu0 %v2061
        %4409 = vmatprep.mubr.bf16.mxu0 %v2793
        %4410 = vmatmul.mubr.bf16.gmra.mrb[0].mxu0 %v2792
        %v4411 = vpop.f32.mrb[0].mxu0
        %v4412 = vadd.f32 %v4371, %v4411
        %v4413 = vpop.f32.mrb[0].mxu0
        %v4414 = vadd.f32 %v4373, %v4413
        %v4415 = vpop.f32.mrb[0].mxu0
        %v4416 = vpop.f32.mrb[0].mxu0
        %4417 = vdwg.mxu0
        %4418 = vmatprep.subr.bf16.mxu0 %v2066
        %4419 = vmatpush1.bf16.msra.mxu0 %v2065
        %4420 = vmatprep.subr.bf16.mxu0 %v2070
        %4421 = vmatpush1.bf16.msra.mxu0 %v2069
        %4422 = vmatprep.subr.bf16.mxu0 %v2074
        %4423 = vmatpush1.bf16.msra.mxu0 %v2073
        %4424 = vmatprep.subr.bf16.mxu0 %v2078
        %4425 = vmatpush1.bf16.msra.mxu0 %v2077
        %4426 = vmatprep.subr.bf16.mxu0 %v2082
        %4427 = vmatpush1.bf16.msra.mxu0 %v2081
        %4428 = vmatprep.subr.bf16.mxu0 %v2086
        %4429 = vmatpush1.bf16.msra.mxu0 %v2085
        %4430 = vmatprep.subr.bf16.mxu0 %v2090
        %4431 = vmatpush1.bf16.msra.mxu0 %v2089
        %4432 = vmatprep.subr.bf16.mxu0 %v2094
        %4433 = vmatpush1.bf16.msra.mxu0 %v2093
        %4434 = vmatprep.subr.bf16.mxu0 %v2098
        %4435 = vmatpush1.bf16.msra.mxu0 %v2097
        %4436 = vmatprep.subr.bf16.mxu0 %v2102
        %4437 = vmatpush1.bf16.msra.mxu0 %v2101
        %4438 = vmatprep.subr.bf16.mxu0 %v2106
        %4439 = vmatpush1.bf16.msra.mxu0 %v2105
        %4440 = vmatprep.subr.bf16.mxu0 %v2110
        %4441 = vmatpush1.bf16.msra.mxu0 %v2109
        %4442 = vmatprep.subr.bf16.mxu0 %v2114
        %4443 = vmatpush1.bf16.msra.mxu0 %v2113
        %4444 = vmatprep.subr.bf16.mxu0 %v2118
        %4445 = vmatpush1.bf16.msra.mxu0 %v2117
        %4446 = vmatprep.subr.bf16.mxu0 %v2122
        %4447 = vmatpush1.bf16.msra.mxu0 %v2121
        %4448 = vmatprep.subr.bf16.mxu0 %v2126
        %4449 = vmatpush1.bf16.msra.mxu0 %v2125
        %4450 = vmatprep.mubr.bf16.mxu0 %v2795
        %4451 = vmatmul.mubr.bf16.gmra.mrb[0].mxu0 %v2794
        %v4452 = vpop.f32.mrb[0].mxu0
        %v4453 = vadd.f32 %v4412, %v4452
        %v4454 = vpop.f32.mrb[0].mxu0
        %v4455 = vadd.f32 %v4414, %v4454
        %v4456 = vpop.f32.mrb[0].mxu0
        %v4457 = vpop.f32.mrb[0].mxu0
        %4458 = vdwg.mxu0
        %4459 = vmatprep.subr.bf16.mxu0 %v2130
        %4460 = vmatpush1.bf16.msra.mxu0 %v2129
        %4461 = vmatprep.subr.bf16.mxu0 %v2134
        %4462 = vmatpush1.bf16.msra.mxu0 %v2133
        %4463 = vmatprep.subr.bf16.mxu0 %v2138
        %4464 = vmatpush1.bf16.msra.mxu0 %v2137
        %4465 = vmatprep.subr.bf16.mxu0 %v2142
        %4466 = vmatpush1.bf16.msra.mxu0 %v2141
        %4467 = vmatprep.subr.bf16.mxu0 %v2146
        %4468 = vmatpush1.bf16.msra.mxu0 %v2145
        %4469 = vmatprep.subr.bf16.mxu0 %v2150
        %4470 = vmatpush1.bf16.msra.mxu0 %v2149
        %4471 = vmatprep.subr.bf16.mxu0 %v2154
        %4472 = vmatpush1.bf16.msra.mxu0 %v2153
        %4473 = vmatprep.subr.bf16.mxu0 %v2158
        %4474 = vmatpush1.bf16.msra.mxu0 %v2157
        %4475 = vmatprep.subr.bf16.mxu0 %v2162
        %4476 = vmatpush1.bf16.msra.mxu0 %v2161
        %4477 = vmatprep.subr.bf16.mxu0 %v2166
        %4478 = vmatpush1.bf16.msra.mxu0 %v2165
        %4479 = vmatprep.subr.bf16.mxu0 %v2170
        %4480 = vmatpush1.bf16.msra.mxu0 %v2169
        %4481 = vmatprep.subr.bf16.mxu0 %v2174
        %4482 = vmatpush1.bf16.msra.mxu0 %v2173
        %4483 = vmatprep.subr.bf16.mxu0 %v2178
        %4484 = vmatpush1.bf16.msra.mxu0 %v2177
        %4485 = vmatprep.subr.bf16.mxu0 %v2182
        %4486 = vmatpush1.bf16.msra.mxu0 %v2181
        %4487 = vmatprep.subr.bf16.mxu0 %v2186
        %4488 = vmatpush1.bf16.msra.mxu0 %v2185
        %4489 = vmatprep.subr.bf16.mxu0 %v2190
        %4490 = vmatpush1.bf16.msra.mxu0 %v2189
        %4491 = vmatprep.mubr.bf16.mxu0 %v2797
        %4492 = vmatmul.mubr.bf16.gmra.mrb[0].mxu0 %v2796
        %v4493 = vpop.f32.mrb[0].mxu0
        %v4494 = vadd.f32 %v4453, %v4493
        %v4495 = vpop.f32.mrb[0].mxu0
        %v4496 = vadd.f32 %v4455, %v4495
        %v4497 = vpop.f32.mrb[0].mxu0
        %v4498 = vpop.f32.mrb[0].mxu0
        %4499 = vdwg.mxu0
        %4500 = vmatprep.subr.bf16.mxu0 %v2194
        %4501 = vmatpush1.bf16.msra.mxu0 %v2193
        %4502 = vmatprep.subr.bf16.mxu0 %v2198
        %4503 = vmatpush1.bf16.msra.mxu0 %v2197
        %4504 = vmatprep.subr.bf16.mxu0 %v2202
        %4505 = vmatpush1.bf16.msra.mxu0 %v2201
        %4506 = vmatprep.subr.bf16.mxu0 %v2206
        %4507 = vmatpush1.bf16.msra.mxu0 %v2205
        %4508 = vmatprep.subr.bf16.mxu0 %v2210
        %4509 = vmatpush1.bf16.msra.mxu0 %v2209
        %4510 = vmatprep.subr.bf16.mxu0 %v2214
        %4511 = vmatpush1.bf16.msra.mxu0 %v2213
        %4512 = vmatprep.subr.bf16.mxu0 %v2218
        %4513 = vmatpush1.bf16.msra.mxu0 %v2217
        %4514 = vmatprep.subr.bf16.mxu0 %v2222
        %4515 = vmatpush1.bf16.msra.mxu0 %v2221
        %4516 = vmatprep.subr.bf16.mxu0 %v2226
        %4517 = vmatpush1.bf16.msra.mxu0 %v2225
        %4518 = vmatprep.subr.bf16.mxu0 %v2230
        %4519 = vmatpush1.bf16.msra.mxu0 %v2229
        %4520 = vmatprep.subr.bf16.mxu0 %v2234
        %4521 = vmatpush1.bf16.msra.mxu0 %v2233
        %4522 = vmatprep.subr.bf16.mxu0 %v2238
        %4523 = vmatpush1.bf16.msra.mxu0 %v2237
        %4524 = vmatprep.subr.bf16.mxu0 %v2242
        %4525 = vmatpush1.bf16.msra.mxu0 %v2241
        %4526 = vmatprep.subr.bf16.mxu0 %v2246
        %4527 = vmatpush1.bf16.msra.mxu0 %v2245
        %4528 = vmatprep.subr.bf16.mxu0 %v2250
        %4529 = vmatpush1.bf16.msra.mxu0 %v2249
        %4530 = vmatprep.subr.bf16.mxu0 %v2254
        %4531 = vmatpush1.bf16.msra.mxu0 %v2253
        %4532 = vmatprep.mubr.bf16.mxu0 %v2799
        %4533 = vmatmul.mubr.bf16.gmra.mrb[0].mxu0 %v2798
        %v4534 = vpop.f32.mrb[0].mxu0
        %v4535 = vadd.f32 %v4494, %v4534
        %v4536 = vpop.f32.mrb[0].mxu0
        %v4537 = vadd.f32 %v4496, %v4536
        %v4538 = vpop.f32.mrb[0].mxu0
        %v4539 = vpop.f32.mrb[0].mxu0
        %4540 = vdwg.mxu0
        %4541 = vmatprep.subr.bf16.mxu0 %v2258
        %4542 = vmatpush1.bf16.msra.mxu0 %v2257
        %4543 = vmatprep.subr.bf16.mxu0 %v2262
        %4544 = vmatpush1.bf16.msra.mxu0 %v2261
        %4545 = vmatprep.subr.bf16.mxu0 %v2266
        %4546 = vmatpush1.bf16.msra.mxu0 %v2265
        %4547 = vmatprep.subr.bf16.mxu0 %v2270
        %4548 = vmatpush1.bf16.msra.mxu0 %v2269
        %4549 = vmatprep.subr.bf16.mxu0 %v2274
        %4550 = vmatpush1.bf16.msra.mxu0 %v2273
        %4551 = vmatprep.subr.bf16.mxu0 %v2278
        %4552 = vmatpush1.bf16.msra.mxu0 %v2277
        %4553 = vmatprep.subr.bf16.mxu0 %v2282
        %4554 = vmatpush1.bf16.msra.mxu0 %v2281
        %4555 = vmatprep.subr.bf16.mxu0 %v2286
        %4556 = vmatpush1.bf16.msra.mxu0 %v2285
        %4557 = vmatprep.subr.bf16.mxu0 %v2290
        %4558 = vmatpush1.bf16.msra.mxu0 %v2289
        %4559 = vmatprep.subr.bf16.mxu0 %v2294
        %4560 = vmatpush1.bf16.msra.mxu0 %v2293
        %4561 = vmatprep.subr.bf16.mxu0 %v2298
        %4562 = vmatpush1.bf16.msra.mxu0 %v2297
        %4563 = vmatprep.subr.bf16.mxu0 %v2302
        %4564 = vmatpush1.bf16.msra.mxu0 %v2301
        %4565 = vmatprep.subr.bf16.mxu0 %v2306
        %4566 = vmatpush1.bf16.msra.mxu0 %v2305
        %4567 = vmatprep.subr.bf16.mxu0 %v2310
        %4568 = vmatpush1.bf16.msra.mxu0 %v2309
        %4569 = vmatprep.subr.bf16.mxu0 %v2314
        %4570 = vmatpush1.bf16.msra.mxu0 %v2313
        %4571 = vmatprep.subr.bf16.mxu0 %v2318
        %4572 = vmatpush1.bf16.msra.mxu0 %v2317
        %4573 = vmatprep.mubr.bf16.mxu0 %v2801
        %4574 = vmatmul.mubr.bf16.gmra.mrb[0].mxu0 %v2800
        %v4575 = vpop.f32.mrb[0].mxu0
        %v4576 = vadd.f32 %v4535, %v4575
        %v4577 = vpop.f32.mrb[0].mxu0
        %v4578 = vadd.f32 %v4537, %v4577
        %v4579 = vpop.f32.mrb[0].mxu0
        %v4580 = vpop.f32.mrb[0].mxu0
        %4581 = vdwg.mxu0
        %4582 = vmatprep.subr.bf16.mxu0 %v2322
        %4583 = vmatpush1.bf16.msra.mxu0 %v2321
        %4584 = vmatprep.subr.bf16.mxu0 %v2326
        %4585 = vmatpush1.bf16.msra.mxu0 %v2325
        %4586 = vmatprep.subr.bf16.mxu0 %v2330
        %4587 = vmatpush1.bf16.msra.mxu0 %v2329
        %4588 = vmatprep.subr.bf16.mxu0 %v2334
        %4589 = vmatpush1.bf16.msra.mxu0 %v2333
        %4590 = vmatprep.subr.bf16.mxu0 %v2338
        %4591 = vmatpush1.bf16.msra.mxu0 %v2337
        %4592 = vmatprep.subr.bf16.mxu0 %v2342
        %4593 = vmatpush1.bf16.msra.mxu0 %v2341
        %4594 = vmatprep.subr.bf16.mxu0 %v2346
        %4595 = vmatpush1.bf16.msra.mxu0 %v2345
        %4596 = vmatprep.subr.bf16.mxu0 %v2350
        %4597 = vmatpush1.bf16.msra.mxu0 %v2349
        %4598 = vmatprep.subr.bf16.mxu0 %v2354
        %4599 = vmatpush1.bf16.msra.mxu0 %v2353
        %4600 = vmatprep.subr.bf16.mxu0 %v2358
        %4601 = vmatpush1.bf16.msra.mxu0 %v2357
        %4602 = vmatprep.subr.bf16.mxu0 %v2362
        %4603 = vmatpush1.bf16.msra.mxu0 %v2361
        %4604 = vmatprep.subr.bf16.mxu0 %v2366
        %4605 = vmatpush1.bf16.msra.mxu0 %v2365
        %4606 = vmatprep.subr.bf16.mxu0 %v2370
        %4607 = vmatpush1.bf16.msra.mxu0 %v2369
        %4608 = vmatprep.subr.bf16.mxu0 %v2374
        %4609 = vmatpush1.bf16.msra.mxu0 %v2373
        %4610 = vmatprep.subr.bf16.mxu0 %v2378
        %4611 = vmatpush1.bf16.msra.mxu0 %v2377
        %4612 = vmatprep.subr.bf16.mxu0 %v2382
        %4613 = vmatpush1.bf16.msra.mxu0 %v2381
        %4614 = vmatprep.mubr.bf16.mxu0 %v2803
        %4615 = vmatmul.mubr.bf16.gmra.mrb[0].mxu0 %v2802
        %v4616 = vpop.f32.mrb[0].mxu0
        %v4617 = vadd.f32 %v4576, %v4616
        %v4618 = vpop.f32.mrb[0].mxu0
        %v4619 = vadd.f32 %v4578, %v4618
        %v4620 = vpop.f32.mrb[0].mxu0
        %v4621 = vpop.f32.mrb[0].mxu0
        %4622 = vdwg.mxu0
        %4623 = vmatprep.subr.bf16.mxu0 %v2386
        %4624 = vmatpush1.bf16.msra.mxu0 %v2385
        %4625 = vmatprep.subr.bf16.mxu0 %v2390
        %4626 = vmatpush1.bf16.msra.mxu0 %v2389
        %4627 = vmatprep.subr.bf16.mxu0 %v2394
        %4628 = vmatpush1.bf16.msra.mxu0 %v2393
        %4629 = vmatprep.subr.bf16.mxu0 %v2398
        %4630 = vmatpush1.bf16.msra.mxu0 %v2397
        %4631 = vmatprep.subr.bf16.mxu0 %v2402
        %4632 = vmatpush1.bf16.msra.mxu0 %v2401
        %4633 = vmatprep.subr.bf16.mxu0 %v2406
        %4634 = vmatpush1.bf16.msra.mxu0 %v2405
        %4635 = vmatprep.subr.bf16.mxu0 %v2410
        %4636 = vmatpush1.bf16.msra.mxu0 %v2409
        %4637 = vmatprep.subr.bf16.mxu0 %v2414
        %4638 = vmatpush1.bf16.msra.mxu0 %v2413
        %4639 = vmatprep.subr.bf16.mxu0 %v2418
        %4640 = vmatpush1.bf16.msra.mxu0 %v2417
        %4641 = vmatprep.subr.bf16.mxu0 %v2422
        %4642 = vmatpush1.bf16.msra.mxu0 %v2421
        %4643 = vmatprep.subr.bf16.mxu0 %v2426
        %4644 = vmatpush1.bf16.msra.mxu0 %v2425
        %4645 = vmatprep.subr.bf16.mxu0 %v2430
        %4646 = vmatpush1.bf16.msra.mxu0 %v2429
        %4647 = vmatprep.subr.bf16.mxu0 %v2434
        %4648 = vmatpush1.bf16.msra.mxu0 %v2433
        %4649 = vmatprep.subr.bf16.mxu0 %v2438
        %4650 = vmatpush1.bf16.msra.mxu0 %v2437
        %4651 = vmatprep.subr.bf16.mxu0 %v2442
        %4652 = vmatpush1.bf16.msra.mxu0 %v2441
        %4653 = vmatprep.subr.bf16.mxu0 %v2446
        %4654 = vmatpush1.bf16.msra.mxu0 %v2445
        %4655 = vmatprep.mubr.bf16.mxu0 %v2805
        %4656 = vmatmul.mubr.bf16.gmra.mrb[0].mxu0 %v2804
        %v4657 = vpop.f32.mrb[0].mxu0
        %v4658 = vadd.f32 %v4617, %v4657
        %v4659 = vpop.f32.mrb[0].mxu0
        %v4660 = vadd.f32 %v4619, %v4659
        %v4661 = vpop.f32.mrb[0].mxu0
        %v4662 = vpop.f32.mrb[0].mxu0
        %4663 = vdwg.mxu0
        %4664 = vmatprep.subr.bf16.mxu0 %v2450
        %4665 = vmatpush1.bf16.msra.mxu0 %v2449
        %4666 = vmatprep.subr.bf16.mxu0 %v2454
        %4667 = vmatpush1.bf16.msra.mxu0 %v2453
        %4668 = vmatprep.subr.bf16.mxu0 %v2458
        %4669 = vmatpush1.bf16.msra.mxu0 %v2457
        %4670 = vmatprep.subr.bf16.mxu0 %v2462
        %4671 = vmatpush1.bf16.msra.mxu0 %v2461
        %4672 = vmatprep.subr.bf16.mxu0 %v2466
        %4673 = vmatpush1.bf16.msra.mxu0 %v2465
        %4674 = vmatprep.subr.bf16.mxu0 %v2470
        %4675 = vmatpush1.bf16.msra.mxu0 %v2469
        %4676 = vmatprep.subr.bf16.mxu0 %v2474
        %4677 = vmatpush1.bf16.msra.mxu0 %v2473
        %4678 = vmatprep.subr.bf16.mxu0 %v2478
        %4679 = vmatpush1.bf16.msra.mxu0 %v2477
        %4680 = vmatprep.subr.bf16.mxu0 %v2482
        %4681 = vmatpush1.bf16.msra.mxu0 %v2481
        %4682 = vmatprep.subr.bf16.mxu0 %v2486
        %4683 = vmatpush1.bf16.msra.mxu0 %v2485
        %4684 = vmatprep.subr.bf16.mxu0 %v2490
        %4685 = vmatpush1.bf16.msra.mxu0 %v2489
        %4686 = vmatprep.subr.bf16.mxu0 %v2494
        %4687 = vmatpush1.bf16.msra.mxu0 %v2493
        %4688 = vmatprep.subr.bf16.mxu0 %v2498
        %4689 = vmatpush1.bf16.msra.mxu0 %v2497
        %4690 = vmatprep.subr.bf16.mxu0 %v2502
        %4691 = vmatpush1.bf16.msra.mxu0 %v2501
        %4692 = vmatprep.subr.bf16.mxu0 %v2506
        %4693 = vmatpush1.bf16.msra.mxu0 %v2505
        %4694 = vmatprep.subr.bf16.mxu0 %v2510
        %4695 = vmatpush1.bf16.msra.mxu0 %v2509
        %4696 = vmatprep.mubr.bf16.mxu0 %v2807
        %4697 = vmatmul.mubr.bf16.gmra.mrb[0].mxu0 %v2806
        %v4698 = vpop.f32.mrb[0].mxu0
        %v4699 = vadd.f32 %v4658, %v4698
        %v4700 = vpop.f32.mrb[0].mxu0
        %v4701 = vadd.f32 %v4660, %v4700
        %v4702 = vpop.f32.mrb[0].mxu0
        %v4703 = vpop.f32.mrb[0].mxu0
        %4704 = vdwg.mxu0
        %4705 = vmatprep.subr.bf16.mxu0 %v2514
        %4706 = vmatpush1.bf16.msra.mxu0 %v2513
        %4707 = vmatprep.subr.bf16.mxu0 %v2518
        %4708 = vmatpush1.bf16.msra.mxu0 %v2517
        %4709 = vmatprep.subr.bf16.mxu0 %v2522
        %4710 = vmatpush1.bf16.msra.mxu0 %v2521
        %4711 = vmatprep.subr.bf16.mxu0 %v2526
        %4712 = vmatpush1.bf16.msra.mxu0 %v2525
        %4713 = vmatprep.subr.bf16.mxu0 %v2530
        %4714 = vmatpush1.bf16.msra.mxu0 %v2529
        %4715 = vmatprep.subr.bf16.mxu0 %v2534
        %4716 = vmatpush1.bf16.msra.mxu0 %v2533
        %4717 = vmatprep.subr.bf16.mxu0 %v2538
        %4718 = vmatpush1.bf16.msra.mxu0 %v2537
        %4719 = vmatprep.subr.bf16.mxu0 %v2542
        %4720 = vmatpush1.bf16.msra.mxu0 %v2541
        %4721 = vmatprep.subr.bf16.mxu0 %v2546
        %4722 = vmatpush1.bf16.msra.mxu0 %v2545
        %4723 = vmatprep.subr.bf16.mxu0 %v2550
        %4724 = vmatpush1.bf16.msra.mxu0 %v2549
        %4725 = vmatprep.subr.bf16.mxu0 %v2554
        %4726 = vmatpush1.bf16.msra.mxu0 %v2553
        %4727 = vmatprep.subr.bf16.mxu0 %v2558
        %4728 = vmatpush1.bf16.msra.mxu0 %v2557
        %4729 = vmatprep.subr.bf16.mxu0 %v2562
        %4730 = vmatpush1.bf16.msra.mxu0 %v2561
        %4731 = vmatprep.subr.bf16.mxu0 %v2566
        %4732 = vmatpush1.bf16.msra.mxu0 %v2565
        %4733 = vmatprep.subr.bf16.mxu0 %v2570
        %4734 = vmatpush1.bf16.msra.mxu0 %v2569
        %4735 = vmatprep.subr.bf16.mxu0 %v2574
        %4736 = vmatpush1.bf16.msra.mxu0 %v2573
        %4737 = vmatprep.mubr.bf16.mxu0 %v2809
        %4738 = vmatmul.mubr.bf16.gmra.mrb[0].mxu0 %v2808
        %v4739 = vpop.f32.mrb[0].mxu0
        %v4740 = vadd.f32 %v4699, %v4739
        %v4741 = vpop.f32.mrb[0].mxu0
        %v4742 = vadd.f32 %v4701, %v4741
        %v4743 = vpop.f32.mrb[0].mxu0
        %v4744 = vpop.f32.mrb[0].mxu0
        %4745 = vdwg.mxu0
        %4746 = vmatprep.subr.bf16.mxu0 %v2578
        %4747 = vmatpush1.bf16.msra.mxu0 %v2577
        %4748 = vmatprep.subr.bf16.mxu0 %v2582
        %4749 = vmatpush1.bf16.msra.mxu0 %v2581
        %4750 = vmatprep.subr.bf16.mxu0 %v2586
        %4751 = vmatpush1.bf16.msra.mxu0 %v2585
        %4752 = vmatprep.subr.bf16.mxu0 %v2590
        %4753 = vmatpush1.bf16.msra.mxu0 %v2589
        %4754 = vmatprep.subr.bf16.mxu0 %v2594
        %4755 = vmatpush1.bf16.msra.mxu0 %v2593
        %4756 = vmatprep.subr.bf16.mxu0 %v2598
        %4757 = vmatpush1.bf16.msra.mxu0 %v2597
        %4758 = vmatprep.subr.bf16.mxu0 %v2602
        %4759 = vmatpush1.bf16.msra.mxu0 %v2601
        %4760 = vmatprep.subr.bf16.mxu0 %v2606
        %4761 = vmatpush1.bf16.msra.mxu0 %v2605
        %4762 = vmatprep.subr.bf16.mxu0 %v2610
        %4763 = vmatpush1.bf16.msra.mxu0 %v2609
        %4764 = vmatprep.subr.bf16.mxu0 %v2614
        %4765 = vmatpush1.bf16.msra.mxu0 %v2613
        %4766 = vmatprep.subr.bf16.mxu0 %v2618
        %4767 = vmatpush1.bf16.msra.mxu0 %v2617
        %4768 = vmatprep.subr.bf16.mxu0 %v2622
        %4769 = vmatpush1.bf16.msra.mxu0 %v2621
        %4770 = vmatprep.subr.bf16.mxu0 %v2626
        %4771 = vmatpush1.bf16.msra.mxu0 %v2625
        %4772 = vmatprep.subr.bf16.mxu0 %v2630
        %4773 = vmatpush1.bf16.msra.mxu0 %v2629
        %4774 = vmatprep.subr.bf16.mxu0 %v2634
        %4775 = vmatpush1.bf16.msra.mxu0 %v2633
        %4776 = vmatprep.subr.bf16.mxu0 %v2638
        %4777 = vmatpush1.bf16.msra.mxu0 %v2637
        %4778 = vmatprep.mubr.bf16.mxu0 %v2811
        %4779 = vmatmul.mubr.bf16.gmra.mrb[0].mxu0 %v2810
        %v4780 = vpop.f32.mrb[0].mxu0
        %v4781 = vadd.f32 %v4740, %v4780
        %v4782 = vpop.f32.mrb[0].mxu0
        %v4783 = vadd.f32 %v4742, %v4782
        %v4784 = vpop.f32.mrb[0].mxu0
        %v4785 = vpop.f32.mrb[0].mxu0
        %4786 = vdwg.mxu0
        %4787 = vmatprep.subr.bf16.mxu0 %v2642
        %4788 = vmatpush1.bf16.msra.mxu0 %v2641
        %4789 = vmatprep.subr.bf16.mxu0 %v2646
        %4790 = vmatpush1.bf16.msra.mxu0 %v2645
        %4791 = vmatprep.subr.bf16.mxu0 %v2650
        %4792 = vmatpush1.bf16.msra.mxu0 %v2649
        %4793 = vmatprep.subr.bf16.mxu0 %v2654
        %4794 = vmatpush1.bf16.msra.mxu0 %v2653
        %4795 = vmatprep.subr.bf16.mxu0 %v2658
        %4796 = vmatpush1.bf16.msra.mxu0 %v2657
        %4797 = vmatprep.subr.bf16.mxu0 %v2662
        %4798 = vmatpush1.bf16.msra.mxu0 %v2661
        %4799 = vmatprep.subr.bf16.mxu0 %v2666
        %4800 = vmatpush1.bf16.msra.mxu0 %v2665
        %4801 = vmatprep.subr.bf16.mxu0 %v2670
        %4802 = vmatpush1.bf16.msra.mxu0 %v2669
        %4803 = vmatprep.subr.bf16.mxu0 0
        %4804 = vmatpush1.bf16.msra.mxu0 0
        %4805 = vmatprep.subr.bf16.mxu0 0
        %4806 = vmatpush1.bf16.msra.mxu0 0
        %4807 = vmatprep.subr.bf16.mxu0 0
        %4808 = vmatpush1.bf16.msra.mxu0 0
        %4809 = vmatprep.subr.bf16.mxu0 0
        %4810 = vmatpush1.bf16.msra.mxu0 0
        %4811 = vmatprep.subr.bf16.mxu0 0
        %4812 = vmatpush1.bf16.msra.mxu0 0
        %4813 = vmatprep.subr.bf16.mxu0 0
        %4814 = vmatpush1.bf16.msra.mxu0 0
        %4815 = vmatprep.subr.bf16.mxu0 0
        %4816 = vmatpush1.bf16.msra.mxu0 0
        %4817 = vmatprep.subr.bf16.mxu0 0
        %4818 = vmatpush1.bf16.msra.mxu0 0
        %4819 = vmatprep.mubr.bf16.mxu0 0
        %4820 = vmatmul.mubr.bf16.gmra.mrb[0].mxu0 %v2812
        %v4821 = vpop.f32.mrb[0].mxu0
        %v4822 = vadd.f32 %v4781, %v4821
        %v4823 = vpop.f32.mrb[0].mxu0
        %v4824 = vadd.f32 %v4783, %v4823
        %v4825 = vpop.f32.mrb[0].mxu0
        %v4826 = vpop.f32.mrb[0].mxu0
        %4827 = vdwg.mxu0
        %v4828 = vld [vmem:[%s330] sm:$0xf]
        %v4830 = vlaneseq
        %v4831 = vshrl.u32 %v4830, 7
        %v4832 = vsub.s32 0, %v4831
        %v4833 = vrot.slane %v4828, %v4832
        %v4834 = vlaneseq
        %v4835 = vshrl.u32 %v4834, 7
        %v4836 = vsub.s32 1, %v4835
        %v4837 = vrot.slane %v4828, %v4836
        %v4838 = vlaneseq
        %v4839 = vshrl.u32 %v4838, 7
        %v4840 = vsub.s32 2, %v4839
        %v4841 = vrot.slane %v4828, %v4840
        %v4842 = vlaneseq
        %v4843 = vshrl.u32 %v4842, 7
        %v4844 = vsub.s32 3, %v4843
        %v4845 = vrot.slane %v4828, %v4844
        %v4850 = vmul.f32 %v3838, %v4833
        %v4851 = vmul.f32 %v3840, %v4837
        %v4852 = vmul.f32 %v4822, %v4841
        %v4853 = vmul.f32 %v4824, %v4845
        %v4854 = vld [vmem:[%s339] sm:$0xf]
        %v4856 = vlaneseq
        %v4857 = vshrl.u32 %v4856, 7
        %v4858 = vsub.s32 0, %v4857
        %v4859 = vrot.slane %v4854, %v4858
        %v4860 = vlaneseq
        %v4861 = vshrl.u32 %v4860, 7
        %v4862 = vsub.s32 1, %v4861
        %v4863 = vrot.slane %v4854, %v4862
        %v4864 = vlaneseq
        %v4865 = vshrl.u32 %v4864, 7
        %v4866 = vsub.s32 2, %v4865
        %v4867 = vrot.slane %v4854, %v4866
        %v4868 = vlaneseq
        %v4869 = vshrl.u32 %v4868, 7
        %v4870 = vsub.s32 3, %v4869
        %v4871 = vrot.slane %v4854, %v4870
        %v4876 = vadd.f32 %v4850, %v4859
        %v4877 = vadd.f32 %v4851, %v4863
        %v4878 = vadd.f32 %v4852, %v4867
        %v4879 = vadd.f32 %v4853, %v4871
        %v4880 = vmax.f32 %v4876, 0.0
        %v4881 = vmax.f32 %v4877, 0.0
        %v4882 = vmax.f32 %v4878, 0.0
        %v4883 = vmax.f32 %v4879, 0.0
        %v4884 = vld [vmem:[%s405] sm:$0xff]
        %v4885 = vld [vmem:[%s405 + $0x8] sm:$0xff]
        %v4886 = vld [vmem:[%s405 + $0x10] sm:$0xff]
        %v4887 = vld [vmem:[%s405 + $0x18] sm:$0xff]
        %v4888 = vpack.c.bf16 %v4880, %v4880
        %v4889 = vpack.c.bf16 %v4881, %v4881
        %v4890 = vpack.c.bf16 %v4882, %v4882
        %v4891 = vpack.c.bf16 %v4883, %v4883
        %v4892 = vld [vmem:[%s348] sm:$0xff]
        %v4893 = vld [vmem:[%s348 + $0x8] sm:$0xff]
        %v4894 = vld [vmem:[%s348 + $0x10] sm:$0xff]
        %v4895 = vld [vmem:[%s348 + $0x18] sm:$0xff]
        %v4896 = vld [vmem:[%s348 + $0x20] sm:$0xff]
        %v4897 = vld [vmem:[%s348 + $0x28] sm:$0xff]
        %v4898 = vld [vmem:[%s348 + $0x30] sm:$0xff]
        %v4899 = vld [vmem:[%s348 + $0x38] sm:$0xff]
        %v4900 = vld [vmem:[%s348 + $0x40] sm:$0xff]
        %v4901 = vld [vmem:[%s348 + $0x48] sm:$0xff]
        %v4902 = vld [vmem:[%s348 + $0x50] sm:$0xff]
        %v4903 = vld [vmem:[%s348 + $0x58] sm:$0xff]
        %v4904 = vld [vmem:[%s348 + $0x60] sm:$0xff]
        %v4905 = vld [vmem:[%s348 + $0x68] sm:$0xff]
        %v4906 = vld [vmem:[%s348 + $0x70] sm:$0xff]
        %v4907 = vld [vmem:[%s348 + $0x78] sm:$0xff]
        %v4908 = vld [vmem:[%s348 + $0x80] sm:$0xff]
        %v4909 = vld [vmem:[%s348 + $0x88] sm:$0xff]
        %v4910 = vld [vmem:[%s348 + $0x90] sm:$0xff]
        %v4911 = vld [vmem:[%s348 + $0x98] sm:$0xff]
        %v4912 = vld [vmem:[%s348 + $0xa0] sm:$0xff]
        %v4913 = vld [vmem:[%s348 + $0xa8] sm:$0xff]
        %v4914 = vld [vmem:[%s348 + $0xb0] sm:$0xff]
        %v4915 = vld [vmem:[%s348 + $0xb8] sm:$0xff]
        %v4916 = vld [vmem:[%s348 + $0xc0] sm:$0xff]
        %v4917 = vld [vmem:[%s348 + $0xc8] sm:$0xff]
        %v4918 = vld [vmem:[%s348 + $0xd0] sm:$0xff]
        %v4919 = vld [vmem:[%s348 + $0xd8] sm:$0xff]
        %v4920 = vld [vmem:[%s348 + $0xe0] sm:$0xff]
        %v4921 = vld [vmem:[%s348 + $0xe8] sm:$0xff]
        %v4922 = vld [vmem:[%s348 + $0xf0] sm:$0xff]
        %v4923 = vld [vmem:[%s348 + $0xf8] sm:$0xff]
        %v4924 = vld [vmem:[%s348 + $0x100] sm:$0xff]
        %v4925 = vld [vmem:[%s348 + $0x108] sm:$0xff]
        %v4926 = vld [vmem:[%s348 + $0x110] sm:$0xff]
        %v4927 = vld [vmem:[%s348 + $0x118] sm:$0xff]
        %v4928 = vld [vmem:[%s348 + $0x120] sm:$0xff]
        %v4929 = vld [vmem:[%s348 + $0x128] sm:$0xff]
        %v4930 = vld [vmem:[%s348 + $0x130] sm:$0xff]
        %v4931 = vld [vmem:[%s348 + $0x138] sm:$0xff]
        %v4932 = vld [vmem:[%s348 + $0x140] sm:$0xff]
        %v4933 = vld [vmem:[%s348 + $0x148] sm:$0xff]
        %v4934 = vld [vmem:[%s348 + $0x150] sm:$0xff]
        %v4935 = vld [vmem:[%s348 + $0x158] sm:$0xff]
        %v4936 = vld [vmem:[%s348 + $0x160] sm:$0xff]
        %v4937 = vld [vmem:[%s348 + $0x168] sm:$0xff]
        %v4938 = vld [vmem:[%s348 + $0x170] sm:$0xff]
        %v4939 = vld [vmem:[%s348 + $0x178] sm:$0xff]
        %v4940 = vld [vmem:[%s348 + $0x180] sm:$0xff]
        %v4941 = vld [vmem:[%s348 + $0x188] sm:$0xff]
        %v4942 = vld [vmem:[%s348 + $0x190] sm:$0xff]
        %v4943 = vld [vmem:[%s348 + $0x198] sm:$0xff]
        %v4944 = vld [vmem:[%s348 + $0x1a0] sm:$0xff]
        %v4945 = vld [vmem:[%s348 + $0x1a8] sm:$0xff]
        %v4946 = vld [vmem:[%s348 + $0x1b0] sm:$0xff]
        %v4947 = vld [vmem:[%s348 + $0x1b8] sm:$0xff]
        %v4948 = vld [vmem:[%s348 + $0x1c0] sm:$0xff]
        %v4949 = vld [vmem:[%s348 + $0x1c8] sm:$0xff]
        %v4950 = vld [vmem:[%s348 + $0x1d0] sm:$0xff]
        %v4951 = vld [vmem:[%s348 + $0x1d8] sm:$0xff]
        %v4952 = vld [vmem:[%s348 + $0x1e0] sm:$0xff]
        %v4953 = vld [vmem:[%s348 + $0x1e8] sm:$0xff]
        %v4954 = vld [vmem:[%s348 + $0x1f0] sm:$0xff]
        %v4955 = vld [vmem:[%s348 + $0x1f8] sm:$0xff]
        %v4956 = vld [vmem:[%s348 + $0x200] sm:$0xff]
        %v4957 = vld [vmem:[%s348 + $0x208] sm:$0xff]
        %v4958 = vld [vmem:[%s348 + $0x210] sm:$0xff]
        %v4959 = vld [vmem:[%s348 + $0x218] sm:$0xff]
        %v4960 = vld [vmem:[%s348 + $0x220] sm:$0xff]
        %v4961 = vld [vmem:[%s348 + $0x228] sm:$0xff]
        %v4962 = vld [vmem:[%s348 + $0x230] sm:$0xff]
        %v4963 = vld [vmem:[%s348 + $0x238] sm:$0xff]
        %v4964 = vld [vmem:[%s348 + $0x240] sm:$0xff]
        %v4965 = vld [vmem:[%s348 + $0x248] sm:$0xff]
        %v4966 = vld [vmem:[%s348 + $0x250] sm:$0xff]
        %v4967 = vld [vmem:[%s348 + $0x258] sm:$0xff]
        %v4968 = vld [vmem:[%s348 + $0x260] sm:$0xff]
        %v4969 = vld [vmem:[%s348 + $0x268] sm:$0xff]
        %v4970 = vld [vmem:[%s348 + $0x270] sm:$0xff]
        %v4971 = vld [vmem:[%s348 + $0x278] sm:$0xff]
        %v4972 = vld [vmem:[%s348 + $0x280] sm:$0xff]
        %v4973 = vld [vmem:[%s348 + $0x288] sm:$0xff]
        %v4974 = vld [vmem:[%s348 + $0x290] sm:$0xff]
        %v4975 = vld [vmem:[%s348 + $0x298] sm:$0xff]
        %v4976 = vld [vmem:[%s348 + $0x2a0] sm:$0xff]
        %v4977 = vld [vmem:[%s348 + $0x2a8] sm:$0xff]
        %v4978 = vld [vmem:[%s348 + $0x2b0] sm:$0xff]
        %v4979 = vld [vmem:[%s348 + $0x2b8] sm:$0xff]
        %v4980 = vld [vmem:[%s348 + $0x2c0] sm:$0xff]
        %v4981 = vld [vmem:[%s348 + $0x2c8] sm:$0xff]
        %v4982 = vld [vmem:[%s348 + $0x2d0] sm:$0xff]
        %v4983 = vld [vmem:[%s348 + $0x2d8] sm:$0xff]
        %v4984 = vld [vmem:[%s348 + $0x2e0] sm:$0xff]
        %v4985 = vld [vmem:[%s348 + $0x2e8] sm:$0xff]
        %v4986 = vld [vmem:[%s348 + $0x2f0] sm:$0xff]
        %v4987 = vld [vmem:[%s348 + $0x2f8] sm:$0xff]
        %v4988 = vld [vmem:[%s348 + $0x300] sm:$0xff]
        %v4989 = vld [vmem:[%s348 + $0x308] sm:$0xff]
        %v4990 = vld [vmem:[%s348 + $0x310] sm:$0xff]
        %v4991 = vld [vmem:[%s348 + $0x318] sm:$0xff]
        %v4992 = vld [vmem:[%s348 + $0x320] sm:$0xff]
        %v4993 = vld [vmem:[%s348 + $0x328] sm:$0xff]
        %v4994 = vld [vmem:[%s348 + $0x330] sm:$0xff]
        %v4995 = vld [vmem:[%s348 + $0x338] sm:$0xff]
        %v4996 = vld [vmem:[%s348 + $0x340] sm:$0xff]
        %v4997 = vld [vmem:[%s348 + $0x348] sm:$0xff]
        %v4998 = vld [vmem:[%s348 + $0x350] sm:$0xff]
        %v4999 = vld [vmem:[%s348 + $0x358] sm:$0xff]
        %v5000 = vld [vmem:[%s348 + $0x360] sm:$0xff]
        %v5001 = vld [vmem:[%s348 + $0x368] sm:$0xff]
        %v5002 = vld [vmem:[%s348 + $0x370] sm:$0xff]
        %v5003 = vld [vmem:[%s348 + $0x378] sm:$0xff]
        %v5004 = vld [vmem:[%s348 + $0x380] sm:$0xff]
        %v5005 = vld [vmem:[%s348 + $0x388] sm:$0xff]
        %v5006 = vld [vmem:[%s348 + $0x390] sm:$0xff]
        %v5007 = vld [vmem:[%s348 + $0x398] sm:$0xff]
        %v5008 = vld [vmem:[%s348 + $0x3a0] sm:$0xff]
        %v5009 = vld [vmem:[%s348 + $0x3a8] sm:$0xff]
        %v5010 = vld [vmem:[%s348 + $0x3b0] sm:$0xff]
        %v5011 = vld [vmem:[%s348 + $0x3b8] sm:$0xff]
        %v5012 = vld [vmem:[%s348 + $0x3c0] sm:$0xff]
        %v5013 = vld [vmem:[%s348 + $0x3c8] sm:$0xff]
        %v5014 = vld [vmem:[%s348 + $0x3d0] sm:$0xff]
        %v5015 = vld [vmem:[%s348 + $0x3d8] sm:$0xff]
        %v5016 = vld [vmem:[%s348 + $0x3e0] sm:$0xff]
        %v5017 = vld [vmem:[%s348 + $0x3e8] sm:$0xff]
        %v5018 = vld [vmem:[%s348 + $0x3f0] sm:$0xff]
        %v5019 = vld [vmem:[%s348 + $0x3f8] sm:$0xff]
        %v5148 = vunpack.c.l.b16 %v4892
        %v5149 = vunpack.c.h.b16 %v4892
        %v5150 = vunpack.c.l.b16 %v4893
        %v5151 = vunpack.c.h.b16 %v4893
        %v5152 = vunpack.c.l.b16 %v4894
        %v5153 = vunpack.c.h.b16 %v4894
        %v5154 = vunpack.c.l.b16 %v4895
        %v5155 = vunpack.c.h.b16 %v4895
        %v5156 = vunpack.c.l.b16 %v4896
        %v5157 = vunpack.c.h.b16 %v4896
        %v5158 = vunpack.c.l.b16 %v4897
        %v5159 = vunpack.c.h.b16 %v4897
        %v5160 = vunpack.c.l.b16 %v4898
        %v5161 = vunpack.c.h.b16 %v4898
        %v5162 = vunpack.c.l.b16 %v4899
        %v5163 = vunpack.c.h.b16 %v4899
        %v5164 = vunpack.c.l.b16 %v4900
        %v5165 = vunpack.c.h.b16 %v4900
        %v5166 = vunpack.c.l.b16 %v4901
        %v5167 = vunpack.c.h.b16 %v4901
        %v5168 = vunpack.c.l.b16 %v4902
        %v5169 = vunpack.c.h.b16 %v4902
        %v5170 = vunpack.c.l.b16 %v4903
        %v5171 = vunpack.c.h.b16 %v4903
        %v5172 = vunpack.c.l.b16 %v4904
        %v5173 = vunpack.c.h.b16 %v4904
        %v5174 = vunpack.c.l.b16 %v4905
        %v5175 = vunpack.c.h.b16 %v4905
        %v5176 = vunpack.c.l.b16 %v4906
        %v5177 = vunpack.c.h.b16 %v4906
        %v5178 = vunpack.c.l.b16 %v4907
        %v5179 = vunpack.c.h.b16 %v4907
        %v5180 = vunpack.c.l.b16 %v4908
        %v5181 = vunpack.c.h.b16 %v4908
        %v5182 = vunpack.c.l.b16 %v4909
        %v5183 = vunpack.c.h.b16 %v4909
        %v5184 = vunpack.c.l.b16 %v4910
        %v5185 = vunpack.c.h.b16 %v4910
        %v5186 = vunpack.c.l.b16 %v4911
        %v5187 = vunpack.c.h.b16 %v4911
        %v5188 = vunpack.c.l.b16 %v4912
        %v5189 = vunpack.c.h.b16 %v4912
        %v5190 = vunpack.c.l.b16 %v4913
        %v5191 = vunpack.c.h.b16 %v4913
        %v5192 = vunpack.c.l.b16 %v4914
        %v5193 = vunpack.c.h.b16 %v4914
        %v5194 = vunpack.c.l.b16 %v4915
        %v5195 = vunpack.c.h.b16 %v4915
        %v5196 = vunpack.c.l.b16 %v4916
        %v5197 = vunpack.c.h.b16 %v4916
        %v5198 = vunpack.c.l.b16 %v4917
        %v5199 = vunpack.c.h.b16 %v4917
        %v5200 = vunpack.c.l.b16 %v4918
        %v5201 = vunpack.c.h.b16 %v4918
        %v5202 = vunpack.c.l.b16 %v4919
        %v5203 = vunpack.c.h.b16 %v4919
        %v5204 = vunpack.c.l.b16 %v4920
        %v5205 = vunpack.c.h.b16 %v4920
        %v5206 = vunpack.c.l.b16 %v4921
        %v5207 = vunpack.c.h.b16 %v4921
        %v5208 = vunpack.c.l.b16 %v4922
        %v5209 = vunpack.c.h.b16 %v4922
        %v5210 = vunpack.c.l.b16 %v4923
        %v5211 = vunpack.c.h.b16 %v4923
        %v5212 = vunpack.c.l.b16 %v4924
        %v5213 = vunpack.c.h.b16 %v4924
        %v5214 = vunpack.c.l.b16 %v4925
        %v5215 = vunpack.c.h.b16 %v4925
        %v5216 = vunpack.c.l.b16 %v4926
        %v5217 = vunpack.c.h.b16 %v4926
        %v5218 = vunpack.c.l.b16 %v4927
        %v5219 = vunpack.c.h.b16 %v4927
        %v5220 = vunpack.c.l.b16 %v4928
        %v5221 = vunpack.c.h.b16 %v4928
        %v5222 = vunpack.c.l.b16 %v4929
        %v5223 = vunpack.c.h.b16 %v4929
        %v5224 = vunpack.c.l.b16 %v4930
        %v5225 = vunpack.c.h.b16 %v4930
        %v5226 = vunpack.c.l.b16 %v4931
        %v5227 = vunpack.c.h.b16 %v4931
        %v5228 = vunpack.c.l.b16 %v4932
        %v5229 = vunpack.c.h.b16 %v4932
        %v5230 = vunpack.c.l.b16 %v4933
        %v5231 = vunpack.c.h.b16 %v4933
        %v5232 = vunpack.c.l.b16 %v4934
        %v5233 = vunpack.c.h.b16 %v4934
        %v5234 = vunpack.c.l.b16 %v4935
        %v5235 = vunpack.c.h.b16 %v4935
        %v5236 = vunpack.c.l.b16 %v4936
        %v5237 = vunpack.c.h.b16 %v4936
        %v5238 = vunpack.c.l.b16 %v4937
        %v5239 = vunpack.c.h.b16 %v4937
        %v5240 = vunpack.c.l.b16 %v4938
        %v5241 = vunpack.c.h.b16 %v4938
        %v5242 = vunpack.c.l.b16 %v4939
        %v5243 = vunpack.c.h.b16 %v4939
        %v5244 = vunpack.c.l.b16 %v4940
        %v5245 = vunpack.c.h.b16 %v4940
        %v5246 = vunpack.c.l.b16 %v4941
        %v5247 = vunpack.c.h.b16 %v4941
        %v5248 = vunpack.c.l.b16 %v4942
        %v5249 = vunpack.c.h.b16 %v4942
        %v5250 = vunpack.c.l.b16 %v4943
        %v5251 = vunpack.c.h.b16 %v4943
        %v5252 = vunpack.c.l.b16 %v4944
        %v5253 = vunpack.c.h.b16 %v4944
        %v5254 = vunpack.c.l.b16 %v4945
        %v5255 = vunpack.c.h.b16 %v4945
        %v5256 = vunpack.c.l.b16 %v4946
        %v5257 = vunpack.c.h.b16 %v4946
        %v5258 = vunpack.c.l.b16 %v4947
        %v5259 = vunpack.c.h.b16 %v4947
        %v5260 = vunpack.c.l.b16 %v4948
        %v5261 = vunpack.c.h.b16 %v4948
        %v5262 = vunpack.c.l.b16 %v4949
        %v5263 = vunpack.c.h.b16 %v4949
        %v5264 = vunpack.c.l.b16 %v4950
        %v5265 = vunpack.c.h.b16 %v4950
        %v5266 = vunpack.c.l.b16 %v4951
        %v5267 = vunpack.c.h.b16 %v4951
        %v5268 = vunpack.c.l.b16 %v4952
        %v5269 = vunpack.c.h.b16 %v4952
        %v5270 = vunpack.c.l.b16 %v4953
        %v5271 = vunpack.c.h.b16 %v4953
        %v5272 = vunpack.c.l.b16 %v4954
        %v5273 = vunpack.c.h.b16 %v4954
        %v5274 = vunpack.c.l.b16 %v4955
        %v5275 = vunpack.c.h.b16 %v4955
        %v5276 = vunpack.c.l.b16 %v4956
        %v5277 = vunpack.c.h.b16 %v4956
        %v5278 = vunpack.c.l.b16 %v4957
        %v5279 = vunpack.c.h.b16 %v4957
        %v5280 = vunpack.c.l.b16 %v4958
        %v5281 = vunpack.c.h.b16 %v4958
        %v5282 = vunpack.c.l.b16 %v4959
        %v5283 = vunpack.c.h.b16 %v4959
        %v5284 = vunpack.c.l.b16 %v4960
        %v5285 = vunpack.c.h.b16 %v4960
        %v5286 = vunpack.c.l.b16 %v4961
        %v5287 = vunpack.c.h.b16 %v4961
        %v5288 = vunpack.c.l.b16 %v4962
        %v5289 = vunpack.c.h.b16 %v4962
        %v5290 = vunpack.c.l.b16 %v4963
        %v5291 = vunpack.c.h.b16 %v4963
        %v5292 = vunpack.c.l.b16 %v4964
        %v5293 = vunpack.c.h.b16 %v4964
        %v5294 = vunpack.c.l.b16 %v4965
        %v5295 = vunpack.c.h.b16 %v4965
        %v5296 = vunpack.c.l.b16 %v4966
        %v5297 = vunpack.c.h.b16 %v4966
        %v5298 = vunpack.c.l.b16 %v4967
        %v5299 = vunpack.c.h.b16 %v4967
        %v5300 = vunpack.c.l.b16 %v4968
        %v5301 = vunpack.c.h.b16 %v4968
        %v5302 = vunpack.c.l.b16 %v4969
        %v5303 = vunpack.c.h.b16 %v4969
        %v5304 = vunpack.c.l.b16 %v4970
        %v5305 = vunpack.c.h.b16 %v4970
        %v5306 = vunpack.c.l.b16 %v4971
        %v5307 = vunpack.c.h.b16 %v4971
        %v5308 = vunpack.c.l.b16 %v4972
        %v5309 = vunpack.c.h.b16 %v4972
        %v5310 = vunpack.c.l.b16 %v4973
        %v5311 = vunpack.c.h.b16 %v4973
        %v5312 = vunpack.c.l.b16 %v4974
        %v5313 = vunpack.c.h.b16 %v4974
        %v5314 = vunpack.c.l.b16 %v4975
        %v5315 = vunpack.c.h.b16 %v4975
        %v5316 = vunpack.c.l.b16 %v4976
        %v5317 = vunpack.c.h.b16 %v4976
        %v5318 = vunpack.c.l.b16 %v4977
        %v5319 = vunpack.c.h.b16 %v4977
        %v5320 = vunpack.c.l.b16 %v4978
        %v5321 = vunpack.c.h.b16 %v4978
        %v5322 = vunpack.c.l.b16 %v4979
        %v5323 = vunpack.c.h.b16 %v4979
        %v5324 = vunpack.c.l.b16 %v4980
        %v5325 = vunpack.c.h.b16 %v4980
        %v5326 = vunpack.c.l.b16 %v4981
        %v5327 = vunpack.c.h.b16 %v4981
        %v5328 = vunpack.c.l.b16 %v4982
        %v5329 = vunpack.c.h.b16 %v4982
        %v5330 = vunpack.c.l.b16 %v4983
        %v5331 = vunpack.c.h.b16 %v4983
        %v5332 = vunpack.c.l.b16 %v4984
        %v5333 = vunpack.c.h.b16 %v4984
        %v5334 = vunpack.c.l.b16 %v4985
        %v5335 = vunpack.c.h.b16 %v4985
        %v5336 = vunpack.c.l.b16 %v4986
        %v5337 = vunpack.c.h.b16 %v4986
        %v5338 = vunpack.c.l.b16 %v4987
        %v5339 = vunpack.c.h.b16 %v4987
        %v5340 = vunpack.c.l.b16 %v4988
        %v5341 = vunpack.c.h.b16 %v4988
        %v5342 = vunpack.c.l.b16 %v4989
        %v5343 = vunpack.c.h.b16 %v4989
        %v5344 = vunpack.c.l.b16 %v4990
        %v5345 = vunpack.c.h.b16 %v4990
        %v5346 = vunpack.c.l.b16 %v4991
        %v5347 = vunpack.c.h.b16 %v4991
        %v5348 = vunpack.c.l.b16 %v4992
        %v5349 = vunpack.c.h.b16 %v4992
        %v5350 = vunpack.c.l.b16 %v4993
        %v5351 = vunpack.c.h.b16 %v4993
        %v5352 = vunpack.c.l.b16 %v4994
        %v5353 = vunpack.c.h.b16 %v4994
        %v5354 = vunpack.c.l.b16 %v4995
        %v5355 = vunpack.c.h.b16 %v4995
        %v5356 = vunpack.c.l.b16 %v4996
        %v5357 = vunpack.c.h.b16 %v4996
        %v5358 = vunpack.c.l.b16 %v4997
        %v5359 = vunpack.c.h.b16 %v4997
        %v5360 = vunpack.c.l.b16 %v4998
        %v5361 = vunpack.c.h.b16 %v4998
        %v5362 = vunpack.c.l.b16 %v4999
        %v5363 = vunpack.c.h.b16 %v4999
        %v5364 = vunpack.c.l.b16 %v5000
        %v5365 = vunpack.c.h.b16 %v5000
        %v5366 = vunpack.c.l.b16 %v5001
        %v5367 = vunpack.c.h.b16 %v5001
        %v5368 = vunpack.c.l.b16 %v5002
        %v5369 = vunpack.c.h.b16 %v5002
        %v5370 = vunpack.c.l.b16 %v5003
        %v5371 = vunpack.c.h.b16 %v5003
        %v5372 = vunpack.c.l.b16 %v5004
        %v5373 = vunpack.c.h.b16 %v5004
        %v5374 = vunpack.c.l.b16 %v5005
        %v5375 = vunpack.c.h.b16 %v5005
        %v5376 = vunpack.c.l.b16 %v5006
        %v5377 = vunpack.c.h.b16 %v5006
        %v5378 = vunpack.c.l.b16 %v5007
        %v5379 = vunpack.c.h.b16 %v5007
        %v5380 = vunpack.c.l.b16 %v5008
        %v5381 = vunpack.c.h.b16 %v5008
        %v5382 = vunpack.c.l.b16 %v5009
        %v5383 = vunpack.c.h.b16 %v5009
        %v5384 = vunpack.c.l.b16 %v5010
        %v5385 = vunpack.c.h.b16 %v5010
        %v5386 = vunpack.c.l.b16 %v5011
        %v5387 = vunpack.c.h.b16 %v5011
        %v5388 = vunpack.c.l.b16 %v5012
        %v5389 = vunpack.c.h.b16 %v5012
        %v5390 = vunpack.c.l.b16 %v5013
        %v5391 = vunpack.c.h.b16 %v5013
        %v5392 = vunpack.c.l.b16 %v5014
        %v5393 = vunpack.c.h.b16 %v5014
        %v5394 = vunpack.c.l.b16 %v5015
        %v5395 = vunpack.c.h.b16 %v5015
        %v5396 = vunpack.c.l.b16 %v5016
        %v5397 = vunpack.c.h.b16 %v5016
        %v5398 = vunpack.c.l.b16 %v5017
        %v5399 = vunpack.c.h.b16 %v5017
        %v5400 = vunpack.c.l.b16 %v5018
        %v5401 = vunpack.c.h.b16 %v5018
        %v5402 = vunpack.c.l.b16 %v5019
        %v5403 = vunpack.c.h.b16 %v5019
        %v5404 = vpack.c.b16 %v5152, %v5148
        %v5405 = vpack.c.b16 %v5153, %v5149
        %v5406 = vpack.c.b16 %v5154, %v5150
        %v5407 = vpack.c.b16 %v5155, %v5151
        %v5408 = vpack.c.b16 %v5160, %v5156
        %v5409 = vpack.c.b16 %v5161, %v5157
        %v5410 = vpack.c.b16 %v5162, %v5158
        %v5411 = vpack.c.b16 %v5163, %v5159
        %v5412 = vpack.c.b16 %v5168, %v5164
        %v5413 = vpack.c.b16 %v5169, %v5165
        %v5414 = vpack.c.b16 %v5170, %v5166
        %v5415 = vpack.c.b16 %v5171, %v5167
        %v5416 = vpack.c.b16 %v5176, %v5172
        %v5417 = vpack.c.b16 %v5177, %v5173
        %v5418 = vpack.c.b16 %v5178, %v5174
        %v5419 = vpack.c.b16 %v5179, %v5175
        %v5420 = vpack.c.b16 %v5184, %v5180
        %v5421 = vpack.c.b16 %v5185, %v5181
        %v5422 = vpack.c.b16 %v5186, %v5182
        %v5423 = vpack.c.b16 %v5187, %v5183
        %v5424 = vpack.c.b16 %v5192, %v5188
        %v5425 = vpack.c.b16 %v5193, %v5189
        %v5426 = vpack.c.b16 %v5194, %v5190
        %v5427 = vpack.c.b16 %v5195, %v5191
        %v5428 = vpack.c.b16 %v5200, %v5196
        %v5429 = vpack.c.b16 %v5201, %v5197
        %v5430 = vpack.c.b16 %v5202, %v5198
        %v5431 = vpack.c.b16 %v5203, %v5199
        %v5432 = vpack.c.b16 %v5208, %v5204
        %v5433 = vpack.c.b16 %v5209, %v5205
        %v5434 = vpack.c.b16 %v5210, %v5206
        %v5435 = vpack.c.b16 %v5211, %v5207
        %v5436 = vpack.c.b16 %v5216, %v5212
        %v5437 = vpack.c.b16 %v5217, %v5213
        %v5438 = vpack.c.b16 %v5218, %v5214
        %v5439 = vpack.c.b16 %v5219, %v5215
        %v5440 = vpack.c.b16 %v5224, %v5220
        %v5441 = vpack.c.b16 %v5225, %v5221
        %v5442 = vpack.c.b16 %v5226, %v5222
        %v5443 = vpack.c.b16 %v5227, %v5223
        %v5444 = vpack.c.b16 %v5232, %v5228
        %v5445 = vpack.c.b16 %v5233, %v5229
        %v5446 = vpack.c.b16 %v5234, %v5230
        %v5447 = vpack.c.b16 %v5235, %v5231
        %v5448 = vpack.c.b16 %v5240, %v5236
        %v5449 = vpack.c.b16 %v5241, %v5237
        %v5450 = vpack.c.b16 %v5242, %v5238
        %v5451 = vpack.c.b16 %v5243, %v5239
        %v5452 = vpack.c.b16 %v5248, %v5244
        %v5453 = vpack.c.b16 %v5249, %v5245
        %v5454 = vpack.c.b16 %v5250, %v5246
        %v5455 = vpack.c.b16 %v5251, %v5247
        %v5456 = vpack.c.b16 %v5256, %v5252
        %v5457 = vpack.c.b16 %v5257, %v5253
        %v5458 = vpack.c.b16 %v5258, %v5254
        %v5459 = vpack.c.b16 %v5259, %v5255
        %v5460 = vpack.c.b16 %v5264, %v5260
        %v5461 = vpack.c.b16 %v5265, %v5261
        %v5462 = vpack.c.b16 %v5266, %v5262
        %v5463 = vpack.c.b16 %v5267, %v5263
        %v5464 = vpack.c.b16 %v5272, %v5268
        %v5465 = vpack.c.b16 %v5273, %v5269
        %v5466 = vpack.c.b16 %v5274, %v5270
        %v5467 = vpack.c.b16 %v5275, %v5271
        %v5468 = vpack.c.b16 %v5280, %v5276
        %v5469 = vpack.c.b16 %v5281, %v5277
        %v5470 = vpack.c.b16 %v5282, %v5278
        %v5471 = vpack.c.b16 %v5283, %v5279
        %v5472 = vpack.c.b16 %v5288, %v5284
        %v5473 = vpack.c.b16 %v5289, %v5285
        %v5474 = vpack.c.b16 %v5290, %v5286
        %v5475 = vpack.c.b16 %v5291, %v5287
        %v5476 = vpack.c.b16 %v5296, %v5292
        %v5477 = vpack.c.b16 %v5297, %v5293
        %v5478 = vpack.c.b16 %v5298, %v5294
        %v5479 = vpack.c.b16 %v5299, %v5295
        %v5480 = vpack.c.b16 %v5304, %v5300
        %v5481 = vpack.c.b16 %v5305, %v5301
        %v5482 = vpack.c.b16 %v5306, %v5302
        %v5483 = vpack.c.b16 %v5307, %v5303
        %v5484 = vpack.c.b16 %v5312, %v5308
        %v5485 = vpack.c.b16 %v5313, %v5309
        %v5486 = vpack.c.b16 %v5314, %v5310
        %v5487 = vpack.c.b16 %v5315, %v5311
        %v5488 = vpack.c.b16 %v5320, %v5316
        %v5489 = vpack.c.b16 %v5321, %v5317
        %v5490 = vpack.c.b16 %v5322, %v5318
        %v5491 = vpack.c.b16 %v5323, %v5319
        %v5492 = vpack.c.b16 %v5328, %v5324
        %v5493 = vpack.c.b16 %v5329, %v5325
        %v5494 = vpack.c.b16 %v5330, %v5326
        %v5495 = vpack.c.b16 %v5331, %v5327
        %v5496 = vpack.c.b16 %v5336, %v5332
        %v5497 = vpack.c.b16 %v5337, %v5333
        %v5498 = vpack.c.b16 %v5338, %v5334
        %v5499 = vpack.c.b16 %v5339, %v5335
        %v5500 = vpack.c.b16 %v5344, %v5340
        %v5501 = vpack.c.b16 %v5345, %v5341
        %v5502 = vpack.c.b16 %v5346, %v5342
        %v5503 = vpack.c.b16 %v5347, %v5343
        %v5504 = vpack.c.b16 %v5352, %v5348
        %v5505 = vpack.c.b16 %v5353, %v5349
        %v5506 = vpack.c.b16 %v5354, %v5350
        %v5507 = vpack.c.b16 %v5355, %v5351
        %v5508 = vpack.c.b16 %v5360, %v5356
        %v5509 = vpack.c.b16 %v5361, %v5357
        %v5510 = vpack.c.b16 %v5362, %v5358
        %v5511 = vpack.c.b16 %v5363, %v5359
        %v5512 = vpack.c.b16 %v5368, %v5364
        %v5513 = vpack.c.b16 %v5369, %v5365
        %v5514 = vpack.c.b16 %v5370, %v5366
        %v5515 = vpack.c.b16 %v5371, %v5367
        %v5516 = vpack.c.b16 %v5376, %v5372
        %v5517 = vpack.c.b16 %v5377, %v5373
        %v5518 = vpack.c.b16 %v5378, %v5374
        %v5519 = vpack.c.b16 %v5379, %v5375
        %v5520 = vpack.c.b16 %v5384, %v5380
        %v5521 = vpack.c.b16 %v5385, %v5381
        %v5522 = vpack.c.b16 %v5386, %v5382
        %v5523 = vpack.c.b16 %v5387, %v5383
        %v5524 = vpack.c.b16 %v5392, %v5388
        %v5525 = vpack.c.b16 %v5393, %v5389
        %v5526 = vpack.c.b16 %v5394, %v5390
        %v5527 = vpack.c.b16 %v5395, %v5391
        %v5528 = vpack.c.b16 %v5400, %v5396
        %v5529 = vpack.c.b16 %v5401, %v5397
        %v5530 = vpack.c.b16 %v5402, %v5398
        %v5531 = vpack.c.b16 %v5403, %v5399
        %5660 = vmatprep.subr.bf16.mxu0 %v5405
        %5661 = vmatpush1.bf16.msra.mxu0 %v5404
        %5662 = vmatprep.subr.bf16.mxu0 %v5409
        %5663 = vmatpush1.bf16.msra.mxu0 %v5408
        %5664 = vmatprep.subr.bf16.mxu0 %v5413
        %5665 = vmatpush1.bf16.msra.mxu0 %v5412
        %5666 = vmatprep.subr.bf16.mxu0 %v5417
        %5667 = vmatpush1.bf16.msra.mxu0 %v5416
        %5668 = vmatprep.subr.bf16.mxu0 %v5421
        %5669 = vmatpush1.bf16.msra.mxu0 %v5420
        %5670 = vmatprep.subr.bf16.mxu0 %v5425
        %5671 = vmatpush1.bf16.msra.mxu0 %v5424
        %5672 = vmatprep.subr.bf16.mxu0 %v5429
        %5673 = vmatpush1.bf16.msra.mxu0 %v5428
        %5674 = vmatprep.subr.bf16.mxu0 %v5433
        %5675 = vmatpush1.bf16.msra.mxu0 %v5432
        %5676 = vmatprep.subr.bf16.mxu0 %v5437
        %5677 = vmatpush1.bf16.msra.mxu0 %v5436
        %5678 = vmatprep.subr.bf16.mxu0 %v5441
        %5679 = vmatpush1.bf16.msra.mxu0 %v5440
        %5680 = vmatprep.subr.bf16.mxu0 %v5445
        %5681 = vmatpush1.bf16.msra.mxu0 %v5444
        %5682 = vmatprep.subr.bf16.mxu0 %v5449
        %5683 = vmatpush1.bf16.msra.mxu0 %v5448
        %5684 = vmatprep.subr.bf16.mxu0 %v5453
        %5685 = vmatpush1.bf16.msra.mxu0 %v5452
        %5686 = vmatprep.subr.bf16.mxu0 %v5457
        %5687 = vmatpush1.bf16.msra.mxu0 %v5456
        %5688 = vmatprep.subr.bf16.mxu0 %v5461
        %5689 = vmatpush1.bf16.msra.mxu0 %v5460
        %5690 = vmatprep.subr.bf16.mxu0 %v5465
        %5691 = vmatpush1.bf16.msra.mxu0 %v5464
        %5692 = vmatprep.mubr.bf16.mxu0 %v4889
        %5693 = vmatmul.mubr.bf16.gmra.mrb[0].mxu0 %v4888
        %v5694 = vpop.f32.mrb[0].mxu0
        %v5695 = vadd.f32 0.0, %v5694
        %v5696 = vpop.f32.mrb[0].mxu0
        %v5697 = vadd.f32 0.0, %v5696
        %v5698 = vpop.f32.mrb[0].mxu0
        %v5699 = vpop.f32.mrb[0].mxu0
        %5700 = vdwg.mxu0
        %5701 = vmatprep.subr.bf16.mxu0 %v5469
        %5702 = vmatpush1.bf16.msra.mxu0 %v5468
        %5703 = vmatprep.subr.bf16.mxu0 %v5473
        %5704 = vmatpush1.bf16.msra.mxu0 %v5472
        %5705 = vmatprep.subr.bf16.mxu0 %v5477
        %5706 = vmatpush1.bf16.msra.mxu0 %v5476
        %5707 = vmatprep.subr.bf16.mxu0 %v5481
        %5708 = vmatpush1.bf16.msra.mxu0 %v5480
        %5709 = vmatprep.subr.bf16.mxu0 %v5485
        %5710 = vmatpush1.bf16.msra.mxu0 %v5484
        %5711 = vmatprep.subr.bf16.mxu0 %v5489
        %5712 = vmatpush1.bf16.msra.mxu0 %v5488
        %5713 = vmatprep.subr.bf16.mxu0 %v5493
        %5714 = vmatpush1.bf16.msra.mxu0 %v5492
        %5715 = vmatprep.subr.bf16.mxu0 %v5497
        %5716 = vmatpush1.bf16.msra.mxu0 %v5496
        %5717 = vmatprep.subr.bf16.mxu0 %v5501
        %5718 = vmatpush1.bf16.msra.mxu0 %v5500
        %5719 = vmatprep.subr.bf16.mxu0 %v5505
        %5720 = vmatpush1.bf16.msra.mxu0 %v5504
        %5721 = vmatprep.subr.bf16.mxu0 %v5509
        %5722 = vmatpush1.bf16.msra.mxu0 %v5508
        %5723 = vmatprep.subr.bf16.mxu0 %v5513
        %5724 = vmatpush1.bf16.msra.mxu0 %v5512
        %5725 = vmatprep.subr.bf16.mxu0 %v5517
        %5726 = vmatpush1.bf16.msra.mxu0 %v5516
        %5727 = vmatprep.subr.bf16.mxu0 %v5521
        %5728 = vmatpush1.bf16.msra.mxu0 %v5520
        %5729 = vmatprep.subr.bf16.mxu0 %v5525
        %5730 = vmatpush1.bf16.msra.mxu0 %v5524
        %5731 = vmatprep.subr.bf16.mxu0 %v5529
        %5732 = vmatpush1.bf16.msra.mxu0 %v5528
        %5733 = vmatprep.mubr.bf16.mxu0 %v4891
        %5734 = vmatmul.mubr.bf16.gmra.mrb[0].mxu0 %v4890
        %v5735 = vpop.f32.mrb[0].mxu0
        %v5736 = vadd.f32 %v5695, %v5735
        %v5737 = vpop.f32.mrb[0].mxu0
        %v5738 = vadd.f32 %v5697, %v5737
        %v5739 = vpop.f32.mrb[0].mxu0
        %v5740 = vpop.f32.mrb[0].mxu0
        %5741 = vdwg.mxu0
        %5742 = vmatprep.subr.bf16.mxu0 %v5407
        %5743 = vmatpush1.bf16.msra.mxu0 %v5406
        %5744 = vmatprep.subr.bf16.mxu0 %v5411
        %5745 = vmatpush1.bf16.msra.mxu0 %v5410
        %5746 = vmatprep.subr.bf16.mxu0 %v5415
        %5747 = vmatpush1.bf16.msra.mxu0 %v5414
        %5748 = vmatprep.subr.bf16.mxu0 %v5419
        %5749 = vmatpush1.bf16.msra.mxu0 %v5418
        %5750 = vmatprep.subr.bf16.mxu0 %v5423
        %5751 = vmatpush1.bf16.msra.mxu0 %v5422
        %5752 = vmatprep.subr.bf16.mxu0 %v5427
        %5753 = vmatpush1.bf16.msra.mxu0 %v5426
        %5754 = vmatprep.subr.bf16.mxu0 %v5431
        %5755 = vmatpush1.bf16.msra.mxu0 %v5430
        %5756 = vmatprep.subr.bf16.mxu0 %v5435
        %5757 = vmatpush1.bf16.msra.mxu0 %v5434
        %5758 = vmatprep.subr.bf16.mxu0 %v5439
        %5759 = vmatpush1.bf16.msra.mxu0 %v5438
        %5760 = vmatprep.subr.bf16.mxu0 %v5443
        %5761 = vmatpush1.bf16.msra.mxu0 %v5442
        %5762 = vmatprep.subr.bf16.mxu0 %v5447
        %5763 = vmatpush1.bf16.msra.mxu0 %v5446
        %5764 = vmatprep.subr.bf16.mxu0 %v5451
        %5765 = vmatpush1.bf16.msra.mxu0 %v5450
        %5766 = vmatprep.subr.bf16.mxu0 %v5455
        %5767 = vmatpush1.bf16.msra.mxu0 %v5454
        %5768 = vmatprep.subr.bf16.mxu0 %v5459
        %5769 = vmatpush1.bf16.msra.mxu0 %v5458
        %5770 = vmatprep.subr.bf16.mxu0 %v5463
        %5771 = vmatpush1.bf16.msra.mxu0 %v5462
        %5772 = vmatprep.subr.bf16.mxu0 %v5467
        %5773 = vmatpush1.bf16.msra.mxu0 %v5466
        %5774 = vmatprep.mubr.bf16.mxu0 %v4889
        %5775 = vmatmul.mubr.bf16.gmra.mrb[0].mxu0 %v4888
        %v5776 = vpop.f32.mrb[0].mxu0
        %v5777 = vadd.f32 0.0, %v5776
        %v5778 = vpop.f32.mrb[0].mxu0
        %v5779 = vadd.f32 0.0, %v5778
        %v5780 = vpop.f32.mrb[0].mxu0
        %v5781 = vpop.f32.mrb[0].mxu0
        %5782 = vdwg.mxu0
        %5783 = vmatprep.subr.bf16.mxu0 %v5471
        %5784 = vmatpush1.bf16.msra.mxu0 %v5470
        %5785 = vmatprep.subr.bf16.mxu0 %v5475
        %5786 = vmatpush1.bf16.msra.mxu0 %v5474
        %5787 = vmatprep.subr.bf16.mxu0 %v5479
        %5788 = vmatpush1.bf16.msra.mxu0 %v5478
        %5789 = vmatprep.subr.bf16.mxu0 %v5483
        %5790 = vmatpush1.bf16.msra.mxu0 %v5482
        %5791 = vmatprep.subr.bf16.mxu0 %v5487
        %5792 = vmatpush1.bf16.msra.mxu0 %v5486
        %5793 = vmatprep.subr.bf16.mxu0 %v5491
        %5794 = vmatpush1.bf16.msra.mxu0 %v5490
        %5795 = vmatprep.subr.bf16.mxu0 %v5495
        %5796 = vmatpush1.bf16.msra.mxu0 %v5494
        %5797 = vmatprep.subr.bf16.mxu0 %v5499
        %5798 = vmatpush1.bf16.msra.mxu0 %v5498
        %5799 = vmatprep.subr.bf16.mxu0 %v5503
        %5800 = vmatpush1.bf16.msra.mxu0 %v5502
        %5801 = vmatprep.subr.bf16.mxu0 %v5507
        %5802 = vmatpush1.bf16.msra.mxu0 %v5506
        %5803 = vmatprep.subr.bf16.mxu0 %v5511
        %5804 = vmatpush1.bf16.msra.mxu0 %v5510
        %5805 = vmatprep.subr.bf16.mxu0 %v5515
        %5806 = vmatpush1.bf16.msra.mxu0 %v5514
        %5807 = vmatprep.subr.bf16.mxu0 %v5519
        %5808 = vmatpush1.bf16.msra.mxu0 %v5518
        %5809 = vmatprep.subr.bf16.mxu0 %v5523
        %5810 = vmatpush1.bf16.msra.mxu0 %v5522
        %5811 = vmatprep.subr.bf16.mxu0 %v5527
        %5812 = vmatpush1.bf16.msra.mxu0 %v5526
        %5813 = vmatprep.subr.bf16.mxu0 %v5531
        %5814 = vmatpush1.bf16.msra.mxu0 %v5530
        %5815 = vmatprep.mubr.bf16.mxu0 %v4891
        %5816 = vmatmul.mubr.bf16.gmra.mrb[0].mxu0 %v4890
        %v5817 = vpop.f32.mrb[0].mxu0
        %v5818 = vadd.f32 %v5777, %v5817
        %v5819 = vpop.f32.mrb[0].mxu0
        %v5820 = vadd.f32 %v5779, %v5819
        %v5821 = vpop.f32.mrb[0].mxu0
        %v5822 = vpop.f32.mrb[0].mxu0
        %5823 = vdwg.mxu0
        %v5824 = vadd.f32 %v4884, %v5736
        %v5825 = vadd.f32 %v4885, %v5738
        %v5826 = vadd.f32 %v4886, %v5818
        %v5827 = vadd.f32 %v4887, %v5820
        %5828 = vst [vmem:[%s405] sm:$0xff] %v5824
        %5829 = vst [vmem:[%s405 + $0x8] sm:$0xff] %v5825
        %5830 = vst [vmem:[%s405 + $0x10] sm:$0xff] %v5826
        %5831 = vst [vmem:[%s405 + $0x18] sm:$0xff] %v5827
        %p5832 = scmp.lt.s32.totalorder %s29, 1
        %s5833 = scalar_select %p5832, %s29, 1
        %s5834 = smul.addr %s5833, 4
        %s5835 = smul.addr %s5834, 8
        %s5836 = scalar_lea.vmem %s5, %s5835
        // Predicated region
        $region61: #{text_branch2_forward.1} parent=39 // pred_check
          %p5837 = pneg %p196
        $region62: #{text_branch2_forward.1} parent=39 // pred_check_branch
          %5839 = sbr.rel (%p5837) target = $region64
        $region63: #{text_branch2_forward.1} parent=39 // pred_region
          _
        $region64: #{text_branch2_forward.1} parent=39 // pred_fallthru
          _
      $region40: #{text_branch2_forward.1} parent=5 // pred_fallthru
        _
      %p5840 = scmp.le.s32.totalorder 2, %s20
      // Predicated region
      $region65: #{text_branch2_forward.1} parent=5 // pred_check
        %p5841 = pneg %p5840
      $region66: #{text_branch2_forward.1} parent=5 // pred_check_branch
        %5843 = sbr.rel (%p5841) target = $region68
      $region67: #{text_branch2_forward.1} parent=5 // pred_region
        %s5844 = ssub.s32 %s20, 2
        // Predicated region
        $region69: #{text_branch2_forward.1} parent=67 // pred_check
          %p5845 = pneg %p202
        $region70: #{text_branch2_forward.1} parent=67 // pred_check_branch
          %5847 = sbr.rel (%p5845) target = $region72
        $region71: #{text_branch2_forward.1} parent=67 // pred_region
          %p5848 = scmp.lt.s32.totalorder %s31, 1
          %s5849 = scalar_select %p5848, %s31, 1
          %s5850 = smul.addr %s5849, 4
          %s5851 = smul.addr %s5850, 8
          %s5852 = scalar_lea.vmem %s5, %s5851
        $region72: #{text_branch2_forward.1} parent=67 // pred_fallthru
          _
      $region68: #{text_branch2_forward.1} parent=5 // pred_fallthru
        _
    $region6: #{text_branch2_forward.1} parent=1 // loop_footer
      %s24 = sadd.s32 1, %s20
    $region7: #{text_branch2_forward.1} parent=1 // loop_footer_branch
      %19 = sbr.rel target = $region3
    $region8: #{text_branch2_forward.1} parent=1 // loop_exit
      _
    %5853 = vsyncpa [#allocation3], 1
    %s5854 = scalar_lea.sflag [#allocation3], 1
    %5855 = vsyncpa %s5854, 1
    %5856 = vsyncpa [#allocation5], 1
    %s5857 = scalar_lea.sflag [#allocation5], 1
    %5858 = vsyncpa %s5857, 1
    %5859 = vsyncpa [#allocation8], 1
    %s5860 = scalar_lea.sflag [#allocation8], 1
    %5861 = vsyncpa %s5860, 1

</llo_original>
